<compile_context>
chip_gen: v5e
topology: v5e:2x2
jax: 0.10.0
libtpu: 0.0.40
codegen_flags: <defaults>
</compile_context>

<pallas_src>
import functools
import numpy as np

import jax
import jax.numpy as jnp
from jax.experimental import pallas as pl
from jax.experimental.pallas import tpu as pltpu


def _round_up(x, m):
    return (x + m - 1) // m * m


# ----------------------------------------------------------------------------
# Fused forward kernel: conv branches + FC tail for a block of `block` samples
# ----------------------------------------------------------------------------
def fused_forward_kernel(x_ref, w1a_ref, w1b_ref, w2a_ref, w2b_ref,
                         wfc1_ref, wfc2_ref, epi_ref, o_ref, *, block):
    """One grid step = `block` samples.

    x_ref  : (24*B, 24)  h-major activation slab (row = h*B + b), f32.
    w*_ref : banded conv weights, bf16 (K = KH * lane_width_of_input).
    wfc*   : padded/permuted FC weights, bf16.
    epi_ref: (20, 144) f32 blob: per-layer [bias; BN scale; BN shift] rows,
             plus output-layer weight row and bias.
    o_ref  : (B, 1) final sigmoid output.
    """
    B = block
    bf16 = jnp.bfloat16

    def epi_rows(r, n):
        return (epi_ref[r:r + 1, :n],
                epi_ref[r + 1:r + 2, :n],
                epi_ref[r + 2:r + 3, :n])

    def conv(x2, hin, kh, w_ref, erow):
        """(hin*B, L) -> (hout*B, N): conv + bias + ReLU + folded BN as ONE
        MXU matmul; shifted row windows lane-concatenated along K."""
        hout = hin - kh + 1
        a = jnp.concatenate(
            [x2[i * B:(i + hout) * B, :] for i in range(kh)], axis=-1)
        y = jnp.dot(a.astype(bf16), w_ref[...],
                    preferred_element_type=jnp.float32)
        bias, scale, shift = erow
        return jnp.maximum(y + bias, 0.0) * scale + shift

    def pool(y2, hout, cout):
        """2x2/2 max-pool (floor mode), entirely on the VPU.

        Rows: max over sublane-aligned row groups (no MXU, no reshapes).
        Cols: max of two static lane slices; result stays in a *strided* lane
        layout (channel c of pooled col w at lane 2*w*cout + c) which the next
        layer's weights were built for -> no compaction work at runtime.
        """
        ho = hout // 2
        n = y2.shape[-1]
        rows = jnp.concatenate(
            [jnp.maximum(y2[(2 * q) * B:(2 * q + 1) * B, :],
                         y2[(2 * q + 1) * B:(2 * q + 2) * B, :])
             for q in range(ho)], axis=0)                       # (ho*B, n)
        return jnp.maximum(rows[:, :n - cout], rows[:, cout:])  # (ho*B, n-cout)

    x2 = x_ref[...]                                   # (24*B, 24)

    # ---- branch 1: conv5x5(1->6) -> pool -> conv3x3(6->16) -> pool ----------
    y = conv(x2, 24, 5, w1a_ref, epi_rows(0, 120))    # (20B, 120)
    p = pool(y, 20, 6)                                # (10B, 114)  strided lanes
    y = conv(p, 10, 3, w1b_ref, epi_rows(3, 128))     # (8B, 128)
    f1 = pool(y, 8, 16)                               # (4B, 112)

    # ---- branch 2: conv3x3(1->6) -> pool -> conv3x3(6->16) -> pool ----------
    y = conv(x2, 24, 3, w2a_ref, epi_rows(6, 132))    # (22B, 132)
    p = pool(y, 22, 6)                                # (11B, 126)
    y = conv(p, 11, 3, w2b_ref, epi_rows(9, 144))     # (9B, 144)
    f2 = pool(y, 9, 16)                               # (4B, 128)

    # ---- FC tail (flatten + branch concat folded into fc1's weight) ---------
    feat = jnp.concatenate(
        [f1[h * B:(h + 1) * B, :] for h in range(4)]
        + [f2[h * B:(h + 1) * B, :] for h in range(4)], axis=-1)   # (B, 960)

    b1, s1, t1 = epi_rows(12, 128)
    z = jnp.dot(feat.astype(bf16), wfc1_ref[...],
                preferred_element_type=jnp.float32)
    z = jax.nn.sigmoid(z + b1) * s1 + t1              # (B, 128), lanes 0:120 valid

    b2, s2, t2 = epi_rows(15, 128)
    z = jnp.dot(z.astype(bf16), wfc2_ref[...],
                preferred_element_type=jnp.float32)
    z = jax.nn.sigmoid(z + b2) * s2 + t2              # (B, 128), lanes 0:84 valid

    # Output layer: VPU multiply + cross-lane reduce (no 128-wide matmul).
    wo_bo = epi_ref[18:20, :128]
    pre = jnp.sum(z * wo_bo[0:1, :], axis=-1, keepdims=True) + wo_bo[1:2, 0:1]
    o_ref[...] = jax.nn.sigmoid(pre)                  # (B, 1)


# ----------------------------------------------------------------------------
# Forward wrapper
# ----------------------------------------------------------------------------
def make_forward(prep, max_block=128):
    weight_args = (prep["w1a"], prep["w1b"], prep["w2a"], prep["w2b"],
                   prep["w_fc1"], prep["w_fc2"], prep["epi"])

    def _fixed(a):  # full-array block, VMEM-resident across all grid steps
        zeros = (0,) * a.ndim
        return pl.BlockSpec(a.shape, lambda i, _z=zeros: _z)

    def fwd(x_nchw):
        n = x_nchw.shape[0]
        assert x_nchw.shape[1:] == (1, 24, 24), x_nchw.shape
        bsz = min(max_block, _round_up(n, 8))         # samples per grid step
        n_pad = _round_up(n, bsz)
        nb = n_pad // bsz

        # Host-side layout plumbing only: pad batch, then lay every block out
        # as a contiguous h-major 2-D slab (24*bsz, 24) so the kernel needs no
        # reshapes at all.
        x = x_nchw.reshape(n, 24, 24).astype(jnp.float32)
        if n_pad != n:
            x = jnp.pad(x, ((0, n_pad - n), (0, 0), (0, 0)))
        xh = (x.reshape(nb, bsz, 24, 24)
               .transpose(0, 2, 1, 3)
               .reshape(nb, 24 * bsz, 24))

        out = pl.pallas_call(
            functools.partial(fused_forward_kernel, block=bsz),
            grid=(nb,),
            in_specs=[pl.BlockSpec((None, 24 * bsz, 24), lambda i: (i, 0, 0))]
                     + [_fixed(a) for a in weight_args],
            out_specs=pl.BlockSpec((bsz, 1), lambda i: (i, 0)),
            out_shape=jax.ShapeDtypeStruct((n_pad, 1), jnp.float32),
            compiler_params=pltpu.CompilerParams(
                dimension_semantics=("parallel",)),
        )(xh, *weight_args)
        return out[:n]

    return jax.jit(fwd)


# ----------------------------------------------------------------------------
# Parameter init (PyTorch layouts) and one-time weight preparation
# ----------------------------------------------------------------------------
def init_params(key):
    keys = iter(jax.random.split(key, 64))

    def nrm(shape, s=0.1):
        return s * jax.random.normal(next(keys), shape, dtype=jnp.float32)

    def bn(c):
        gamma = 1.0 + nrm((c,))
        beta = nrm((c,))
        mean = nrm((c,))
        var = 1.0 + 0.5 * jax.random.uniform(next(keys), (c,), dtype=jnp.float32)
        return gamma, beta, mean, var

    p = {}
    p["conv1_1_w"], p["conv1_1_b"], p["bn1_1"] = nrm((6, 1, 5, 5)), nrm((6,)), bn(6)
    p["conv2_1_w"], p["conv2_1_b"], p["bn2_1"] = nrm((16, 6, 3, 3)), nrm((16,)), bn(16)
    p["conv1_2_w"], p["conv1_2_b"], p["bn1_2"] = nrm((6, 1, 3, 3)), nrm((6,)), bn(6)
    p["conv2_2_w"], p["conv2_2_b"], p["bn2_2"] = nrm((16, 6, 3, 3)), nrm((16,)), bn(16)
    p["fc1_w"], p["fc1_b"], p["fc1_bn"] = nrm((512, 120)), nrm((120,)), bn(120)
    p["fc2_w"], p["fc2_b"], p["fc2_bn"] = nrm((120, 84)), nrm((84,)), bn(84)
    p["out_w"], p["out_b"] = nrm((84, 1)), nrm((1,))
    return p


def _bn_fold(gamma, beta, mean, var, eps=1e-5):
    scale = gamma / np.sqrt(var + eps)
    shift = beta - mean * scale
    return scale, shift


def prepare(params):
    """Fold BN, build K-concatenated banded conv weights (aware of the strided
    post-pool lane layout), the permuted/padded FC weights and the packed
    epilogue blob.  Runs once at init time on the host (numpy)."""
    f32 = np.float32

    def npf(a):
        return np.asarray(a, f32)

    def banded(wkey, in_lane_map, l_in):
        """Banded conv weight for the one-matmul form:
        out[(h,b), o*Cout+co] = sum_{i,j,ci} A[(h,b), i*l_in + lane(o+j,ci)] * w
        where lane(wcol, ci) = in_lane_map[wcol] + ci."""
        w = npf(params[wkey])                         # (Cout, Cin, KH, KW)
        cout, cin, kh, kw = w.shape
        win = len(in_lane_map)
        wout = win - kw + 1
        W = np.zeros((kh * l_in, wout * cout), f32)
        for i in range(kh):
            for j in range(kw):
                for o in range(wout):
                    for ci in range(cin):
                        W[i * l_in + in_lane_map[o + j] + ci,
                          o * cout:(o + 1) * cout] = w[:, ci, i, j]
        return W

    def epi_conv(bkey, bnkey, wout):
        scale, shift = _bn_fold(*(npf(t) for t in params[bnkey]))
        return np.stack([np.tile(npf(params[bkey]), wout),
                         np.tile(scale, wout),
                         np.tile(shift, wout)])

    dense24 = list(range(24))                 # first conv: lane = w (Cin=1)
    strided = lambda wn: [12 * w for w in range(wn)]   # post-pool: lane = 12*w + c

    W1a = banded("conv1_1_w", dense24, 24)        # (120, 120)
    W1b = banded("conv2_1_w", strided(10), 114)   # (342, 128)
    W2a = banded("conv1_2_w", dense24, 24)        # (72, 132)
    W2b = banded("conv2_2_w", strided(11), 126)   # (378, 144)

    # Packed epilogue blob (f32): rows 0..11 conv layers, 12..17 fc layers,
    # 18 = output weights, 19 = output bias.
    E = np.zeros((20, 144), f32)
    E[0:3, :120] = epi_conv("conv1_1_b", "bn1_1", 20)
    E[3:6, :128] = epi_conv("conv2_1_b", "bn2_1", 8)
    E[6:9, :132] = epi_conv("conv1_2_b", "bn1_2", 22)
    E[9:12, :144] = epi_conv("conv2_2_b", "bn2_2", 9)

    # fc1: kernel features are 8 lane-concatenated pieces of width 112/128,
    # piece h of branch r, valid lane 32*w + c  <->  torch flat index
    # r*256 + c*16 + h*4 + w.  Fold that permutation into fc1's weight.
    fc1_w = npf(params["fc1_w"])                  # (512, 120)  (in, out)
    W_fc1 = np.zeros((960, 128), f32)
    for h in range(4):
        for w in range(4):
            for c in range(16):
                W_fc1[h * 112 + 32 * w + c, :120] = fc1_w[c * 16 + h * 4 + w, :]
                W_fc1[448 + h * 128 + 32 * w + c, :120] = \
                    fc1_w[256 + c * 16 + h * 4 + w, :]
    s1, t1 = _bn_fold(*(npf(t) for t in params["fc1_bn"]))
    E[12, :120], E[13, :120], E[14, :120] = npf(params["fc1_b"]), s1, t1

    W_fc2 = np.zeros((128, 128), f32)
    W_fc2[:120, :84] = npf(params["fc2_w"])
    s2, t2 = _bn_fold(*(npf(t) for t in params["fc2_bn"]))
    E[15, :84], E[16, :84], E[17, :84] = npf(params["fc2_b"]), s2, t2

    E[18, :84] = npf(params["out_w"])[:, 0]
    E[19, 0] = npf(params["out_b"])[0]

    bf16 = jnp.bfloat16
    return {
        "w1a": jnp.asarray(W1a, bf16), "w1b": jnp.asarray(W1b, bf16),
        "w2a": jnp.asarray(W2a, bf16), "w2b": jnp.asarray(W2b, bf16),
        "w_fc1": jnp.asarray(W_fc1, bf16), "w_fc2": jnp.asarray(W_fc2, bf16),
        "epi": jnp.asarray(E, jnp.float32),
    }


# ----------------------------------------------------------------------------
# Pure-JAX reference (mirrors the PyTorch module, eval mode) for validation
# ----------------------------------------------------------------------------
def reference_forward(params, x_nchw):
    x = jnp.asarray(x_nchw, jnp.float32)

    def conv2d(h, w, b):
        y = jax.lax.conv_general_dilated(
            h, w, window_strides=(1, 1), padding="VALID",
            dimension_numbers=("NCHW", "OIHW", "NCHW"))
        return y + b.reshape(1, -1, 1, 1)

    def bn2d(y, bn):
        gamma, beta, mean, var = bn
        s = gamma / jnp.sqrt(var + 1e-5)
        return y * s.reshape(1, -1, 1, 1) + (beta - mean * s).reshape(1, -1, 1, 1)

    def bn1d(y, bn):
        gamma, beta, mean, var = bn
        s = gamma / jnp.sqrt(var + 1e-5)
        return y * s + (beta - mean * s)

    def pool(y):
        return jax.lax.reduce_window(y, -jnp.inf, jax.lax.max,
                                     (1, 1, 2, 2), (1, 1, 2, 2), "VALID")

    n = x.shape[0]
    o1 = bn2d(jax.nn.relu(conv2d(x, params["conv1_1_w"], params["conv1_1_b"])), params["bn1_1"])
    o1 = pool(o1)
    o1 = bn2d(jax.nn.relu(conv2d(o1, params["conv2_1_w"], params["conv2_1_b"])), params["bn2_1"])
    o1 = pool(o1).reshape(n, -1)
    o2 = bn2d(jax.nn.relu(conv2d(x, params["conv1_2_w"], params["conv1_2_b"])), params["bn1_2"])
    o2 = pool(o2)
    o2 = bn2d(jax.nn.relu(conv2d(o2, params["conv2_2_w"], params["conv2_2_b"])), params["bn2_2"])
    o2 = pool(o2).reshape(n, -1)
    o = jnp.concatenate([o1, o2], axis=-1)
    o = bn1d(jax.nn.sigmoid(o @ params["fc1_w"] + params["fc1_b"]), params["fc1_bn"])
    o = bn1d(jax.nn.sigmoid(o @ params["fc2_w"] + params["fc2_b"]), params["fc2_bn"])
    return jax.nn.sigmoid(o @ params["out_w"] + params["out_b"])


if __name__ == "__main__":
    key = jax.random.PRNGKey(0)
    pkey, xkey = jax.random.split(key)
    params = init_params(pkey)
    prep = prepare(params)

    # 24x24 input so both branches flatten to 16*4*4 = 256 (fc1 expects 512 total).
    x = jax.random.normal(xkey, (2, 1, 24, 24), dtype=jnp.float32)   # NCHW like torch

    fwd = make_forward(prep)
    y = fwd(x)
    jax.block_until_ready(y)

    assert y.shape == (2, 1), y.shape
    assert bool(jnp.all(jnp.isfinite(y)))

    # Validate against the pure-JAX (f32) reference; kernels use bf16 MXU inputs.
    y_ref = reference_forward(params, x)
    err = float(jnp.max(jnp.abs(y - y_ref)))
    assert err < 2e-2, f"mismatch vs reference: max abs err {err}"
    print("KERNEL_OK")
</pallas_src>

<mosaic_0001>
module attributes {stable_mosaic.version = 11 : i64} {
  func.func @fused_forward_kernel(%arg0: i32, %arg1: memref<1x192x24xf32, #tpu.memory_space<vmem>>, %arg2: memref<120x120xbf16, #tpu.memory_space<vmem>>, %arg3: memref<342x128xbf16, #tpu.memory_space<vmem>>, %arg4: memref<72x132xbf16, #tpu.memory_space<vmem>>, %arg5: memref<378x144xbf16, #tpu.memory_space<vmem>>, %arg6: memref<960x128xbf16, #tpu.memory_space<vmem>>, %arg7: memref<128x128xbf16, #tpu.memory_space<vmem>>, %arg8: memref<20x144xf32, #tpu.memory_space<vmem>>, %arg9: memref<8x1xf32, #tpu.memory_space<vmem>>) attributes {dimension_semantics = [#tpu.dimension_semantics<parallel>], iteration_bounds = array<i64: 1>, scalar_prefetch = 0 : i64, scratch_operands = 0 : i64, tpu.core_type = #tpu.core_type<tc>, window_params = [{transform_indices = @transform_0, window_bounds = array<i64: 1, 192, 24>}, {pipeline_mode = #tpu.pipeline_mode<synchronous>, transform_indices = @transform_1, window_bounds = array<i64: 120, 120>}, {pipeline_mode = #tpu.pipeline_mode<synchronous>, transform_indices = @transform_2, window_bounds = array<i64: 342, 128>}, {pipeline_mode = #tpu.pipeline_mode<synchronous>, transform_indices = @transform_3, window_bounds = array<i64: 72, 132>}, {pipeline_mode = #tpu.pipeline_mode<synchronous>, transform_indices = @transform_4, window_bounds = array<i64: 378, 144>}, {pipeline_mode = #tpu.pipeline_mode<synchronous>, transform_indices = @transform_5, window_bounds = array<i64: 960, 128>}, {pipeline_mode = #tpu.pipeline_mode<synchronous>, transform_indices = @transform_6, window_bounds = array<i64: 128, 128>}, {pipeline_mode = #tpu.pipeline_mode<synchronous>, transform_indices = @transform_7, window_bounds = array<i64: 20, 144>}, {transform_indices = @transform_8, window_bounds = array<i64: 8, 1>}]} {
    %c0 = arith.constant 0 : index
    %c0_0 = arith.constant 0 : index
    %c0_1 = arith.constant 0 : index
    %0 = vector.load %arg1[%c0, %c0_0, %c0_1] : memref<1x192x24xf32, #tpu.memory_space<vmem>>, vector<1x192x24xf32>
    %1 = vector.shape_cast %0 : vector<1x192x24xf32> to vector<192x24xf32>
    %c0_2 = arith.constant 0 : index
    %c0_3 = arith.constant 0 : index
    %2 = vector.load %arg8[%c0_2, %c0_3] : memref<20x144xf32, #tpu.memory_space<vmem>>, vector<1x120xf32>
    %c1 = arith.constant 1 : index
    %c0_4 = arith.constant 0 : index
    %3 = vector.load %arg8[%c1, %c0_4] : memref<20x144xf32, #tpu.memory_space<vmem>>, vector<1x120xf32>
    %c2 = arith.constant 2 : index
    %c0_5 = arith.constant 0 : index
    %4 = vector.load %arg8[%c2, %c0_5] : memref<20x144xf32, #tpu.memory_space<vmem>>, vector<1x120xf32>
    %5 = vector.extract_strided_slice %1 {offsets = [0, 0], sizes = [160, 24], strides = [1, 1]} : vector<192x24xf32> to vector<160x24xf32>
    %6 = vector.extract_strided_slice %1 {offsets = [8, 0], sizes = [160, 24], strides = [1, 1]} : vector<192x24xf32> to vector<160x24xf32>
    %7 = vector.extract_strided_slice %1 {offsets = [16, 0], sizes = [160, 24], strides = [1, 1]} : vector<192x24xf32> to vector<160x24xf32>
    %8 = vector.extract_strided_slice %1 {offsets = [24, 0], sizes = [160, 24], strides = [1, 1]} : vector<192x24xf32> to vector<160x24xf32>
    %9 = vector.extract_strided_slice %1 {offsets = [32, 0], sizes = [160, 24], strides = [1, 1]} : vector<192x24xf32> to vector<160x24xf32>
    %10 = tpu.concatenate %5, %6, %7, %8, %9 in 1 : vector<160x24xf32>, vector<160x24xf32>, vector<160x24xf32>, vector<160x24xf32>, vector<160x24xf32> -> vector<160x120xf32>
    %11 = arith.truncf %10 : vector<160x120xf32> to vector<160x120xbf16>
    %c0_6 = arith.constant 0 : index
    %c0_7 = arith.constant 0 : index
    %12 = vector.load %arg2[%c0_6, %c0_7] : memref<120x120xbf16, #tpu.memory_space<vmem>>, vector<120x120xbf16>
    %cst = arith.constant dense<0.000000e+00> : vector<160x120xf32>
    %13 = tpu.matmul %11, %12, %cst {dimension_numbers = #tpu.dot_dimension_numbers<[1], [0], [0], [1], [0, 0, 1, 1], [], []>} : vector<160x120xbf16>, vector<120x120xbf16>, vector<160x120xf32> -> vector<160x120xf32>
    %14 = vector.broadcast %2 : vector<1x120xf32> to vector<160x120xf32>
    %15 = arith.addf %13, %14 : vector<160x120xf32>
    %cst_8 = arith.constant 0.000000e+00 : f32
    %16 = vector.broadcast %cst_8 : f32 to vector<160x120xf32>
    %17 = arith.maximumf %15, %16 : vector<160x120xf32>
    %18 = vector.broadcast %3 : vector<1x120xf32> to vector<160x120xf32>
    %19 = arith.mulf %17, %18 : vector<160x120xf32>
    %20 = vector.broadcast %4 : vector<1x120xf32> to vector<160x120xf32>
    %21 = arith.addf %19, %20 : vector<160x120xf32>
    %22 = vector.extract_strided_slice %21 {offsets = [0, 0], sizes = [8, 120], strides = [1, 1]} : vector<160x120xf32> to vector<8x120xf32>
    %23 = vector.extract_strided_slice %21 {offsets = [8, 0], sizes = [8, 120], strides = [1, 1]} : vector<160x120xf32> to vector<8x120xf32>
    %24 = arith.maximumf %22, %23 : vector<8x120xf32>
    %25 = vector.extract_strided_slice %21 {offsets = [16, 0], sizes = [8, 120], strides = [1, 1]} : vector<160x120xf32> to vector<8x120xf32>
    %26 = vector.extract_strided_slice %21 {offsets = [24, 0], sizes = [8, 120], strides = [1, 1]} : vector<160x120xf32> to vector<8x120xf32>
    %27 = arith.maximumf %25, %26 : vector<8x120xf32>
    %28 = vector.extract_strided_slice %21 {offsets = [32, 0], sizes = [8, 120], strides = [1, 1]} : vector<160x120xf32> to vector<8x120xf32>
    %29 = vector.extract_strided_slice %21 {offsets = [40, 0], sizes = [8, 120], strides = [1, 1]} : vector<160x120xf32> to vector<8x120xf32>
    %30 = arith.maximumf %28, %29 : vector<8x120xf32>
    %31 = vector.extract_strided_slice %21 {offsets = [48, 0], sizes = [8, 120], strides = [1, 1]} : vector<160x120xf32> to vector<8x120xf32>
    %32 = vector.extract_strided_slice %21 {offsets = [56, 0], sizes = [8, 120], strides = [1, 1]} : vector<160x120xf32> to vector<8x120xf32>
    %33 = arith.maximumf %31, %32 : vector<8x120xf32>
    %34 = vector.extract_strided_slice %21 {offsets = [64, 0], sizes = [8, 120], strides = [1, 1]} : vector<160x120xf32> to vector<8x120xf32>
    %35 = vector.extract_strided_slice %21 {offsets = [72, 0], sizes = [8, 120], strides = [1, 1]} : vector<160x120xf32> to vector<8x120xf32>
    %36 = arith.maximumf %34, %35 : vector<8x120xf32>
    %37 = vector.extract_strided_slice %21 {offsets = [80, 0], sizes = [8, 120], strides = [1, 1]} : vector<160x120xf32> to vector<8x120xf32>
    %38 = vector.extract_strided_slice %21 {offsets = [88, 0], sizes = [8, 120], strides = [1, 1]} : vector<160x120xf32> to vector<8x120xf32>
    %39 = arith.maximumf %37, %38 : vector<8x120xf32>
    %40 = vector.extract_strided_slice %21 {offsets = [96, 0], sizes = [8, 120], strides = [1, 1]} : vector<160x120xf32> to vector<8x120xf32>
    %41 = vector.extract_strided_slice %21 {offsets = [104, 0], sizes = [8, 120], strides = [1, 1]} : vector<160x120xf32> to vector<8x120xf32>
    %42 = arith.maximumf %40, %41 : vector<8x120xf32>
    %43 = vector.extract_strided_slice %21 {offsets = [112, 0], sizes = [8, 120], strides = [1, 1]} : vector<160x120xf32> to vector<8x120xf32>
    %44 = vector.extract_strided_slice %21 {offsets = [120, 0], sizes = [8, 120], strides = [1, 1]} : vector<160x120xf32> to vector<8x120xf32>
    %45 = arith.maximumf %43, %44 : vector<8x120xf32>
    %46 = vector.extract_strided_slice %21 {offsets = [128, 0], sizes = [8, 120], strides = [1, 1]} : vector<160x120xf32> to vector<8x120xf32>
    %47 = vector.extract_strided_slice %21 {offsets = [136, 0], sizes = [8, 120], strides = [1, 1]} : vector<160x120xf32> to vector<8x120xf32>
    %48 = arith.maximumf %46, %47 : vector<8x120xf32>
    %49 = vector.extract_strided_slice %21 {offsets = [144, 0], sizes = [8, 120], strides = [1, 1]} : vector<160x120xf32> to vector<8x120xf32>
    %50 = vector.extract_strided_slice %21 {offsets = [152, 0], sizes = [8, 120], strides = [1, 1]} : vector<160x120xf32> to vector<8x120xf32>
    %51 = arith.maximumf %49, %50 : vector<8x120xf32>
    %52 = tpu.concatenate %24, %27, %30, %33, %36, %39, %42, %45, %48, %51 in 0 : vector<8x120xf32>, vector<8x120xf32>, vector<8x120xf32>, vector<8x120xf32>, vector<8x120xf32>, vector<8x120xf32>, vector<8x120xf32>, vector<8x120xf32>, vector<8x120xf32>, vector<8x120xf32> -> vector<80x120xf32>
    %53 = vector.extract_strided_slice %52 {offsets = [0, 0], sizes = [80, 114], strides = [1, 1]} : vector<80x120xf32> to vector<80x114xf32>
    %54 = vector.extract_strided_slice %52 {offsets = [0, 6], sizes = [80, 114], strides = [1, 1]} : vector<80x120xf32> to vector<80x114xf32>
    %55 = arith.maximumf %53, %54 : vector<80x114xf32>
    %c3 = arith.constant 3 : index
    %c0_9 = arith.constant 0 : index
    %56 = vector.load %arg8[%c3, %c0_9] : memref<20x144xf32, #tpu.memory_space<vmem>>, vector<1x128xf32>
    %c4 = arith.constant 4 : index
    %c0_10 = arith.constant 0 : index
    %57 = vector.load %arg8[%c4, %c0_10] : memref<20x144xf32, #tpu.memory_space<vmem>>, vector<1x128xf32>
    %c5 = arith.constant 5 : index
    %c0_11 = arith.constant 0 : index
    %58 = vector.load %arg8[%c5, %c0_11] : memref<20x144xf32, #tpu.memory_space<vmem>>, vector<1x128xf32>
    %59 = vector.extract_strided_slice %55 {offsets = [0, 0], sizes = [64, 114], strides = [1, 1]} : vector<80x114xf32> to vector<64x114xf32>
    %60 = vector.extract_strided_slice %55 {offsets = [8, 0], sizes = [64, 114], strides = [1, 1]} : vector<80x114xf32> to vector<64x114xf32>
    %61 = vector.extract_strided_slice %55 {offsets = [16, 0], sizes = [64, 114], strides = [1, 1]} : vector<80x114xf32> to vector<64x114xf32>
    %62 = tpu.concatenate %59, %60, %61 in 1 : vector<64x114xf32>, vector<64x114xf32>, vector<64x114xf32> -> vector<64x342xf32>
    %63 = arith.truncf %62 : vector<64x342xf32> to vector<64x342xbf16>
    %c0_12 = arith.constant 0 : index
    %c0_13 = arith.constant 0 : index
    %64 = vector.load %arg3[%c0_12, %c0_13] : memref<342x128xbf16, #tpu.memory_space<vmem>>, vector<342x128xbf16>
    %cst_14 = arith.constant dense<0.000000e+00> : vector<64x128xf32>
    %65 = tpu.matmul %63, %64, %cst_14 {dimension_numbers = #tpu.dot_dimension_numbers<[1], [0], [0], [1], [0, 0, 1, 1], [], []>} : vector<64x342xbf16>, vector<342x128xbf16>, vector<64x128xf32> -> vector<64x128xf32>
    %66 = vector.broadcast %56 : vector<1x128xf32> to vector<64x128xf32>
    %67 = arith.addf %65, %66 : vector<64x128xf32>
    %cst_15 = arith.constant 0.000000e+00 : f32
    %68 = vector.broadcast %cst_15 : f32 to vector<64x128xf32>
    %69 = arith.maximumf %67, %68 : vector<64x128xf32>
    %70 = vector.broadcast %57 : vector<1x128xf32> to vector<64x128xf32>
    %71 = arith.mulf %69, %70 : vector<64x128xf32>
    %72 = vector.broadcast %58 : vector<1x128xf32> to vector<64x128xf32>
    %73 = arith.addf %71, %72 : vector<64x128xf32>
    %74 = vector.extract_strided_slice %73 {offsets = [0, 0], sizes = [8, 128], strides = [1, 1]} : vector<64x128xf32> to vector<8x128xf32>
    %75 = vector.extract_strided_slice %73 {offsets = [8, 0], sizes = [8, 128], strides = [1, 1]} : vector<64x128xf32> to vector<8x128xf32>
    %76 = arith.maximumf %74, %75 : vector<8x128xf32>
    %77 = vector.extract_strided_slice %73 {offsets = [16, 0], sizes = [8, 128], strides = [1, 1]} : vector<64x128xf32> to vector<8x128xf32>
    %78 = vector.extract_strided_slice %73 {offsets = [24, 0], sizes = [8, 128], strides = [1, 1]} : vector<64x128xf32> to vector<8x128xf32>
    %79 = arith.maximumf %77, %78 : vector<8x128xf32>
    %80 = vector.extract_strided_slice %73 {offsets = [32, 0], sizes = [8, 128], strides = [1, 1]} : vector<64x128xf32> to vector<8x128xf32>
    %81 = vector.extract_strided_slice %73 {offsets = [40, 0], sizes = [8, 128], strides = [1, 1]} : vector<64x128xf32> to vector<8x128xf32>
    %82 = arith.maximumf %80, %81 : vector<8x128xf32>
    %83 = vector.extract_strided_slice %73 {offsets = [48, 0], sizes = [8, 128], strides = [1, 1]} : vector<64x128xf32> to vector<8x128xf32>
    %84 = vector.extract_strided_slice %73 {offsets = [56, 0], sizes = [8, 128], strides = [1, 1]} : vector<64x128xf32> to vector<8x128xf32>
    %85 = arith.maximumf %83, %84 : vector<8x128xf32>
    %86 = tpu.concatenate %76, %79, %82, %85 in 0 : vector<8x128xf32>, vector<8x128xf32>, vector<8x128xf32>, vector<8x128xf32> -> vector<32x128xf32>
    %87 = vector.extract_strided_slice %86 {offsets = [0, 0], sizes = [32, 112], strides = [1, 1]} : vector<32x128xf32> to vector<32x112xf32>
    %88 = vector.extract_strided_slice %86 {offsets = [0, 16], sizes = [32, 112], strides = [1, 1]} : vector<32x128xf32> to vector<32x112xf32>
    %89 = arith.maximumf %87, %88 : vector<32x112xf32>
    %c6 = arith.constant 6 : index
    %c0_16 = arith.constant 0 : index
    %90 = vector.load %arg8[%c6, %c0_16] : memref<20x144xf32, #tpu.memory_space<vmem>>, vector<1x132xf32>
    %c7 = arith.constant 7 : index
    %c0_17 = arith.constant 0 : index
    %91 = vector.load %arg8[%c7, %c0_17] : memref<20x144xf32, #tpu.memory_space<vmem>>, vector<1x132xf32>
    %c8 = arith.constant 8 : index
    %c0_18 = arith.constant 0 : index
    %92 = vector.load %arg8[%c8, %c0_18] : memref<20x144xf32, #tpu.memory_space<vmem>>, vector<1x132xf32>
    %93 = vector.extract_strided_slice %1 {offsets = [0, 0], sizes = [176, 24], strides = [1, 1]} : vector<192x24xf32> to vector<176x24xf32>
    %94 = vector.extract_strided_slice %1 {offsets = [8, 0], sizes = [176, 24], strides = [1, 1]} : vector<192x24xf32> to vector<176x24xf32>
    %95 = vector.extract_strided_slice %1 {offsets = [16, 0], sizes = [176, 24], strides = [1, 1]} : vector<192x24xf32> to vector<176x24xf32>
    %96 = tpu.concatenate %93, %94, %95 in 1 : vector<176x24xf32>, vector<176x24xf32>, vector<176x24xf32> -> vector<176x72xf32>
    %97 = arith.truncf %96 : vector<176x72xf32> to vector<176x72xbf16>
    %c0_19 = arith.constant 0 : index
    %c0_20 = arith.constant 0 : index
    %98 = vector.load %arg4[%c0_19, %c0_20] : memref<72x132xbf16, #tpu.memory_space<vmem>>, vector<72x132xbf16>
    %cst_21 = arith.constant dense<0.000000e+00> : vector<176x132xf32>
    %99 = tpu.matmul %97, %98, %cst_21 {dimension_numbers = #tpu.dot_dimension_numbers<[1], [0], [0], [1], [0, 0, 1, 1], [], []>} : vector<176x72xbf16>, vector<72x132xbf16>, vector<176x132xf32> -> vector<176x132xf32>
    %100 = vector.broadcast %90 : vector<1x132xf32> to vector<176x132xf32>
    %101 = arith.addf %99, %100 : vector<176x132xf32>
    %cst_22 = arith.constant 0.000000e+00 : f32
    %102 = vector.broadcast %cst_22 : f32 to vector<176x132xf32>
    %103 = arith.maximumf %101, %102 : vector<176x132xf32>
    %104 = vector.broadcast %91 : vector<1x132xf32> to vector<176x132xf32>
    %105 = arith.mulf %103, %104 : vector<176x132xf32>
    %106 = vector.broadcast %92 : vector<1x132xf32> to vector<176x132xf32>
    %107 = arith.addf %105, %106 : vector<176x132xf32>
    %108 = vector.extract_strided_slice %107 {offsets = [0, 0], sizes = [8, 132], strides = [1, 1]} : vector<176x132xf32> to vector<8x132xf32>
    %109 = vector.extract_strided_slice %107 {offsets = [8, 0], sizes = [8, 132], strides = [1, 1]} : vector<176x132xf32> to vector<8x132xf32>
    %110 = arith.maximumf %108, %109 : vector<8x132xf32>
    %111 = vector.extract_strided_slice %107 {offsets = [16, 0], sizes = [8, 132], strides = [1, 1]} : vector<176x132xf32> to vector<8x132xf32>
    %112 = vector.extract_strided_slice %107 {offsets = [24, 0], sizes = [8, 132], strides = [1, 1]} : vector<176x132xf32> to vector<8x132xf32>
    %113 = arith.maximumf %111, %112 : vector<8x132xf32>
    %114 = vector.extract_strided_slice %107 {offsets = [32, 0], sizes = [8, 132], strides = [1, 1]} : vector<176x132xf32> to vector<8x132xf32>
    %115 = vector.extract_strided_slice %107 {offsets = [40, 0], sizes = [8, 132], strides = [1, 1]} : vector<176x132xf32> to vector<8x132xf32>
    %116 = arith.maximumf %114, %115 : vector<8x132xf32>
    %117 = vector.extract_strided_slice %107 {offsets = [48, 0], sizes = [8, 132], strides = [1, 1]} : vector<176x132xf32> to vector<8x132xf32>
    %118 = vector.extract_strided_slice %107 {offsets = [56, 0], sizes = [8, 132], strides = [1, 1]} : vector<176x132xf32> to vector<8x132xf32>
    %119 = arith.maximumf %117, %118 : vector<8x132xf32>
    %120 = vector.extract_strided_slice %107 {offsets = [64, 0], sizes = [8, 132], strides = [1, 1]} : vector<176x132xf32> to vector<8x132xf32>
    %121 = vector.extract_strided_slice %107 {offsets = [72, 0], sizes = [8, 132], strides = [1, 1]} : vector<176x132xf32> to vector<8x132xf32>
    %122 = arith.maximumf %120, %121 : vector<8x132xf32>
    %123 = vector.extract_strided_slice %107 {offsets = [80, 0], sizes = [8, 132], strides = [1, 1]} : vector<176x132xf32> to vector<8x132xf32>
    %124 = vector.extract_strided_slice %107 {offsets = [88, 0], sizes = [8, 132], strides = [1, 1]} : vector<176x132xf32> to vector<8x132xf32>
    %125 = arith.maximumf %123, %124 : vector<8x132xf32>
    %126 = vector.extract_strided_slice %107 {offsets = [96, 0], sizes = [8, 132], strides = [1, 1]} : vector<176x132xf32> to vector<8x132xf32>
    %127 = vector.extract_strided_slice %107 {offsets = [104, 0], sizes = [8, 132], strides = [1, 1]} : vector<176x132xf32> to vector<8x132xf32>
    %128 = arith.maximumf %126, %127 : vector<8x132xf32>
    %129 = vector.extract_strided_slice %107 {offsets = [112, 0], sizes = [8, 132], strides = [1, 1]} : vector<176x132xf32> to vector<8x132xf32>
    %130 = vector.extract_strided_slice %107 {offsets = [120, 0], sizes = [8, 132], strides = [1, 1]} : vector<176x132xf32> to vector<8x132xf32>
    %131 = arith.maximumf %129, %130 : vector<8x132xf32>
    %132 = vector.extract_strided_slice %107 {offsets = [128, 0], sizes = [8, 132], strides = [1, 1]} : vector<176x132xf32> to vector<8x132xf32>
    %133 = vector.extract_strided_slice %107 {offsets = [136, 0], sizes = [8, 132], strides = [1, 1]} : vector<176x132xf32> to vector<8x132xf32>
    %134 = arith.maximumf %132, %133 : vector<8x132xf32>
    %135 = vector.extract_strided_slice %107 {offsets = [144, 0], sizes = [8, 132], strides = [1, 1]} : vector<176x132xf32> to vector<8x132xf32>
    %136 = vector.extract_strided_slice %107 {offsets = [152, 0], sizes = [8, 132], strides = [1, 1]} : vector<176x132xf32> to vector<8x132xf32>
    %137 = arith.maximumf %135, %136 : vector<8x132xf32>
    %138 = vector.extract_strided_slice %107 {offsets = [160, 0], sizes = [8, 132], strides = [1, 1]} : vector<176x132xf32> to vector<8x132xf32>
    %139 = vector.extract_strided_slice %107 {offsets = [168, 0], sizes = [8, 132], strides = [1, 1]} : vector<176x132xf32> to vector<8x132xf32>
    %140 = arith.maximumf %138, %139 : vector<8x132xf32>
    %141 = tpu.concatenate %110, %113, %116, %119, %122, %125, %128, %131, %134, %137, %140 in 0 : vector<8x132xf32>, vector<8x132xf32>, vector<8x132xf32>, vector<8x132xf32>, vector<8x132xf32>, vector<8x132xf32>, vector<8x132xf32>, vector<8x132xf32>, vector<8x132xf32>, vector<8x132xf32>, vector<8x132xf32> -> vector<88x132xf32>
    %142 = vector.extract_strided_slice %141 {offsets = [0, 0], sizes = [88, 126], strides = [1, 1]} : vector<88x132xf32> to vector<88x126xf32>
    %143 = vector.extract_strided_slice %141 {offsets = [0, 6], sizes = [88, 126], strides = [1, 1]} : vector<88x132xf32> to vector<88x126xf32>
    %144 = arith.maximumf %142, %143 : vector<88x126xf32>
    %c9 = arith.constant 9 : index
    %c0_23 = arith.constant 0 : index
    %145 = vector.load %arg8[%c9, %c0_23] : memref<20x144xf32, #tpu.memory_space<vmem>>, vector<1x144xf32>
    %c10 = arith.constant 10 : index
    %c0_24 = arith.constant 0 : index
    %146 = vector.load %arg8[%c10, %c0_24] : memref<20x144xf32, #tpu.memory_space<vmem>>, vector<1x144xf32>
    %c11 = arith.constant 11 : index
    %c0_25 = arith.constant 0 : index
    %147 = vector.load %arg8[%c11, %c0_25] : memref<20x144xf32, #tpu.memory_space<vmem>>, vector<1x144xf32>
    %148 = vector.extract_strided_slice %144 {offsets = [0, 0], sizes = [72, 126], strides = [1, 1]} : vector<88x126xf32> to vector<72x126xf32>
    %149 = vector.extract_strided_slice %144 {offsets = [8, 0], sizes = [72, 126], strides = [1, 1]} : vector<88x126xf32> to vector<72x126xf32>
    %150 = vector.extract_strided_slice %144 {offsets = [16, 0], sizes = [72, 126], strides = [1, 1]} : vector<88x126xf32> to vector<72x126xf32>
    %151 = tpu.concatenate %148, %149, %150 in 1 : vector<72x126xf32>, vector<72x126xf32>, vector<72x126xf32> -> vector<72x378xf32>
    %152 = arith.truncf %151 : vector<72x378xf32> to vector<72x378xbf16>
    %c0_26 = arith.constant 0 : index
    %c0_27 = arith.constant 0 : index
    %153 = vector.load %arg5[%c0_26, %c0_27] : memref<378x144xbf16, #tpu.memory_space<vmem>>, vector<378x144xbf16>
    %cst_28 = arith.constant dense<0.000000e+00> : vector<72x144xf32>
    %154 = tpu.matmul %152, %153, %cst_28 {dimension_numbers = #tpu.dot_dimension_numbers<[1], [0], [0], [1], [0, 0, 1, 1], [], []>} : vector<72x378xbf16>, vector<378x144xbf16>, vector<72x144xf32> -> vector<72x144xf32>
    %155 = vector.broadcast %145 : vector<1x144xf32> to vector<72x144xf32>
    %156 = arith.addf %154, %155 : vector<72x144xf32>
    %cst_29 = arith.constant 0.000000e+00 : f32
    %157 = vector.broadcast %cst_29 : f32 to vector<72x144xf32>
    %158 = arith.maximumf %156, %157 : vector<72x144xf32>
    %159 = vector.broadcast %146 : vector<1x144xf32> to vector<72x144xf32>
    %160 = arith.mulf %158, %159 : vector<72x144xf32>
    %161 = vector.broadcast %147 : vector<1x144xf32> to vector<72x144xf32>
    %162 = arith.addf %160, %161 : vector<72x144xf32>
    %163 = vector.extract_strided_slice %162 {offsets = [0, 0], sizes = [8, 144], strides = [1, 1]} : vector<72x144xf32> to vector<8x144xf32>
    %164 = vector.extract_strided_slice %162 {offsets = [8, 0], sizes = [8, 144], strides = [1, 1]} : vector<72x144xf32> to vector<8x144xf32>
    %165 = arith.maximumf %163, %164 : vector<8x144xf32>
    %166 = vector.extract_strided_slice %162 {offsets = [16, 0], sizes = [8, 144], strides = [1, 1]} : vector<72x144xf32> to vector<8x144xf32>
    %167 = vector.extract_strided_slice %162 {offsets = [24, 0], sizes = [8, 144], strides = [1, 1]} : vector<72x144xf32> to vector<8x144xf32>
    %168 = arith.maximumf %166, %167 : vector<8x144xf32>
    %169 = vector.extract_strided_slice %162 {offsets = [32, 0], sizes = [8, 144], strides = [1, 1]} : vector<72x144xf32> to vector<8x144xf32>
    %170 = vector.extract_strided_slice %162 {offsets = [40, 0], sizes = [8, 144], strides = [1, 1]} : vector<72x144xf32> to vector<8x144xf32>
    %171 = arith.maximumf %169, %170 : vector<8x144xf32>
    %172 = vector.extract_strided_slice %162 {offsets = [48, 0], sizes = [8, 144], strides = [1, 1]} : vector<72x144xf32> to vector<8x144xf32>
    %173 = vector.extract_strided_slice %162 {offsets = [56, 0], sizes = [8, 144], strides = [1, 1]} : vector<72x144xf32> to vector<8x144xf32>
    %174 = arith.maximumf %172, %173 : vector<8x144xf32>
    %175 = tpu.concatenate %165, %168, %171, %174 in 0 : vector<8x144xf32>, vector<8x144xf32>, vector<8x144xf32>, vector<8x144xf32> -> vector<32x144xf32>
    %176 = vector.extract_strided_slice %175 {offsets = [0, 0], sizes = [32, 128], strides = [1, 1]} : vector<32x144xf32> to vector<32x128xf32>
    %177 = vector.extract_strided_slice %175 {offsets = [0, 16], sizes = [32, 128], strides = [1, 1]} : vector<32x144xf32> to vector<32x128xf32>
    %178 = arith.maximumf %176, %177 : vector<32x128xf32>
    %179 = vector.extract_strided_slice %89 {offsets = [0, 0], sizes = [8, 112], strides = [1, 1]} : vector<32x112xf32> to vector<8x112xf32>
    %180 = vector.extract_strided_slice %89 {offsets = [8, 0], sizes = [8, 112], strides = [1, 1]} : vector<32x112xf32> to vector<8x112xf32>
    %181 = vector.extract_strided_slice %89 {offsets = [16, 0], sizes = [8, 112], strides = [1, 1]} : vector<32x112xf32> to vector<8x112xf32>
    %182 = vector.extract_strided_slice %89 {offsets = [24, 0], sizes = [8, 112], strides = [1, 1]} : vector<32x112xf32> to vector<8x112xf32>
    %183 = vector.extract_strided_slice %178 {offsets = [0, 0], sizes = [8, 128], strides = [1, 1]} : vector<32x128xf32> to vector<8x128xf32>
    %184 = vector.extract_strided_slice %178 {offsets = [8, 0], sizes = [8, 128], strides = [1, 1]} : vector<32x128xf32> to vector<8x128xf32>
    %185 = vector.extract_strided_slice %178 {offsets = [16, 0], sizes = [8, 128], strides = [1, 1]} : vector<32x128xf32> to vector<8x128xf32>
    %186 = vector.extract_strided_slice %178 {offsets = [24, 0], sizes = [8, 128], strides = [1, 1]} : vector<32x128xf32> to vector<8x128xf32>
    %187 = tpu.concatenate %179, %180, %181, %182, %183, %184, %185, %186 in 1 : vector<8x112xf32>, vector<8x112xf32>, vector<8x112xf32>, vector<8x112xf32>, vector<8x128xf32>, vector<8x128xf32>, vector<8x128xf32>, vector<8x128xf32> -> vector<8x960xf32>
    %c12 = arith.constant 12 : index
    %c0_30 = arith.constant 0 : index
    %188 = vector.load %arg8[%c12, %c0_30] : memref<20x144xf32, #tpu.memory_space<vmem>>, vector<1x128xf32>
    %c13 = arith.constant 13 : index
    %c0_31 = arith.constant 0 : index
    %189 = vector.load %arg8[%c13, %c0_31] : memref<20x144xf32, #tpu.memory_space<vmem>>, vector<1x128xf32>
    %c14 = arith.constant 14 : index
    %c0_32 = arith.constant 0 : index
    %190 = vector.load %arg8[%c14, %c0_32] : memref<20x144xf32, #tpu.memory_space<vmem>>, vector<1x128xf32>
    %191 = arith.truncf %187 : vector<8x960xf32> to vector<8x960xbf16>
    %c0_33 = arith.constant 0 : index
    %c0_34 = arith.constant 0 : index
    %192 = vector.load %arg6[%c0_33, %c0_34] : memref<960x128xbf16, #tpu.memory_space<vmem>>, vector<960x128xbf16>
    %cst_35 = arith.constant dense<0.000000e+00> : vector<8x128xf32>
    %193 = tpu.matmul %191, %192, %cst_35 {dimension_numbers = #tpu.dot_dimension_numbers<[1], [0], [0], [1], [0, 0, 1, 1], [], []>} : vector<8x960xbf16>, vector<960x128xbf16>, vector<8x128xf32> -> vector<8x128xf32>
    %194 = vector.broadcast %188 : vector<1x128xf32> to vector<8x128xf32>
    %195 = arith.addf %193, %194 : vector<8x128xf32>
    %196 = arith.negf %195 : vector<8x128xf32>
    %197 = math.exp %196 : vector<8x128xf32>
    %cst_36 = arith.constant 1.000000e+00 : f32
    %198 = vector.broadcast %cst_36 : f32 to vector<8x128xf32>
    %199 = arith.addf %198, %197 : vector<8x128xf32>
    %200 = arith.divf %198, %199 : vector<8x128xf32>
    %201 = vector.broadcast %189 : vector<1x128xf32> to vector<8x128xf32>
    %202 = arith.mulf %200, %201 : vector<8x128xf32>
    %203 = vector.broadcast %190 : vector<1x128xf32> to vector<8x128xf32>
    %204 = arith.addf %202, %203 : vector<8x128xf32>
    %c15 = arith.constant 15 : index
    %c0_37 = arith.constant 0 : index
    %205 = vector.load %arg8[%c15, %c0_37] : memref<20x144xf32, #tpu.memory_space<vmem>>, vector<1x128xf32>
    %c16 = arith.constant 16 : index
    %c0_38 = arith.constant 0 : index
    %206 = vector.load %arg8[%c16, %c0_38] : memref<20x144xf32, #tpu.memory_space<vmem>>, vector<1x128xf32>
    %c17 = arith.constant 17 : index
    %c0_39 = arith.constant 0 : index
    %207 = vector.load %arg8[%c17, %c0_39] : memref<20x144xf32, #tpu.memory_space<vmem>>, vector<1x128xf32>
    %208 = arith.truncf %204 : vector<8x128xf32> to vector<8x128xbf16>
    %c0_40 = arith.constant 0 : index
    %c0_41 = arith.constant 0 : index
    %209 = vector.load %arg7[%c0_40, %c0_41] : memref<128x128xbf16, #tpu.memory_space<vmem>>, vector<128x128xbf16>
    %cst_42 = arith.constant dense<0.000000e+00> : vector<8x128xf32>
    %210 = tpu.matmul %208, %209, %cst_42 {dimension_numbers = #tpu.dot_dimension_numbers<[1], [0], [0], [1], [0, 0, 1, 1], [], []>} : vector<8x128xbf16>, vector<128x128xbf16>, vector<8x128xf32> -> vector<8x128xf32>
    %211 = vector.broadcast %205 : vector<1x128xf32> to vector<8x128xf32>
    %212 = arith.addf %210, %211 : vector<8x128xf32>
    %213 = arith.negf %212 : vector<8x128xf32>
    %214 = math.exp %213 : vector<8x128xf32>
    %cst_43 = arith.constant 1.000000e+00 : f32
    %215 = vector.broadcast %cst_43 : f32 to vector<8x128xf32>
    %216 = arith.addf %215, %214 : vector<8x128xf32>
    %217 = arith.divf %215, %216 : vector<8x128xf32>
    %218 = vector.broadcast %206 : vector<1x128xf32> to vector<8x128xf32>
    %219 = arith.mulf %217, %218 : vector<8x128xf32>
    %220 = vector.broadcast %207 : vector<1x128xf32> to vector<8x128xf32>
    %221 = arith.addf %219, %220 : vector<8x128xf32>
    %c18 = arith.constant 18 : index
    %c0_44 = arith.constant 0 : index
    %222 = vector.load %arg8[%c18, %c0_44] : memref<20x144xf32, #tpu.memory_space<vmem>>, vector<2x128xf32>
    %223 = vector.extract_strided_slice %222 {offsets = [0, 0], sizes = [1, 128], strides = [1, 1]} : vector<2x128xf32> to vector<1x128xf32>
    %224 = vector.broadcast %223 : vector<1x128xf32> to vector<8x128xf32>
    %225 = arith.mulf %221, %224 : vector<8x128xf32>
    %cst_45 = arith.constant dense<0.000000e+00> : vector<8xf32>
    %226 = vector.multi_reduction <add>, %225, %cst_45 [1] : vector<8x128xf32> to vector<8xf32>
    %227 = vector.shape_cast %226 : vector<8xf32> to vector<8x1xf32>
    %228 = vector.extract_strided_slice %222 {offsets = [1, 0], sizes = [1, 1], strides = [1, 1]} : vector<2x128xf32> to vector<1x1xf32>
    %229 = vector.broadcast %228 : vector<1x1xf32> to vector<8x1xf32>
    %230 = arith.addf %227, %229 : vector<8x1xf32>
    %231 = arith.negf %230 : vector<8x1xf32>
    %232 = math.exp %231 : vector<8x1xf32>
    %cst_46 = arith.constant 1.000000e+00 : f32
    %233 = vector.broadcast %cst_46 : f32 to vector<8x1xf32>
    %234 = arith.addf %233, %232 : vector<8x1xf32>
    %235 = arith.divf %233, %234 : vector<8x1xf32>
    %c0_47 = arith.constant 0 : index
    %c0_48 = arith.constant 0 : index
    %236 = vector.load %arg9[%c0_47, %c0_48] : memref<8x1xf32, #tpu.memory_space<vmem>>, vector<8x1xf32>
    tpu.vector_store %arg9[%c0_47, %c0_48], %235 {strides = array<i32>} : memref<8x1xf32, #tpu.memory_space<vmem>>, vector<8x1xf32>,
    return
  }
  func.func @transform_0(%arg0: i32) -> (i32, i32, i32) {
    %c0_i32 = arith.constant 0 : i32
    %c0_i32_0 = arith.constant 0 : i32
    %c0_i32_1 = arith.constant 0 : i32
    return %arg0, %c0_i32, %c0_i32_0 : i32, i32, i32
  }
  func.func @transform_1(%arg0: i32) -> (i32, i32) {
    %c0_i32 = arith.constant 0 : i32
    %c0_i32_0 = arith.constant 0 : i32
    %c0_i32_1 = arith.constant 0 : i32
    return %c0_i32, %c0_i32_0 : i32, i32
  }
  func.func @transform_2(%arg0: i32) -> (i32, i32) {
    %c0_i32 = arith.constant 0 : i32
    %c0_i32_0 = arith.constant 0 : i32
    %c0_i32_1 = arith.constant 0 : i32
    return %c0_i32, %c0_i32_0 : i32, i32
  }
  func.func @transform_3(%arg0: i32) -> (i32, i32) {
    %c0_i32 = arith.constant 0 : i32
    %c0_i32_0 = arith.constant 0 : i32
    %c0_i32_1 = arith.constant 0 : i32
    return %c0_i32, %c0_i32_0 : i32, i32
  }
  func.func @transform_4(%arg0: i32) -> (i32, i32) {
    %c0_i32 = arith.constant 0 : i32
    %c0_i32_0 = arith.constant 0 : i32
    %c0_i32_1 = arith.constant 0 : i32
    return %c0_i32, %c0_i32_0 : i32, i32
  }
  func.func @transform_5(%arg0: i32) -> (i32, i32) {
    %c0_i32 = arith.constant 0 : i32
    %c0_i32_0 = arith.constant 0 : i32
    %c0_i32_1 = arith.constant 0 : i32
    return %c0_i32, %c0_i32_0 : i32, i32
  }
  func.func @transform_6(%arg0: i32) -> (i32, i32) {
    %c0_i32 = arith.constant 0 : i32
    %c0_i32_0 = arith.constant 0 : i32
    %c0_i32_1 = arith.constant 0 : i32
    return %c0_i32, %c0_i32_0 : i32, i32
  }
  func.func @transform_7(%arg0: i32) -> (i32, i32) {
    %c0_i32 = arith.constant 0 : i32
    %c0_i32_0 = arith.constant 0 : i32
    %c0_i32_1 = arith.constant 0 : i32
    return %c0_i32, %c0_i32_0 : i32, i32
  }
  func.func @transform_8(%arg0: i32) -> (i32, i32) {
    %c0_i32 = arith.constant 0 : i32
    %c0_i32_0 = arith.constant 0 : i32
    return %arg0, %c0_i32 : i32, i32
  }
}

</mosaic_0001>

<llo_original>
// kernel: fwd.1
$region0: #{fwd.1}
  #allocation0 [shape = 'u32[]', space=smem, size = 0x4, offset = 0x4, fixed_abs, tag = 'smem constant byte address 0x4 - core index']
  #allocation1 [shape = 'u32[72,128]{1,0:T(1,128)}', space=vmem, size = 0x9000, scoped, tag = 'internal scratch']
  %s0 = inlined_call_operand.vmem [shape: f32[1,192,24], index: 0, kind: input, shape index: {}]
  %s1 = inlined_call_operand.hbm [shape: bf16[120,120], index: 1, kind: input, shape index: {}]
  %s2 = inlined_call_operand.hbm [shape: bf16[342,128], index: 2, kind: input, shape index: {}]
  %s3 = inlined_call_operand.vmem [shape: bf16[72,132], index: 3, kind: input, shape index: {}]
  %s4 = inlined_call_operand.hbm [shape: bf16[378,144], index: 4, kind: input, shape index: {}]
  %s5 = inlined_call_operand.vmem [shape: bf16[960,128], index: 5, kind: input, shape index: {}]
  %s6 = inlined_call_operand.vmem [shape: bf16[128,128], index: 6, kind: input, shape index: {}]
  %s7 = inlined_call_operand.hbm [shape: f32[20,144], index: 7, kind: input, shape index: {}]
  %s8 = inlined_call_operand.vmem [shape: f32[8,1], index: 8, kind: output, shape index: {}]
  %s9 = sld [smem:[#allocation0]]
  $region58: #{fwd.1} parent=0
    _
  %s11 = ssub.s32 1, %s9
  %s12 = scalar_select 0, %s11, %s9
  $region1: #{fwd.1} parent=0
    #allocation2 [shape = 'u8[30720]{0}', space=vmem, size = 0x7800, scoped, tag = 'input window, operand 1, single buffered']
    #allocation3 [shape = 's32[1]{0}', space=sflag, size = 0x4, scoped, tag = 'scoped memory for fwd.1']
    #allocation4 [shape = 'u8[88064]{0}', space=vmem, size = 0x15800, scoped, tag = 'input window, operand 2, single buffered']
    #allocation5 [shape = 's32[1]{0}', space=sflag, size = 0x4, scoped, tag = 'scoped memory for fwd.1']
    #allocation6 [shape = 'u8[196608]{0}', space=vmem, size = 0x30000, scoped, tag = 'input window, operand 4, single buffered']
    #allocation7 [shape = 'u8[24576]{0}', space=vmem, size = 0x6000, scoped, tag = 'input window, operand 7, single buffered']
    #allocation8 [shape = 's32[1]{0}', space=sflag, size = 0x4, scoped, tag = 'scoped memory for fwd.1']
    %13 = vsyncpa [#allocation3], 0
    %14 = vsyncpa [#allocation5], 0
    %15 = vsyncpa [#allocation8], 0
    // Predicated region
    $region2: #{fwd.1} parent=1 // pred_check
      _
    $region3: #{fwd.1} parent=1 // pred_check_branch
      %17 = sbr.rel (0) target = $region5
    $region4: #{fwd.1} parent=1 // pred_region
      _
    $region5: #{fwd.1} parent=1 // pred_fallthru
      _
    // Predicated region
    $region6: #{fwd.1} parent=1 // pred_check
      _
    $region7: #{fwd.1} parent=1 // pred_check_branch
      %19 = sbr.rel (0) target = $region9
    $region8: #{fwd.1} parent=1 // pred_region
      %21 = vsyncadd [#allocation3], 0
      %s22 = sshll.u32 %s1, 4
      %s23 = int_to_ptr.hbm [resolvable:$true] %s22
      %s24 = sshll.u32 [#allocation2], 4
      %s25 = int_to_ptr.vmem [resolvable:$true] %s24
      %30 = dma.hbm_to_vmem [thread:$0]  %s23, 960, %s25, [#allocation3], 64, 64, 4
    $region9: #{fwd.1} parent=1 // pred_fallthru
      _
    // Predicated region
    $region10: #{fwd.1} parent=1 // pred_check
      _
    $region11: #{fwd.1} parent=1 // pred_check_branch
      %32 = sbr.rel (0) target = $region13
    $region12: #{fwd.1} parent=1 // pred_region
      %34 = vsyncadd [#allocation5], 0
      %s35 = sshll.u32 %s2, 4
      %s36 = int_to_ptr.hbm [resolvable:$true] %s35
      %s37 = sshll.u32 [#allocation4], 4
      %s38 = int_to_ptr.vmem [resolvable:$true] %s37
      %43 = dma.hbm_to_vmem [thread:$0]  %s36, 2752, %s38, [#allocation5], 64, 64, 4
    $region13: #{fwd.1} parent=1 // pred_fallthru
      _
    // Predicated region
    $region14: #{fwd.1} parent=1 // pred_check
      _
    $region15: #{fwd.1} parent=1 // pred_check_branch
      %45 = sbr.rel (0) target = $region17
    $region16: #{fwd.1} parent=1 // pred_region
      _
    $region17: #{fwd.1} parent=1 // pred_fallthru
      _
    // Predicated region
    $region18: #{fwd.1} parent=1 // pred_check
      _
    $region19: #{fwd.1} parent=1 // pred_check_branch
      %47 = sbr.rel (0) target = $region21
    $region20: #{fwd.1} parent=1 // pred_region
      %49 = vsyncadd [#allocation5], 0
      %s50 = sshll.u32 %s4, 4
      %s51 = int_to_ptr.hbm [resolvable:$true] %s50
      %s52 = sshll.u32 [#allocation6], 4
      %s53 = int_to_ptr.vmem [resolvable:$true] %s52
      %58 = dma.hbm_to_vmem [thread:$0]  %s51, 6144, %s53, [#allocation5], 128, 128, 8
    $region21: #{fwd.1} parent=1 // pred_fallthru
      _
    // Predicated region
    $region22: #{fwd.1} parent=1 // pred_check
      _
    $region23: #{fwd.1} parent=1 // pred_check_branch
      %60 = sbr.rel (0) target = $region25
    $region24: #{fwd.1} parent=1 // pred_region
      _
    $region25: #{fwd.1} parent=1 // pred_fallthru
      _
    // Predicated region
    $region26: #{fwd.1} parent=1 // pred_check
      _
    $region27: #{fwd.1} parent=1 // pred_check_branch
      %62 = sbr.rel (0) target = $region29
    $region28: #{fwd.1} parent=1 // pred_region
      _
    $region29: #{fwd.1} parent=1 // pred_fallthru
      _
    // Predicated region
    $region30: #{fwd.1} parent=1 // pred_check
      _
    $region31: #{fwd.1} parent=1 // pred_check_branch
      %64 = sbr.rel (0) target = $region33
    $region32: #{fwd.1} parent=1 // pred_region
      %66 = vsyncadd [#allocation8], 0
      %s67 = sshll.u32 %s7, 4
      %s68 = int_to_ptr.hbm [resolvable:$true] %s67
      %s69 = sshll.u32 [#allocation7], 4
      %s70 = int_to_ptr.vmem [resolvable:$true] %s69
      %75 = dma.hbm_to_vmem [thread:$0]  %s68, 768, %s70, [#allocation8], 256, 256, 16
    $region33: #{fwd.1} parent=1 // pred_fallthru
      _
    // Predicated region
    $region34: #{fwd.1} parent=1 // pred_check
      _
    $region35: #{fwd.1} parent=1 // pred_check_branch
      %77 = sbr.rel (0) target = $region37
    $region36: #{fwd.1} parent=1 // pred_region
      %79 = dma.done [#allocation3], 960
    $region37: #{fwd.1} parent=1 // pred_fallthru
      _
    // Predicated region
    $region38: #{fwd.1} parent=1 // pred_check
      _
    $region39: #{fwd.1} parent=1 // pred_check_branch
      %81 = sbr.rel (0) target = $region41
    $region40: #{fwd.1} parent=1 // pred_region
      %83 = dma.done [#allocation5], 2752
    $region41: #{fwd.1} parent=1 // pred_fallthru
      _
    // Predicated region
    $region42: #{fwd.1} parent=1 // pred_check
      _
    $region43: #{fwd.1} parent=1 // pred_check_branch
      %85 = sbr.rel (0) target = $region45
    $region44: #{fwd.1} parent=1 // pred_region
      %87 = dma.done [#allocation5], 6144
    $region45: #{fwd.1} parent=1 // pred_fallthru
      _
    // Predicated region
    $region46: #{fwd.1} parent=1 // pred_check
      _
    $region47: #{fwd.1} parent=1 // pred_check_branch
      %89 = sbr.rel (0) target = $region49
    $region48: #{fwd.1} parent=1 // pred_region
      %91 = dma.done [#allocation8], 768
    $region49: #{fwd.1} parent=1 // pred_fallthru
      _
    %v93 = vld [vmem:[%s0] sm:$0xff]
    %v94 = vld [vmem:[%s0 + $0x8] sm:$0xff]
    %v95 = vld [vmem:[%s0 + $0x10] sm:$0xff]
    %v96 = vld [vmem:[%s0 + $0x18] sm:$0xff]
    %v97 = vld [vmem:[%s0 + $0x20] sm:$0xff]
    %v98 = vld [vmem:[%s0 + $0x28] sm:$0xff]
    %v99 = vld [vmem:[%s0 + $0x30] sm:$0xff]
    %v100 = vld [vmem:[%s0 + $0x38] sm:$0xff]
    %v101 = vld [vmem:[%s0 + $0x40] sm:$0xff]
    %v102 = vld [vmem:[%s0 + $0x48] sm:$0xff]
    %v103 = vld [vmem:[%s0 + $0x50] sm:$0xff]
    %v104 = vld [vmem:[%s0 + $0x58] sm:$0xff]
    %v105 = vld [vmem:[%s0 + $0x60] sm:$0xff]
    %v106 = vld [vmem:[%s0 + $0x68] sm:$0xff]
    %v107 = vld [vmem:[%s0 + $0x70] sm:$0xff]
    %v108 = vld [vmem:[%s0 + $0x78] sm:$0xff]
    %v109 = vld [vmem:[%s0 + $0x80] sm:$0xff]
    %v110 = vld [vmem:[%s0 + $0x88] sm:$0xff]
    %v111 = vld [vmem:[%s0 + $0x90] sm:$0xff]
    %v112 = vld [vmem:[%s0 + $0x98] sm:$0xff]
    %v113 = vld [vmem:[%s0 + $0xa0] sm:$0xff]
    %v114 = vld [vmem:[%s0 + $0xa8] sm:$0xff]
    %v115 = vld [vmem:[%s0 + $0xb0] sm:$0xff]
    %v116 = vld [vmem:[%s0 + $0xb8] sm:$0xff]
    %v117 = vld [vmem:[#allocation7] ss:$0 sm:$0xff]
    %v118 = vld [vmem:[#allocation7 + $0x1] ss:$0 sm:$0xff]
    %v119 = vld [vmem:[#allocation7 + $0x2] ss:$0 sm:$0xff]
    %140 = vrot.lane.b32.xlu0 %v94, 24
    %v141 = vpop.permute.xlu0 %140
    %142 = vrot.lane.b32.xlu0 %v95, 24
    %v143 = vpop.permute.xlu0 %142
    %144 = vrot.lane.b32.xlu0 %v96, 24
    %v145 = vpop.permute.xlu0 %144
    %146 = vrot.lane.b32.xlu0 %v97, 24
    %v147 = vpop.permute.xlu0 %146
    %148 = vrot.lane.b32.xlu0 %v98, 24
    %v149 = vpop.permute.xlu0 %148
    %150 = vrot.lane.b32.xlu0 %v99, 24
    %v151 = vpop.permute.xlu0 %150
    %152 = vrot.lane.b32.xlu0 %v100, 24
    %v153 = vpop.permute.xlu0 %152
    %154 = vrot.lane.b32.xlu0 %v101, 24
    %v155 = vpop.permute.xlu0 %154
    %156 = vrot.lane.b32.xlu0 %v102, 24
    %v157 = vpop.permute.xlu0 %156
    %158 = vrot.lane.b32.xlu0 %v103, 24
    %v159 = vpop.permute.xlu0 %158
    %160 = vrot.lane.b32.xlu0 %v104, 24
    %v161 = vpop.permute.xlu0 %160
    %162 = vrot.lane.b32.xlu0 %v105, 24
    %v163 = vpop.permute.xlu0 %162
    %164 = vrot.lane.b32.xlu0 %v106, 24
    %v165 = vpop.permute.xlu0 %164
    %166 = vrot.lane.b32.xlu0 %v107, 24
    %v167 = vpop.permute.xlu0 %166
    %168 = vrot.lane.b32.xlu0 %v108, 24
    %v169 = vpop.permute.xlu0 %168
    %170 = vrot.lane.b32.xlu0 %v109, 24
    %v171 = vpop.permute.xlu0 %170
    %172 = vrot.lane.b32.xlu0 %v110, 24
    %v173 = vpop.permute.xlu0 %172
    %174 = vrot.lane.b32.xlu0 %v111, 24
    %v175 = vpop.permute.xlu0 %174
    %176 = vrot.lane.b32.xlu0 %v112, 24
    %v177 = vpop.permute.xlu0 %176
    %178 = vrot.lane.b32.xlu0 %v113, 24
    %v179 = vpop.permute.xlu0 %178
    %201 = vrot.lane.b32.xlu0 %v95, 48
    %v202 = vpop.permute.xlu0 %201
    %203 = vrot.lane.b32.xlu0 %v96, 48
    %v204 = vpop.permute.xlu0 %203
    %205 = vrot.lane.b32.xlu0 %v97, 48
    %v206 = vpop.permute.xlu0 %205
    %207 = vrot.lane.b32.xlu0 %v98, 48
    %v208 = vpop.permute.xlu0 %207
    %209 = vrot.lane.b32.xlu0 %v99, 48
    %v210 = vpop.permute.xlu0 %209
    %211 = vrot.lane.b32.xlu0 %v100, 48
    %v212 = vpop.permute.xlu0 %211
    %213 = vrot.lane.b32.xlu0 %v101, 48
    %v214 = vpop.permute.xlu0 %213
    %215 = vrot.lane.b32.xlu0 %v102, 48
    %v216 = vpop.permute.xlu0 %215
    %217 = vrot.lane.b32.xlu0 %v103, 48
    %v218 = vpop.permute.xlu0 %217
    %219 = vrot.lane.b32.xlu0 %v104, 48
    %v220 = vpop.permute.xlu0 %219
    %221 = vrot.lane.b32.xlu0 %v105, 48
    %v222 = vpop.permute.xlu0 %221
    %223 = vrot.lane.b32.xlu0 %v106, 48
    %v224 = vpop.permute.xlu0 %223
    %225 = vrot.lane.b32.xlu0 %v107, 48
    %v226 = vpop.permute.xlu0 %225
    %227 = vrot.lane.b32.xlu0 %v108, 48
    %v228 = vpop.permute.xlu0 %227
    %229 = vrot.lane.b32.xlu0 %v109, 48
    %v230 = vpop.permute.xlu0 %229
    %231 = vrot.lane.b32.xlu0 %v110, 48
    %v232 = vpop.permute.xlu0 %231
    %233 = vrot.lane.b32.xlu0 %v111, 48
    %v234 = vpop.permute.xlu0 %233
    %235 = vrot.lane.b32.xlu0 %v112, 48
    %v236 = vpop.permute.xlu0 %235
    %237 = vrot.lane.b32.xlu0 %v113, 48
    %v238 = vpop.permute.xlu0 %237
    %239 = vrot.lane.b32.xlu0 %v114, 48
    %v240 = vpop.permute.xlu0 %239
    %262 = vrot.lane.b32.xlu0 %v96, 72
    %v263 = vpop.permute.xlu0 %262
    %264 = vrot.lane.b32.xlu0 %v97, 72
    %v265 = vpop.permute.xlu0 %264
    %266 = vrot.lane.b32.xlu0 %v98, 72
    %v267 = vpop.permute.xlu0 %266
    %268 = vrot.lane.b32.xlu0 %v99, 72
    %v269 = vpop.permute.xlu0 %268
    %270 = vrot.lane.b32.xlu0 %v100, 72
    %v271 = vpop.permute.xlu0 %270
    %272 = vrot.lane.b32.xlu0 %v101, 72
    %v273 = vpop.permute.xlu0 %272
    %274 = vrot.lane.b32.xlu0 %v102, 72
    %v275 = vpop.permute.xlu0 %274
    %276 = vrot.lane.b32.xlu0 %v103, 72
    %v277 = vpop.permute.xlu0 %276
    %278 = vrot.lane.b32.xlu0 %v104, 72
    %v279 = vpop.permute.xlu0 %278
    %280 = vrot.lane.b32.xlu0 %v105, 72
    %v281 = vpop.permute.xlu0 %280
    %282 = vrot.lane.b32.xlu0 %v106, 72
    %v283 = vpop.permute.xlu0 %282
    %284 = vrot.lane.b32.xlu0 %v107, 72
    %v285 = vpop.permute.xlu0 %284
    %286 = vrot.lane.b32.xlu0 %v108, 72
    %v287 = vpop.permute.xlu0 %286
    %288 = vrot.lane.b32.xlu0 %v109, 72
    %v289 = vpop.permute.xlu0 %288
    %290 = vrot.lane.b32.xlu0 %v110, 72
    %v291 = vpop.permute.xlu0 %290
    %292 = vrot.lane.b32.xlu0 %v111, 72
    %v293 = vpop.permute.xlu0 %292
    %294 = vrot.lane.b32.xlu0 %v112, 72
    %v295 = vpop.permute.xlu0 %294
    %296 = vrot.lane.b32.xlu0 %v113, 72
    %v297 = vpop.permute.xlu0 %296
    %298 = vrot.lane.b32.xlu0 %v114, 72
    %v299 = vpop.permute.xlu0 %298
    %300 = vrot.lane.b32.xlu0 %v115, 72
    %v301 = vpop.permute.xlu0 %300
    %323 = vrot.lane.b32.xlu0 %v97, 96
    %v324 = vpop.permute.xlu0 %323
    %325 = vrot.lane.b32.xlu0 %v98, 96
    %v326 = vpop.permute.xlu0 %325
    %327 = vrot.lane.b32.xlu0 %v99, 96
    %v328 = vpop.permute.xlu0 %327
    %329 = vrot.lane.b32.xlu0 %v100, 96
    %v330 = vpop.permute.xlu0 %329
    %331 = vrot.lane.b32.xlu0 %v101, 96
    %v332 = vpop.permute.xlu0 %331
    %333 = vrot.lane.b32.xlu0 %v102, 96
    %v334 = vpop.permute.xlu0 %333
    %335 = vrot.lane.b32.xlu0 %v103, 96
    %v336 = vpop.permute.xlu0 %335
    %337 = vrot.lane.b32.xlu0 %v104, 96
    %v338 = vpop.permute.xlu0 %337
    %339 = vrot.lane.b32.xlu0 %v105, 96
    %v340 = vpop.permute.xlu0 %339
    %341 = vrot.lane.b32.xlu0 %v106, 96
    %v342 = vpop.permute.xlu0 %341
    %343 = vrot.lane.b32.xlu0 %v107, 96
    %v344 = vpop.permute.xlu0 %343
    %345 = vrot.lane.b32.xlu0 %v108, 96
    %v346 = vpop.permute.xlu0 %345
    %347 = vrot.lane.b32.xlu0 %v109, 96
    %v348 = vpop.permute.xlu0 %347
    %349 = vrot.lane.b32.xlu0 %v110, 96
    %v350 = vpop.permute.xlu0 %349
    %351 = vrot.lane.b32.xlu0 %v111, 96
    %v352 = vpop.permute.xlu0 %351
    %353 = vrot.lane.b32.xlu0 %v112, 96
    %v354 = vpop.permute.xlu0 %353
    %355 = vrot.lane.b32.xlu0 %v113, 96
    %v356 = vpop.permute.xlu0 %355
    %357 = vrot.lane.b32.xlu0 %v114, 96
    %v358 = vpop.permute.xlu0 %357
    %359 = vrot.lane.b32.xlu0 %v115, 96
    %v360 = vpop.permute.xlu0 %359
    %361 = vrot.lane.b32.xlu0 %v116, 96
    %v362 = vpop.permute.xlu0 %361
    %vm383 = vcmask 195584
    %v384 = vsel %vm383, %v93, %v141
    %v385 = vsel %vm383, %v94, %v143
    %v386 = vsel %vm383, %v95, %v145
    %v387 = vsel %vm383, %v96, %v147
    %v388 = vsel %vm383, %v97, %v149
    %v389 = vsel %vm383, %v98, %v151
    %v390 = vsel %vm383, %v99, %v153
    %v391 = vsel %vm383, %v100, %v155
    %v392 = vsel %vm383, %v101, %v157
    %v393 = vsel %vm383, %v102, %v159
    %v394 = vsel %vm383, %v103, %v161
    %v395 = vsel %vm383, %v104, %v163
    %v396 = vsel %vm383, %v105, %v165
    %v397 = vsel %vm383, %v106, %v167
    %v398 = vsel %vm383, %v107, %v169
    %v399 = vsel %vm383, %v108, %v171
    %v400 = vsel %vm383, %v109, %v173
    %v401 = vsel %vm383, %v110, %v175
    %v402 = vsel %vm383, %v111, %v177
    %v403 = vsel %vm383, %v112, %v179
    %vm404 = vcmask 392192
    %v405 = vsel %vm404, %v384, %v202
    %v406 = vsel %vm404, %v385, %v204
    %v407 = vsel %vm404, %v386, %v206
    %v408 = vsel %vm404, %v387, %v208
    %v409 = vsel %vm404, %v388, %v210
    %v410 = vsel %vm404, %v389, %v212
    %v411 = vsel %vm404, %v390, %v214
    %v412 = vsel %vm404, %v391, %v216
    %v413 = vsel %vm404, %v392, %v218
    %v414 = vsel %vm404, %v393, %v220
    %v415 = vsel %vm404, %v394, %v222
    %v416 = vsel %vm404, %v395, %v224
    %v417 = vsel %vm404, %v396, %v226
    %v418 = vsel %vm404, %v397, %v228
    %v419 = vsel %vm404, %v398, %v230
    %v420 = vsel %vm404, %v399, %v232
    %v421 = vsel %vm404, %v400, %v234
    %v422 = vsel %vm404, %v401, %v236
    %v423 = vsel %vm404, %v402, %v238
    %v424 = vsel %vm404, %v403, %v240
    %vm425 = vcmask 588800
    %v426 = vsel %vm425, %v405, %v263
    %v427 = vsel %vm425, %v406, %v265
    %v428 = vsel %vm425, %v407, %v267
    %v429 = vsel %vm425, %v408, %v269
    %v430 = vsel %vm425, %v409, %v271
    %v431 = vsel %vm425, %v410, %v273
    %v432 = vsel %vm425, %v411, %v275
    %v433 = vsel %vm425, %v412, %v277
    %v434 = vsel %vm425, %v413, %v279
    %v435 = vsel %vm425, %v414, %v281
    %v436 = vsel %vm425, %v415, %v283
    %v437 = vsel %vm425, %v416, %v285
    %v438 = vsel %vm425, %v417, %v287
    %v439 = vsel %vm425, %v418, %v289
    %v440 = vsel %vm425, %v419, %v291
    %v441 = vsel %vm425, %v420, %v293
    %v442 = vsel %vm425, %v421, %v295
    %v443 = vsel %vm425, %v422, %v297
    %v444 = vsel %vm425, %v423, %v299
    %v445 = vsel %vm425, %v424, %v301
    %vm446 = vcmask 785408
    %v447 = vsel %vm446, %v426, %v324
    %v448 = vsel %vm446, %v427, %v326
    %v449 = vsel %vm446, %v428, %v328
    %v450 = vsel %vm446, %v429, %v330
    %v451 = vsel %vm446, %v430, %v332
    %v452 = vsel %vm446, %v431, %v334
    %v453 = vsel %vm446, %v432, %v336
    %v454 = vsel %vm446, %v433, %v338
    %v455 = vsel %vm446, %v434, %v340
    %v456 = vsel %vm446, %v435, %v342
    %v457 = vsel %vm446, %v436, %v344
    %v458 = vsel %vm446, %v437, %v346
    %v459 = vsel %vm446, %v438, %v348
    %v460 = vsel %vm446, %v439, %v350
    %v461 = vsel %vm446, %v440, %v352
    %v462 = vsel %vm446, %v441, %v354
    %v463 = vsel %vm446, %v442, %v356
    %v464 = vsel %vm446, %v443, %v358
    %v465 = vsel %vm446, %v444, %v360
    %v466 = vsel %vm446, %v445, %v362
    %v467 = vpack.c.bf16 %v448, %v447
    %v468 = vpack.c.bf16 %v450, %v449
    %v469 = vpack.c.bf16 %v452, %v451
    %v470 = vpack.c.bf16 %v454, %v453
    %v471 = vpack.c.bf16 %v456, %v455
    %v472 = vpack.c.bf16 %v458, %v457
    %v473 = vpack.c.bf16 %v460, %v459
    %v474 = vpack.c.bf16 %v462, %v461
    %v475 = vpack.c.bf16 %v464, %v463
    %v476 = vpack.c.bf16 %v466, %v465
    %v477 = vld [vmem:[#allocation2] sm:$0xf]
    %v478 = vld [vmem:[#allocation2 + $0x4] sm:$0xf]
    %v479 = vld [vmem:[#allocation2 + $0x8] sm:$0xf]
    %v480 = vld [vmem:[#allocation2 + $0xc] sm:$0xf]
    %v481 = vld [vmem:[#allocation2 + $0x10] sm:$0xf]
    %v482 = vld [vmem:[#allocation2 + $0x14] sm:$0xf]
    %v483 = vld [vmem:[#allocation2 + $0x18] sm:$0xf]
    %v484 = vld [vmem:[#allocation2 + $0x1c] sm:$0xf]
    %v485 = vld [vmem:[#allocation2 + $0x20] sm:$0xf]
    %v486 = vld [vmem:[#allocation2 + $0x24] sm:$0xf]
    %v487 = vld [vmem:[#allocation2 + $0x28] sm:$0xf]
    %v488 = vld [vmem:[#allocation2 + $0x2c] sm:$0xf]
    %v489 = vld [vmem:[#allocation2 + $0x30] sm:$0xf]
    %v490 = vld [vmem:[#allocation2 + $0x34] sm:$0xf]
    %v491 = vld [vmem:[#allocation2 + $0x38] sm:$0xf]
    %v507 = vunpack.c.l.b16 %v477
    %v508 = vunpack.c.l.b16 %v478
    %v509 = vunpack.c.l.b16 %v479
    %v510 = vunpack.c.l.b16 %v480
    %v511 = vunpack.c.l.b16 %v481
    %v512 = vunpack.c.l.b16 %v482
    %v513 = vunpack.c.l.b16 %v483
    %v514 = vunpack.c.l.b16 %v484
    %v515 = vunpack.c.l.b16 %v485
    %v516 = vunpack.c.l.b16 %v486
    %v517 = vunpack.c.l.b16 %v487
    %v518 = vunpack.c.l.b16 %v488
    %v519 = vunpack.c.l.b16 %v489
    %v520 = vunpack.c.l.b16 %v490
    %v521 = vunpack.c.l.b16 %v491
    %v522 = vpack.c.b16 %v508, %v507
    %v523 = vpack.c.b16 %v510, %v509
    %v524 = vpack.c.b16 %v512, %v511
    %v525 = vpack.c.b16 %v514, %v513
    %v526 = vpack.c.b16 %v516, %v515
    %v527 = vpack.c.b16 %v518, %v517
    %v528 = vpack.c.b16 %v520, %v519
    %v529 = vpack.c.b16 %v521, %v521
    %vm537 = vcmask 982016
    %v539 = vsel %vm537, %v467, 0
    %v542 = vsel %vm537, %v468, 0
    %v545 = vsel %vm537, %v469, 0
    %v548 = vsel %vm537, %v470, 0
    %v551 = vsel %vm537, %v471, 0
    %v554 = vsel %vm537, %v472, 0
    %v557 = vsel %vm537, %v473, 0
    %v560 = vsel %vm537, %v474, 0
    %v563 = vsel %vm537, %v475, 0
    %v566 = vsel %vm537, %v476, 0
    %vm568 = vcmask 1043456
    %v570 = vsel %vm568, %v529, 0
    %572 = vmatpush.bf16.msra.mxu0 %v570
    %573 = vmatpush.bf16.msra.mxu0 %v528
    %574 = vmatpush.bf16.msra.mxu0 %v527
    %575 = vmatpush.bf16.msra.mxu0 %v526
    %576 = vmatpush.bf16.msra.mxu0 %v525
    %577 = vmatpush.bf16.msra.mxu0 %v524
    %578 = vmatpush.bf16.msra.mxu0 %v523
    %579 = vmatpush.bf16.msra.mxu0 %v522
    %580 = vmatmul.bf16.gmra.mxu0 %v539
    %v581 = vpop.f32.mrf.mxu0
    %v582 = vadd.f32 %v117, %v581
    %v583 = vpop.f32.mrf.mxu0
    %v584 = vadd.f32 %v117, %v583
    %585 = vmatmul.bf16.gmra.mxu0 %v542
    %v586 = vpop.f32.mrf.mxu0
    %v587 = vadd.f32 %v117, %v586
    %v588 = vpop.f32.mrf.mxu0
    %v589 = vadd.f32 %v117, %v588
    %590 = vmatmul.bf16.gmra.mxu0 %v545
    %v591 = vpop.f32.mrf.mxu0
    %v592 = vadd.f32 %v117, %v591
    %v593 = vpop.f32.mrf.mxu0
    %v594 = vadd.f32 %v117, %v593
    %595 = vmatmul.bf16.gmra.mxu0 %v548
    %v596 = vpop.f32.mrf.mxu0
    %v597 = vadd.f32 %v117, %v596
    %v598 = vpop.f32.mrf.mxu0
    %v599 = vadd.f32 %v117, %v598
    %600 = vmatmul.bf16.gmra.mxu0 %v551
    %v601 = vpop.f32.mrf.mxu0
    %v602 = vadd.f32 %v117, %v601
    %v603 = vpop.f32.mrf.mxu0
    %v604 = vadd.f32 %v117, %v603
    %605 = vmatmul.bf16.gmra.mxu0 %v554
    %v606 = vpop.f32.mrf.mxu0
    %v607 = vadd.f32 %v117, %v606
    %v608 = vpop.f32.mrf.mxu0
    %v609 = vadd.f32 %v117, %v608
    %610 = vmatmul.bf16.gmra.mxu0 %v557
    %v611 = vpop.f32.mrf.mxu0
    %v612 = vadd.f32 %v117, %v611
    %v613 = vpop.f32.mrf.mxu0
    %v614 = vadd.f32 %v117, %v613
    %615 = vmatmul.bf16.gmra.mxu0 %v560
    %v616 = vpop.f32.mrf.mxu0
    %v617 = vadd.f32 %v117, %v616
    %v618 = vpop.f32.mrf.mxu0
    %v619 = vadd.f32 %v117, %v618
    %620 = vmatmul.bf16.gmra.mxu0 %v563
    %v621 = vpop.f32.mrf.mxu0
    %v622 = vadd.f32 %v117, %v621
    %v623 = vpop.f32.mrf.mxu0
    %v624 = vadd.f32 %v117, %v623
    %625 = vmatmul.bf16.gmra.mxu0 %v566
    %v626 = vpop.f32.mrf.mxu0
    %v627 = vadd.f32 %v117, %v626
    %v628 = vpop.f32.mrf.mxu0
    %v629 = vadd.f32 %v117, %v628
    %630 = vdwg.mxu0
    %v631 = vmax.f32 %v582, 0.0
    %v632 = vmax.f32 %v584, 0.0
    %v633 = vmax.f32 %v587, 0.0
    %v634 = vmax.f32 %v589, 0.0
    %v635 = vmax.f32 %v592, 0.0
    %v636 = vmax.f32 %v594, 0.0
    %v637 = vmax.f32 %v597, 0.0
    %v638 = vmax.f32 %v599, 0.0
    %v639 = vmax.f32 %v602, 0.0
    %v640 = vmax.f32 %v604, 0.0
    %v641 = vmax.f32 %v607, 0.0
    %v642 = vmax.f32 %v609, 0.0
    %v643 = vmax.f32 %v612, 0.0
    %v644 = vmax.f32 %v614, 0.0
    %v645 = vmax.f32 %v617, 0.0
    %v646 = vmax.f32 %v619, 0.0
    %v647 = vmax.f32 %v622, 0.0
    %v648 = vmax.f32 %v624, 0.0
    %v649 = vmax.f32 %v627, 0.0
    %v650 = vmax.f32 %v629, 0.0
    %v651 = vmul.f32 %v631, %v118
    %v652 = vmul.f32 %v632, %v118
    %v653 = vmul.f32 %v633, %v118
    %v654 = vmul.f32 %v634, %v118
    %v655 = vmul.f32 %v635, %v118
    %v656 = vmul.f32 %v636, %v118
    %v657 = vmul.f32 %v637, %v118
    %v658 = vmul.f32 %v638, %v118
    %v659 = vmul.f32 %v639, %v118
    %v660 = vmul.f32 %v640, %v118
    %v661 = vmul.f32 %v641, %v118
    %v662 = vmul.f32 %v642, %v118
    %v663 = vmul.f32 %v643, %v118
    %v664 = vmul.f32 %v644, %v118
    %v665 = vmul.f32 %v645, %v118
    %v666 = vmul.f32 %v646, %v118
    %v667 = vmul.f32 %v647, %v118
    %v668 = vmul.f32 %v648, %v118
    %v669 = vmul.f32 %v649, %v118
    %v670 = vmul.f32 %v650, %v118
    %v671 = vadd.f32 %v651, %v119
    %v672 = vadd.f32 %v652, %v119
    %v673 = vadd.f32 %v653, %v119
    %v674 = vadd.f32 %v654, %v119
    %v675 = vadd.f32 %v655, %v119
    %v676 = vadd.f32 %v656, %v119
    %v677 = vadd.f32 %v657, %v119
    %v678 = vadd.f32 %v658, %v119
    %v679 = vadd.f32 %v659, %v119
    %v680 = vadd.f32 %v660, %v119
    %v681 = vadd.f32 %v661, %v119
    %v682 = vadd.f32 %v662, %v119
    %v683 = vadd.f32 %v663, %v119
    %v684 = vadd.f32 %v664, %v119
    %v685 = vadd.f32 %v665, %v119
    %v686 = vadd.f32 %v666, %v119
    %v687 = vadd.f32 %v667, %v119
    %v688 = vadd.f32 %v668, %v119
    %v689 = vadd.f32 %v669, %v119
    %v690 = vadd.f32 %v670, %v119
    %v691 = vmax.f32 %v671, %v672
    %v692 = vmax.f32 %v673, %v674
    %v693 = vmax.f32 %v675, %v676
    %v694 = vmax.f32 %v677, %v678
    %v695 = vmax.f32 %v679, %v680
    %v696 = vmax.f32 %v681, %v682
    %v697 = vmax.f32 %v683, %v684
    %v698 = vmax.f32 %v685, %v686
    %v699 = vmax.f32 %v687, %v688
    %v700 = vmax.f32 %v689, %v690
    %711 = vrot.lane.b32.xlu0 %v691, 122
    %v712 = vpop.permute.xlu0 %711
    %713 = vrot.lane.b32.xlu0 %v692, 122
    %v714 = vpop.permute.xlu0 %713
    %715 = vrot.lane.b32.xlu0 %v693, 122
    %v716 = vpop.permute.xlu0 %715
    %717 = vrot.lane.b32.xlu0 %v694, 122
    %v718 = vpop.permute.xlu0 %717
    %719 = vrot.lane.b32.xlu0 %v695, 122
    %v720 = vpop.permute.xlu0 %719
    %721 = vrot.lane.b32.xlu0 %v696, 122
    %v722 = vpop.permute.xlu0 %721
    %723 = vrot.lane.b32.xlu0 %v697, 122
    %v724 = vpop.permute.xlu0 %723
    %725 = vrot.lane.b32.xlu0 %v698, 122
    %v726 = vpop.permute.xlu0 %725
    %727 = vrot.lane.b32.xlu0 %v699, 122
    %v728 = vpop.permute.xlu0 %727
    %729 = vrot.lane.b32.xlu0 %v700, 122
    %v730 = vpop.permute.xlu0 %729
    %v741 = vmax.f32 %v691, %v712
    %v742 = vmax.f32 %v692, %v714
    %v743 = vmax.f32 %v693, %v716
    %v744 = vmax.f32 %v694, %v718
    %v745 = vmax.f32 %v695, %v720
    %v746 = vmax.f32 %v696, %v722
    %v747 = vmax.f32 %v697, %v724
    %v748 = vmax.f32 %v698, %v726
    %v749 = vmax.f32 %v699, %v728
    %v750 = vmax.f32 %v700, %v730
    %v751 = vld [vmem:[#allocation7 + $0x3] ss:$0 sm:$0xff]
    %v752 = vld [vmem:[#allocation7 + $0x4] ss:$0 sm:$0xff]
    %v753 = vld [vmem:[#allocation7 + $0x5] ss:$0 sm:$0xff]
    %762 = vrot.lane.b32.xlu0 %v742, 114
    %v763 = vpop.permute.xlu0 %762
    %764 = vrot.lane.b32.xlu0 %v743, 114
    %v765 = vpop.permute.xlu0 %764
    %766 = vrot.lane.b32.xlu0 %v744, 114
    %v767 = vpop.permute.xlu0 %766
    %768 = vrot.lane.b32.xlu0 %v745, 114
    %v769 = vpop.permute.xlu0 %768
    %770 = vrot.lane.b32.xlu0 %v746, 114
    %v771 = vpop.permute.xlu0 %770
    %772 = vrot.lane.b32.xlu0 %v747, 114
    %v773 = vpop.permute.xlu0 %772
    %774 = vrot.lane.b32.xlu0 %v748, 114
    %v775 = vpop.permute.xlu0 %774
    %776 = vrot.lane.b32.xlu0 %v749, 114
    %v777 = vpop.permute.xlu0 %776
    %787 = vrot.lane.b32.xlu0 %v743, 100
    %v788 = vpop.permute.xlu0 %787
    %789 = vrot.lane.b32.xlu0 %v744, 100
    %v790 = vpop.permute.xlu0 %789
    %791 = vrot.lane.b32.xlu0 %v745, 100
    %v792 = vpop.permute.xlu0 %791
    %793 = vrot.lane.b32.xlu0 %v746, 100
    %v794 = vpop.permute.xlu0 %793
    %795 = vrot.lane.b32.xlu0 %v747, 100
    %v796 = vpop.permute.xlu0 %795
    %797 = vrot.lane.b32.xlu0 %v748, 100
    %v798 = vpop.permute.xlu0 %797
    %799 = vrot.lane.b32.xlu0 %v749, 100
    %v800 = vpop.permute.xlu0 %799
    %801 = vrot.lane.b32.xlu0 %v750, 100
    %v802 = vpop.permute.xlu0 %801
    %vm811 = vcmask 932864
    %v812 = vsel %vm811, %v741, %v763
    %v813 = vsel %vm811, %v742, %v765
    %v814 = vsel %vm811, %v743, %v767
    %v815 = vsel %vm811, %v744, %v769
    %v816 = vsel %vm811, %v745, %v771
    %v817 = vsel %vm811, %v746, %v773
    %v818 = vsel %vm811, %v747, %v775
    %v819 = vsel %vm811, %v748, %v777
    %vm820 = vcmask 818176
    %v821 = vsel %vm820, %v763, %v788
    %v822 = vsel %vm820, %v765, %v790
    %v823 = vsel %vm820, %v767, %v792
    %v824 = vsel %vm820, %v769, %v794
    %v825 = vsel %vm820, %v771, %v796
    %v826 = vsel %vm820, %v773, %v798
    %v827 = vsel %vm820, %v775, %v800
    %v828 = vsel %vm820, %v777, %v802
    %v829 = vpack.c.bf16 %v813, %v812
    %v830 = vpack.c.bf16 %v822, %v821
    %v831 = vpack.c.bf16 %v790, %v788
    %v832 = vpack.c.bf16 %v815, %v814
    %v833 = vpack.c.bf16 %v824, %v823
    %v834 = vpack.c.bf16 %v794, %v792
    %v835 = vpack.c.bf16 %v817, %v816
    %v836 = vpack.c.bf16 %v826, %v825
    %v837 = vpack.c.bf16 %v798, %v796
    %v838 = vpack.c.bf16 %v819, %v818
    %v839 = vpack.c.bf16 %v828, %v827
    %v840 = vpack.c.bf16 %v802, %v800
    %v841 = vld [vmem:[#allocation4] sm:$0xf]
    %v842 = vld [vmem:[#allocation4 + $0x4] sm:$0xf]
    %v843 = vld [vmem:[#allocation4 + $0x8] sm:$0xf]
    %v844 = vld [vmem:[#allocation4 + $0xc] sm:$0xf]
    %v845 = vld [vmem:[#allocation4 + $0x10] sm:$0xf]
    %v846 = vld [vmem:[#allocation4 + $0x14] sm:$0xf]
    %v847 = vld [vmem:[#allocation4 + $0x18] sm:$0xf]
    %v848 = vld [vmem:[#allocation4 + $0x1c] sm:$0xf]
    %v849 = vld [vmem:[#allocation4 + $0x20] sm:$0xf]
    %v850 = vld [vmem:[#allocation4 + $0x24] sm:$0xf]
    %v851 = vld [vmem:[#allocation4 + $0x28] sm:$0xf]
    %v852 = vld [vmem:[#allocation4 + $0x2c] sm:$0xf]
    %v853 = vld [vmem:[#allocation4 + $0x30] sm:$0xf]
    %v854 = vld [vmem:[#allocation4 + $0x34] sm:$0xf]
    %v855 = vld [vmem:[#allocation4 + $0x38] sm:$0xf]
    %v856 = vld [vmem:[#allocation4 + $0x3c] sm:$0xf]
    %v857 = vld [vmem:[#allocation4 + $0x40] sm:$0xf]
    %v858 = vld [vmem:[#allocation4 + $0x44] sm:$0xf]
    %v859 = vld [vmem:[#allocation4 + $0x48] sm:$0xf]
    %v860 = vld [vmem:[#allocation4 + $0x4c] sm:$0xf]
    %v861 = vld [vmem:[#allocation4 + $0x50] sm:$0xf]
    %v862 = vld [vmem:[#allocation4 + $0x54] sm:$0xf]
    %v863 = vld [vmem:[#allocation4 + $0x58] sm:$0xf]
    %v864 = vld [vmem:[#allocation4 + $0x5c] sm:$0xf]
    %v865 = vld [vmem:[#allocation4 + $0x60] sm:$0xf]
    %v866 = vld [vmem:[#allocation4 + $0x64] sm:$0xf]
    %v867 = vld [vmem:[#allocation4 + $0x68] sm:$0xf]
    %v868 = vld [vmem:[#allocation4 + $0x6c] sm:$0xf]
    %v869 = vld [vmem:[#allocation4 + $0x70] sm:$0xf]
    %v870 = vld [vmem:[#allocation4 + $0x74] sm:$0xf]
    %v871 = vld [vmem:[#allocation4 + $0x78] sm:$0xf]
    %v872 = vld [vmem:[#allocation4 + $0x7c] sm:$0xf]
    %v873 = vld [vmem:[#allocation4 + $0x80] sm:$0xf]
    %v874 = vld [vmem:[#allocation4 + $0x84] sm:$0xf]
    %v875 = vld [vmem:[#allocation4 + $0x88] sm:$0xf]
    %v876 = vld [vmem:[#allocation4 + $0x8c] sm:$0xf]
    %v877 = vld [vmem:[#allocation4 + $0x90] sm:$0xf]
    %v878 = vld [vmem:[#allocation4 + $0x94] sm:$0xf]
    %v879 = vld [vmem:[#allocation4 + $0x98] sm:$0xf]
    %v880 = vld [vmem:[#allocation4 + $0x9c] sm:$0xf]
    %v881 = vld [vmem:[#allocation4 + $0xa0] sm:$0xf]
    %v882 = vld [vmem:[#allocation4 + $0xa4] sm:$0xf]
    %v883 = vld [vmem:[#allocation4 + $0xa8] sm:$0x7]
    %v927 = vunpack.c.l.b16 %v841
    %v928 = vunpack.c.l.b16 %v842
    %v929 = vunpack.c.l.b16 %v843
    %v930 = vunpack.c.l.b16 %v844
    %v931 = vunpack.c.l.b16 %v845
    %v932 = vunpack.c.l.b16 %v846
    %v933 = vunpack.c.l.b16 %v847
    %v934 = vunpack.c.l.b16 %v848
    %v935 = vunpack.c.l.b16 %v849
    %v936 = vunpack.c.l.b16 %v850
    %v937 = vunpack.c.l.b16 %v851
    %v938 = vunpack.c.l.b16 %v852
    %v939 = vunpack.c.l.b16 %v853
    %v940 = vunpack.c.l.b16 %v854
    %v941 = vunpack.c.l.b16 %v855
    %v942 = vunpack.c.l.b16 %v856
    %v943 = vunpack.c.l.b16 %v857
    %v944 = vunpack.c.l.b16 %v858
    %v945 = vunpack.c.l.b16 %v859
    %v946 = vunpack.c.l.b16 %v860
    %v947 = vunpack.c.l.b16 %v861
    %v948 = vunpack.c.l.b16 %v862
    %v949 = vunpack.c.l.b16 %v863
    %v950 = vunpack.c.l.b16 %v864
    %v951 = vunpack.c.l.b16 %v865
    %v952 = vunpack.c.l.b16 %v866
    %v953 = vunpack.c.l.b16 %v867
    %v954 = vunpack.c.l.b16 %v868
    %v955 = vunpack.c.l.b16 %v869
    %v956 = vunpack.c.l.b16 %v870
    %v957 = vunpack.c.l.b16 %v871
    %v958 = vunpack.c.l.b16 %v872
    %v959 = vunpack.c.l.b16 %v873
    %v960 = vunpack.c.l.b16 %v874
    %v961 = vunpack.c.l.b16 %v875
    %v962 = vunpack.c.l.b16 %v876
    %v963 = vunpack.c.l.b16 %v877
    %v964 = vunpack.c.l.b16 %v878
    %v965 = vunpack.c.l.b16 %v879
    %v966 = vunpack.c.l.b16 %v880
    %v967 = vunpack.c.l.b16 %v881
    %v968 = vunpack.c.l.b16 %v882
    %v969 = vunpack.c.l.b16 %v883
    %v970 = vpack.c.b16 %v928, %v927
    %v971 = vpack.c.b16 %v930, %v929
    %v972 = vpack.c.b16 %v932, %v931
    %v973 = vpack.c.b16 %v934, %v933
    %v974 = vpack.c.b16 %v936, %v935
    %v975 = vpack.c.b16 %v938, %v937
    %v976 = vpack.c.b16 %v940, %v939
    %v977 = vpack.c.b16 %v942, %v941
    %v978 = vpack.c.b16 %v944, %v943
    %v979 = vpack.c.b16 %v946, %v945
    %v980 = vpack.c.b16 %v948, %v947
    %v981 = vpack.c.b16 %v950, %v949
    %v982 = vpack.c.b16 %v952, %v951
    %v983 = vpack.c.b16 %v954, %v953
    %v984 = vpack.c.b16 %v956, %v955
    %v985 = vpack.c.b16 %v958, %v957
    %v986 = vpack.c.b16 %v960, %v959
    %v987 = vpack.c.b16 %v962, %v961
    %v988 = vpack.c.b16 %v964, %v963
    %v989 = vpack.c.b16 %v966, %v965
    %v990 = vpack.c.b16 %v968, %v967
    %v991 = vpack.c.b16 %v969, %v969
    %vm1013 = vcmask 703488
    %v1015 = vsel %vm1013, %v831, 0
    %v1018 = vsel %vm1013, %v834, 0
    %v1021 = vsel %vm1013, %v837, 0
    %v1024 = vsel %vm1013, %v840, 0
    %vm1026 = vcmask 1042432
    %v1028 = vsel %vm1026, %v991, 0
    %1030 = vmatpush.bf16.msra.mxu0 %v977
    %1031 = vmatpush.bf16.msra.mxu0 %v976
    %1032 = vmatpush.bf16.msra.mxu0 %v975
    %1033 = vmatpush.bf16.msra.mxu0 %v974
    %1034 = vmatpush.bf16.msra.mxu0 %v973
    %1035 = vmatpush.bf16.msra.mxu0 %v972
    %1036 = vmatpush.bf16.msra.mxu0 %v971
    %1037 = vmatpush.bf16.msra.mxu0 %v970
    %1038 = vmatmul.bf16.gmra.mxu0 %v829
    %v1039 = vpop.f32.mrf.mxu0
    %v1040 = vadd.f32 %v751, %v1039
    %v1041 = vpop.f32.mrf.mxu0
    %v1042 = vadd.f32 %v751, %v1041
    %1043 = vmatmul.bf16.gmra.mxu0 %v832
    %v1044 = vpop.f32.mrf.mxu0
    %v1045 = vadd.f32 %v751, %v1044
    %v1046 = vpop.f32.mrf.mxu0
    %v1047 = vadd.f32 %v751, %v1046
    %1048 = vmatmul.bf16.gmra.mxu0 %v835
    %v1049 = vpop.f32.mrf.mxu0
    %v1050 = vadd.f32 %v751, %v1049
    %v1051 = vpop.f32.mrf.mxu0
    %v1052 = vadd.f32 %v751, %v1051
    %1053 = vmatmul.bf16.gmra.mxu0 %v838
    %v1054 = vpop.f32.mrf.mxu0
    %v1055 = vadd.f32 %v751, %v1054
    %v1056 = vpop.f32.mrf.mxu0
    %v1057 = vadd.f32 %v751, %v1056
    %1058 = vdwg.mxu0
    %1059 = vmatpush.bf16.msra.mxu0 %v985
    %1060 = vmatpush.bf16.msra.mxu0 %v984
    %1061 = vmatpush.bf16.msra.mxu0 %v983
    %1062 = vmatpush.bf16.msra.mxu0 %v982
    %1063 = vmatpush.bf16.msra.mxu0 %v981
    %1064 = vmatpush.bf16.msra.mxu0 %v980
    %1065 = vmatpush.bf16.msra.mxu0 %v979
    %1066 = vmatpush.bf16.msra.mxu0 %v978
    %1067 = vmatmul.bf16.gmra.mxu0 %v830
    %v1068 = vpop.f32.mrf.mxu0
    %v1069 = vadd.f32 %v1040, %v1068
    %v1070 = vpop.f32.mrf.mxu0
    %v1071 = vadd.f32 %v1042, %v1070
    %1072 = vmatmul.bf16.gmra.mxu0 %v833
    %v1073 = vpop.f32.mrf.mxu0
    %v1074 = vadd.f32 %v1045, %v1073
    %v1075 = vpop.f32.mrf.mxu0
    %v1076 = vadd.f32 %v1047, %v1075
    %1077 = vmatmul.bf16.gmra.mxu0 %v836
    %v1078 = vpop.f32.mrf.mxu0
    %v1079 = vadd.f32 %v1050, %v1078
    %v1080 = vpop.f32.mrf.mxu0
    %v1081 = vadd.f32 %v1052, %v1080
    %1082 = vmatmul.bf16.gmra.mxu0 %v839
    %v1083 = vpop.f32.mrf.mxu0
    %v1084 = vadd.f32 %v1055, %v1083
    %v1085 = vpop.f32.mrf.mxu0
    %v1086 = vadd.f32 %v1057, %v1085
    %1087 = vdwg.mxu0
    %1088 = vmatpush.bf16.msra.mxu0 0
    %1089 = vmatpush.bf16.msra.mxu0 0
    %1090 = vmatpush.bf16.msra.mxu0 %v1028
    %1091 = vmatpush.bf16.msra.mxu0 %v990
    %1092 = vmatpush.bf16.msra.mxu0 %v989
    %1093 = vmatpush.bf16.msra.mxu0 %v988
    %1094 = vmatpush.bf16.msra.mxu0 %v987
    %1095 = vmatpush.bf16.msra.mxu0 %v986
    %1096 = vmatmul.bf16.gmra.mxu0 %v1015
    %v1097 = vpop.f32.mrf.mxu0
    %v1098 = vadd.f32 %v1069, %v1097
    %v1099 = vpop.f32.mrf.mxu0
    %v1100 = vadd.f32 %v1071, %v1099
    %1101 = vmatmul.bf16.gmra.mxu0 %v1018
    %v1102 = vpop.f32.mrf.mxu0
    %v1103 = vadd.f32 %v1074, %v1102
    %v1104 = vpop.f32.mrf.mxu0
    %v1105 = vadd.f32 %v1076, %v1104
    %1106 = vmatmul.bf16.gmra.mxu0 %v1021
    %v1107 = vpop.f32.mrf.mxu0
    %v1108 = vadd.f32 %v1079, %v1107
    %v1109 = vpop.f32.mrf.mxu0
    %v1110 = vadd.f32 %v1081, %v1109
    %1111 = vmatmul.bf16.gmra.mxu0 %v1024
    %v1112 = vpop.f32.mrf.mxu0
    %v1113 = vadd.f32 %v1084, %v1112
    %v1114 = vpop.f32.mrf.mxu0
    %v1115 = vadd.f32 %v1086, %v1114
    %1116 = vdwg.mxu0
    %v1117 = vmax.f32 %v1098, 0.0
    %v1118 = vmax.f32 %v1100, 0.0
    %v1119 = vmax.f32 %v1103, 0.0
    %v1120 = vmax.f32 %v1105, 0.0
    %v1121 = vmax.f32 %v1108, 0.0
    %v1122 = vmax.f32 %v1110, 0.0
    %v1123 = vmax.f32 %v1113, 0.0
    %v1124 = vmax.f32 %v1115, 0.0
    %v1125 = vmul.f32 %v1117, %v752
    %v1126 = vmul.f32 %v1118, %v752
    %v1127 = vmul.f32 %v1119, %v752
    %v1128 = vmul.f32 %v1120, %v752
    %v1129 = vmul.f32 %v1121, %v752
    %v1130 = vmul.f32 %v1122, %v752
    %v1131 = vmul.f32 %v1123, %v752
    %v1132 = vmul.f32 %v1124, %v752
    %v1133 = vadd.f32 %v1125, %v753
    %v1134 = vadd.f32 %v1126, %v753
    %v1135 = vadd.f32 %v1127, %v753
    %v1136 = vadd.f32 %v1128, %v753
    %v1137 = vadd.f32 %v1129, %v753
    %v1138 = vadd.f32 %v1130, %v753
    %v1139 = vadd.f32 %v1131, %v753
    %v1140 = vadd.f32 %v1132, %v753
    %v1141 = vmax.f32 %v1133, %v1134
    %v1142 = vmax.f32 %v1135, %v1136
    %v1143 = vmax.f32 %v1137, %v1138
    %v1144 = vmax.f32 %v1139, %v1140
    %1149 = vrot.lane.b32.xlu0 %v1141, 112
    %v1150 = vpop.permute.xlu0 %1149
    %1151 = vrot.lane.b32.xlu0 %v1142, 112
    %v1152 = vpop.permute.xlu0 %1151
    %1153 = vrot.lane.b32.xlu0 %v1143, 112
    %v1154 = vpop.permute.xlu0 %1153
    %1155 = vrot.lane.b32.xlu0 %v1144, 112
    %v1156 = vpop.permute.xlu0 %1155
    %v1161 = vmax.f32 %v1141, %v1150
    %v1162 = vmax.f32 %v1142, %v1152
    %v1163 = vmax.f32 %v1143, %v1154
    %v1164 = vmax.f32 %v1144, %v1156
    %s1165 = scalar_lea.vmem [#allocation7], 6
    %v1166 = vld [vmem:[%s1165] ss:$8 sm:$0x3]
    %s1167 = scalar_lea.vmem [#allocation7], 7
    %v1168 = vld [vmem:[%s1167] ss:$8 sm:$0x3]
    %s1169 = scalar_lea.vmem [#allocation7], 16
    %v1170 = vld [vmem:[%s1169] ss:$8 sm:$0x3]
    %1171 = vrot.lane.b32.xlu0 %v114, 24
    %v1172 = vpop.permute.xlu0 %1171
    %1173 = vrot.lane.b32.xlu0 %v115, 24
    %v1174 = vpop.permute.xlu0 %1173
    %1177 = vrot.lane.b32.xlu0 %v115, 48
    %v1178 = vpop.permute.xlu0 %1177
    %1179 = vrot.lane.b32.xlu0 %v116, 48
    %v1180 = vpop.permute.xlu0 %1179
    %v1183 = vsel %vm383, %v113, %v1172
    %v1184 = vsel %vm383, %v114, %v1174
    %v1185 = vsel %vm404, %v1183, %v1178
    %v1186 = vsel %vm404, %v1184, %v1180
    %v1187 = vpack.c.bf16 %v406, %v405
    %v1188 = vpack.c.bf16 %v408, %v407
    %v1189 = vpack.c.bf16 %v410, %v409
    %v1190 = vpack.c.bf16 %v412, %v411
    %v1191 = vpack.c.bf16 %v414, %v413
    %v1192 = vpack.c.bf16 %v416, %v415
    %v1193 = vpack.c.bf16 %v418, %v417
    %v1194 = vpack.c.bf16 %v420, %v419
    %v1195 = vpack.c.bf16 %v422, %v421
    %v1196 = vpack.c.bf16 %v424, %v423
    %v1197 = vpack.c.bf16 %v1186, %v1185
    %v1198 = vld [vmem:[%s3] sm:$0xff]
    %v1199 = vld [vmem:[%s3 + $0x8] sm:$0xff]
    %v1200 = vld [vmem:[%s3 + $0x10] sm:$0xff]
    %v1201 = vld [vmem:[%s3 + $0x18] sm:$0xff]
    %v1202 = vld [vmem:[%s3 + $0x20] sm:$0xff]
    %v1203 = vld [vmem:[%s3 + $0x28] sm:$0xff]
    %v1204 = vld [vmem:[%s3 + $0x30] sm:$0xff]
    %v1205 = vld [vmem:[%s3 + $0x38] sm:$0xff]
    %v1206 = vld [vmem:[%s3 + $0x40] sm:$0xff]
    %v1208 = vperm.slane %v1166, 0
    %v1209 = vperm.slane %v1166, 1
    %v1221 = vunpack.c.l.b16 %v1198
    %v1222 = vunpack.c.h.b16 %v1198
    %v1223 = vunpack.c.l.b16 %v1199
    %v1224 = vunpack.c.h.b16 %v1199
    %v1225 = vunpack.c.l.b16 %v1200
    %v1226 = vunpack.c.h.b16 %v1200
    %v1227 = vunpack.c.l.b16 %v1201
    %v1228 = vunpack.c.h.b16 %v1201
    %v1229 = vunpack.c.l.b16 %v1202
    %v1230 = vunpack.c.h.b16 %v1202
    %v1231 = vunpack.c.l.b16 %v1203
    %v1232 = vunpack.c.h.b16 %v1203
    %v1233 = vunpack.c.l.b16 %v1204
    %v1234 = vunpack.c.h.b16 %v1204
    %v1235 = vunpack.c.l.b16 %v1205
    %v1236 = vunpack.c.h.b16 %v1205
    %v1237 = vunpack.c.l.b16 %v1206
    %v1238 = vunpack.c.h.b16 %v1206
    %v1239 = vpack.c.b16 %v1223, %v1221
    %v1240 = vpack.c.b16 %v1224, %v1222
    %v1241 = vpack.c.b16 %v1227, %v1225
    %v1242 = vpack.c.b16 %v1228, %v1226
    %v1243 = vpack.c.b16 %v1231, %v1229
    %v1244 = vpack.c.b16 %v1232, %v1230
    %v1245 = vpack.c.b16 %v1235, %v1233
    %v1246 = vpack.c.b16 %v1236, %v1234
    %v1247 = vpack.c.b16 %v1237, %v1237
    %v1248 = vpack.c.b16 %v1238, %v1238
    %v1258 = vsel %vm425, %v1187, 0
    %v1261 = vsel %vm425, %v1188, 0
    %v1264 = vsel %vm425, %v1189, 0
    %v1267 = vsel %vm425, %v1190, 0
    %v1270 = vsel %vm425, %v1191, 0
    %v1273 = vsel %vm425, %v1192, 0
    %v1276 = vsel %vm425, %v1193, 0
    %v1279 = vsel %vm425, %v1194, 0
    %v1282 = vsel %vm425, %v1195, 0
    %v1285 = vsel %vm425, %v1196, 0
    %v1288 = vsel %vm425, %v1197, 0
    %v1291 = vsel %vm568, %v1247, 0
    %v1294 = vsel %vm568, %v1248, 0
    %1296 = vmatpush.bf16.msra.mxu0 0
    %1297 = vmatpush.bf16.msra.mxu0 0
    %1298 = vmatpush.bf16.msra.mxu0 0
    %1299 = vmatpush.bf16.msra.mxu0 %v1291
    %1300 = vmatpush.bf16.msra.mxu0 %v1245
    %1301 = vmatpush.bf16.msra.mxu0 %v1243
    %1302 = vmatpush.bf16.msra.mxu0 %v1241
    %1303 = vmatpush.bf16.msra.mxu0 %v1239
    %1304 = vmatmul.bf16.gmra.mxu0 %v1258
    %v1305 = vpop.f32.mrf.mxu0
    %v1306 = vadd.f32 %v1208, %v1305
    %v1307 = vpop.f32.mrf.mxu0
    %v1308 = vadd.f32 %v1208, %v1307
    %1309 = vmatmul.bf16.gmra.mxu0 %v1261
    %v1310 = vpop.f32.mrf.mxu0
    %v1311 = vadd.f32 %v1208, %v1310
    %v1312 = vpop.f32.mrf.mxu0
    %v1313 = vadd.f32 %v1208, %v1312
    %1314 = vmatmul.bf16.gmra.mxu0 %v1264
    %v1315 = vpop.f32.mrf.mxu0
    %v1316 = vadd.f32 %v1208, %v1315
    %v1317 = vpop.f32.mrf.mxu0
    %v1318 = vadd.f32 %v1208, %v1317
    %1319 = vmatmul.bf16.gmra.mxu0 %v1267
    %v1320 = vpop.f32.mrf.mxu0
    %v1321 = vadd.f32 %v1208, %v1320
    %v1322 = vpop.f32.mrf.mxu0
    %v1323 = vadd.f32 %v1208, %v1322
    %1324 = vmatmul.bf16.gmra.mxu0 %v1270
    %v1325 = vpop.f32.mrf.mxu0
    %v1326 = vadd.f32 %v1208, %v1325
    %v1327 = vpop.f32.mrf.mxu0
    %v1328 = vadd.f32 %v1208, %v1327
    %1329 = vmatmul.bf16.gmra.mxu0 %v1273
    %v1330 = vpop.f32.mrf.mxu0
    %v1331 = vadd.f32 %v1208, %v1330
    %v1332 = vpop.f32.mrf.mxu0
    %v1333 = vadd.f32 %v1208, %v1332
    %1334 = vmatmul.bf16.gmra.mxu0 %v1276
    %v1335 = vpop.f32.mrf.mxu0
    %v1336 = vadd.f32 %v1208, %v1335
    %v1337 = vpop.f32.mrf.mxu0
    %v1338 = vadd.f32 %v1208, %v1337
    %1339 = vmatmul.bf16.gmra.mxu0 %v1279
    %v1340 = vpop.f32.mrf.mxu0
    %v1341 = vadd.f32 %v1208, %v1340
    %v1342 = vpop.f32.mrf.mxu0
    %v1343 = vadd.f32 %v1208, %v1342
    %1344 = vmatmul.bf16.gmra.mxu0 %v1282
    %v1345 = vpop.f32.mrf.mxu0
    %v1346 = vadd.f32 %v1208, %v1345
    %v1347 = vpop.f32.mrf.mxu0
    %v1348 = vadd.f32 %v1208, %v1347
    %1349 = vmatmul.bf16.gmra.mxu0 %v1285
    %v1350 = vpop.f32.mrf.mxu0
    %v1351 = vadd.f32 %v1208, %v1350
    %v1352 = vpop.f32.mrf.mxu0
    %v1353 = vadd.f32 %v1208, %v1352
    %1354 = vmatmul.bf16.gmra.mxu0 %v1288
    %v1355 = vpop.f32.mrf.mxu0
    %v1356 = vadd.f32 %v1208, %v1355
    %v1357 = vpop.f32.mrf.mxu0
    %v1358 = vadd.f32 %v1208, %v1357
    %1359 = vdwg.mxu0
    %1360 = vmatpush.bf16.msra.mxu0 0
    %1361 = vmatpush.bf16.msra.mxu0 0
    %1362 = vmatpush.bf16.msra.mxu0 0
    %1363 = vmatpush.bf16.msra.mxu0 %v1294
    %1364 = vmatpush.bf16.msra.mxu0 %v1246
    %1365 = vmatpush.bf16.msra.mxu0 %v1244
    %1366 = vmatpush.bf16.msra.mxu0 %v1242
    %1367 = vmatpush.bf16.msra.mxu0 %v1240
    %1368 = vmatmul.bf16.gmra.mxu0 %v1258
    %v1369 = vpop.f32.mrf.mxu0
    %v1370 = vadd.f32 %v1209, %v1369
    %v1371 = vpop.f32.mrf.mxu0
    %v1372 = vadd.f32 %v1209, %v1371
    %1373 = vmatmul.bf16.gmra.mxu0 %v1261
    %v1374 = vpop.f32.mrf.mxu0
    %v1375 = vadd.f32 %v1209, %v1374
    %v1376 = vpop.f32.mrf.mxu0
    %v1377 = vadd.f32 %v1209, %v1376
    %1378 = vmatmul.bf16.gmra.mxu0 %v1264
    %v1379 = vpop.f32.mrf.mxu0
    %v1380 = vadd.f32 %v1209, %v1379
    %v1381 = vpop.f32.mrf.mxu0
    %v1382 = vadd.f32 %v1209, %v1381
    %1383 = vmatmul.bf16.gmra.mxu0 %v1267
    %v1384 = vpop.f32.mrf.mxu0
    %v1385 = vadd.f32 %v1209, %v1384
    %v1386 = vpop.f32.mrf.mxu0
    %v1387 = vadd.f32 %v1209, %v1386
    %1388 = vmatmul.bf16.gmra.mxu0 %v1270
    %v1389 = vpop.f32.mrf.mxu0
    %v1390 = vadd.f32 %v1209, %v1389
    %v1391 = vpop.f32.mrf.mxu0
    %v1392 = vadd.f32 %v1209, %v1391
    %1393 = vmatmul.bf16.gmra.mxu0 %v1273
    %v1394 = vpop.f32.mrf.mxu0
    %v1395 = vadd.f32 %v1209, %v1394
    %v1396 = vpop.f32.mrf.mxu0
    %v1397 = vadd.f32 %v1209, %v1396
    %1398 = vmatmul.bf16.gmra.mxu0 %v1276
    %v1399 = vpop.f32.mrf.mxu0
    %v1400 = vadd.f32 %v1209, %v1399
    %v1401 = vpop.f32.mrf.mxu0
    %v1402 = vadd.f32 %v1209, %v1401
    %1403 = vmatmul.bf16.gmra.mxu0 %v1279
    %v1404 = vpop.f32.mrf.mxu0
    %v1405 = vadd.f32 %v1209, %v1404
    %v1406 = vpop.f32.mrf.mxu0
    %v1407 = vadd.f32 %v1209, %v1406
    %1408 = vmatmul.bf16.gmra.mxu0 %v1282
    %v1409 = vpop.f32.mrf.mxu0
    %v1410 = vadd.f32 %v1209, %v1409
    %v1411 = vpop.f32.mrf.mxu0
    %v1412 = vadd.f32 %v1209, %v1411
    %1413 = vmatmul.bf16.gmra.mxu0 %v1285
    %v1414 = vpop.f32.mrf.mxu0
    %v1415 = vadd.f32 %v1209, %v1414
    %v1416 = vpop.f32.mrf.mxu0
    %v1417 = vadd.f32 %v1209, %v1416
    %1418 = vmatmul.bf16.gmra.mxu0 %v1288
    %v1419 = vpop.f32.mrf.mxu0
    %v1420 = vadd.f32 %v1209, %v1419
    %v1421 = vpop.f32.mrf.mxu0
    %v1422 = vadd.f32 %v1209, %v1421
    %1423 = vdwg.mxu0
    %v1424 = vmax.f32 %v1306, 0.0
    %v1425 = vmax.f32 %v1370, 0.0
    %v1426 = vmax.f32 %v1308, 0.0
    %v1427 = vmax.f32 %v1372, 0.0
    %v1428 = vmax.f32 %v1311, 0.0
    %v1429 = vmax.f32 %v1375, 0.0
    %v1430 = vmax.f32 %v1313, 0.0
    %v1431 = vmax.f32 %v1377, 0.0
    %v1432 = vmax.f32 %v1316, 0.0
    %v1433 = vmax.f32 %v1380, 0.0
    %v1434 = vmax.f32 %v1318, 0.0
    %v1435 = vmax.f32 %v1382, 0.0
    %v1436 = vmax.f32 %v1321, 0.0
    %v1437 = vmax.f32 %v1385, 0.0
    %v1438 = vmax.f32 %v1323, 0.0
    %v1439 = vmax.f32 %v1387, 0.0
    %v1440 = vmax.f32 %v1326, 0.0
    %v1441 = vmax.f32 %v1390, 0.0
    %v1442 = vmax.f32 %v1328, 0.0
    %v1443 = vmax.f32 %v1392, 0.0
    %v1444 = vmax.f32 %v1331, 0.0
    %v1445 = vmax.f32 %v1395, 0.0
    %v1446 = vmax.f32 %v1333, 0.0
    %v1447 = vmax.f32 %v1397, 0.0
    %v1448 = vmax.f32 %v1336, 0.0
    %v1449 = vmax.f32 %v1400, 0.0
    %v1450 = vmax.f32 %v1338, 0.0
    %v1451 = vmax.f32 %v1402, 0.0
    %v1452 = vmax.f32 %v1341, 0.0
    %v1453 = vmax.f32 %v1405, 0.0
    %v1454 = vmax.f32 %v1343, 0.0
    %v1455 = vmax.f32 %v1407, 0.0
    %v1456 = vmax.f32 %v1346, 0.0
    %v1457 = vmax.f32 %v1410, 0.0
    %v1458 = vmax.f32 %v1348, 0.0
    %v1459 = vmax.f32 %v1412, 0.0
    %v1460 = vmax.f32 %v1351, 0.0
    %v1461 = vmax.f32 %v1415, 0.0
    %v1462 = vmax.f32 %v1353, 0.0
    %v1463 = vmax.f32 %v1417, 0.0
    %v1464 = vmax.f32 %v1356, 0.0
    %v1465 = vmax.f32 %v1420, 0.0
    %v1466 = vmax.f32 %v1358, 0.0
    %v1467 = vmax.f32 %v1422, 0.0
    %v1469 = vperm.slane %v1168, 0
    %v1470 = vperm.slane %v1168, 1
    %v1473 = vmul.f32 %v1424, %v1469
    %v1474 = vmul.f32 %v1425, %v1470
    %v1475 = vmul.f32 %v1426, %v1469
    %v1476 = vmul.f32 %v1427, %v1470
    %v1477 = vmul.f32 %v1428, %v1469
    %v1478 = vmul.f32 %v1429, %v1470
    %v1479 = vmul.f32 %v1430, %v1469
    %v1480 = vmul.f32 %v1431, %v1470
    %v1481 = vmul.f32 %v1432, %v1469
    %v1482 = vmul.f32 %v1433, %v1470
    %v1483 = vmul.f32 %v1434, %v1469
    %v1484 = vmul.f32 %v1435, %v1470
    %v1485 = vmul.f32 %v1436, %v1469
    %v1486 = vmul.f32 %v1437, %v1470
    %v1487 = vmul.f32 %v1438, %v1469
    %v1488 = vmul.f32 %v1439, %v1470
    %v1489 = vmul.f32 %v1440, %v1469
    %v1490 = vmul.f32 %v1441, %v1470
    %v1491 = vmul.f32 %v1442, %v1469
    %v1492 = vmul.f32 %v1443, %v1470
    %v1493 = vmul.f32 %v1444, %v1469
    %v1494 = vmul.f32 %v1445, %v1470
    %v1495 = vmul.f32 %v1446, %v1469
    %v1496 = vmul.f32 %v1447, %v1470
    %v1497 = vmul.f32 %v1448, %v1469
    %v1498 = vmul.f32 %v1449, %v1470
    %v1499 = vmul.f32 %v1450, %v1469
    %v1500 = vmul.f32 %v1451, %v1470
    %v1501 = vmul.f32 %v1452, %v1469
    %v1502 = vmul.f32 %v1453, %v1470
    %v1503 = vmul.f32 %v1454, %v1469
    %v1504 = vmul.f32 %v1455, %v1470
    %v1505 = vmul.f32 %v1456, %v1469
    %v1506 = vmul.f32 %v1457, %v1470
    %v1507 = vmul.f32 %v1458, %v1469
    %v1508 = vmul.f32 %v1459, %v1470
    %v1509 = vmul.f32 %v1460, %v1469
    %v1510 = vmul.f32 %v1461, %v1470
    %v1511 = vmul.f32 %v1462, %v1469
    %v1512 = vmul.f32 %v1463, %v1470
    %v1513 = vmul.f32 %v1464, %v1469
    %v1514 = vmul.f32 %v1465, %v1470
    %v1515 = vmul.f32 %v1466, %v1469
    %v1516 = vmul.f32 %v1467, %v1470
    %v1518 = vperm.slane %v1170, 0
    %v1519 = vperm.slane %v1170, 1
    %v1522 = vadd.f32 %v1473, %v1518
    %v1523 = vadd.f32 %v1474, %v1519
    %v1524 = vadd.f32 %v1475, %v1518
    %v1525 = vadd.f32 %v1476, %v1519
    %v1526 = vadd.f32 %v1477, %v1518
    %v1527 = vadd.f32 %v1478, %v1519
    %v1528 = vadd.f32 %v1479, %v1518
    %v1529 = vadd.f32 %v1480, %v1519
    %v1530 = vadd.f32 %v1481, %v1518
    %v1531 = vadd.f32 %v1482, %v1519
    %v1532 = vadd.f32 %v1483, %v1518
    %v1533 = vadd.f32 %v1484, %v1519
    %v1534 = vadd.f32 %v1485, %v1518
    %v1535 = vadd.f32 %v1486, %v1519
    %v1536 = vadd.f32 %v1487, %v1518
    %v1537 = vadd.f32 %v1488, %v1519
    %v1538 = vadd.f32 %v1489, %v1518
    %v1539 = vadd.f32 %v1490, %v1519
    %v1540 = vadd.f32 %v1491, %v1518
    %v1541 = vadd.f32 %v1492, %v1519
    %v1542 = vadd.f32 %v1493, %v1518
    %v1543 = vadd.f32 %v1494, %v1519
    %v1544 = vadd.f32 %v1495, %v1518
    %v1545 = vadd.f32 %v1496, %v1519
    %v1546 = vadd.f32 %v1497, %v1518
    %v1547 = vadd.f32 %v1498, %v1519
    %v1548 = vadd.f32 %v1499, %v1518
    %v1549 = vadd.f32 %v1500, %v1519
    %v1550 = vadd.f32 %v1501, %v1518
    %v1551 = vadd.f32 %v1502, %v1519
    %v1552 = vadd.f32 %v1503, %v1518
    %v1553 = vadd.f32 %v1504, %v1519
    %v1554 = vadd.f32 %v1505, %v1518
    %v1555 = vadd.f32 %v1506, %v1519
    %v1556 = vadd.f32 %v1507, %v1518
    %v1557 = vadd.f32 %v1508, %v1519
    %v1558 = vadd.f32 %v1509, %v1518
    %v1559 = vadd.f32 %v1510, %v1519
    %v1560 = vadd.f32 %v1511, %v1518
    %v1561 = vadd.f32 %v1512, %v1519
    %v1562 = vadd.f32 %v1513, %v1518
    %v1563 = vadd.f32 %v1514, %v1519
    %v1564 = vadd.f32 %v1515, %v1518
    %v1565 = vadd.f32 %v1516, %v1519
    %v1566 = vmax.f32 %v1522, %v1524
    %v1567 = vmax.f32 %v1523, %v1525
    %v1568 = vmax.f32 %v1526, %v1528
    %v1569 = vmax.f32 %v1527, %v1529
    %v1570 = vmax.f32 %v1530, %v1532
    %v1571 = vmax.f32 %v1531, %v1533
    %v1572 = vmax.f32 %v1534, %v1536
    %v1573 = vmax.f32 %v1535, %v1537
    %v1574 = vmax.f32 %v1538, %v1540
    %v1575 = vmax.f32 %v1539, %v1541
    %v1576 = vmax.f32 %v1542, %v1544
    %v1577 = vmax.f32 %v1543, %v1545
    %v1578 = vmax.f32 %v1546, %v1548
    %v1579 = vmax.f32 %v1547, %v1549
    %v1580 = vmax.f32 %v1550, %v1552
    %v1581 = vmax.f32 %v1551, %v1553
    %v1582 = vmax.f32 %v1554, %v1556
    %v1583 = vmax.f32 %v1555, %v1557
    %v1584 = vmax.f32 %v1558, %v1560
    %v1585 = vmax.f32 %v1559, %v1561
    %v1586 = vmax.f32 %v1562, %v1564
    %v1587 = vmax.f32 %v1563, %v1565
    %1610 = vrot.lane.b32.xlu0 %v1566, 122
    %v1611 = vpop.permute.xlu0 %1610
    %1612 = vrot.lane.b32.xlu0 %v1567, 122
    %v1613 = vpop.permute.xlu0 %1612
    %1614 = vrot.lane.b32.xlu0 %v1568, 122
    %v1615 = vpop.permute.xlu0 %1614
    %1616 = vrot.lane.b32.xlu0 %v1569, 122
    %v1617 = vpop.permute.xlu0 %1616
    %1618 = vrot.lane.b32.xlu0 %v1570, 122
    %v1619 = vpop.permute.xlu0 %1618
    %1620 = vrot.lane.b32.xlu0 %v1571, 122
    %v1621 = vpop.permute.xlu0 %1620
    %1622 = vrot.lane.b32.xlu0 %v1572, 122
    %v1623 = vpop.permute.xlu0 %1622
    %1624 = vrot.lane.b32.xlu0 %v1573, 122
    %v1625 = vpop.permute.xlu0 %1624
    %1626 = vrot.lane.b32.xlu0 %v1574, 122
    %v1627 = vpop.permute.xlu0 %1626
    %1628 = vrot.lane.b32.xlu0 %v1575, 122
    %v1629 = vpop.permute.xlu0 %1628
    %1630 = vrot.lane.b32.xlu0 %v1576, 122
    %v1631 = vpop.permute.xlu0 %1630
    %1632 = vrot.lane.b32.xlu0 %v1577, 122
    %v1633 = vpop.permute.xlu0 %1632
    %1634 = vrot.lane.b32.xlu0 %v1578, 122
    %v1635 = vpop.permute.xlu0 %1634
    %1636 = vrot.lane.b32.xlu0 %v1579, 122
    %v1637 = vpop.permute.xlu0 %1636
    %1638 = vrot.lane.b32.xlu0 %v1580, 122
    %v1639 = vpop.permute.xlu0 %1638
    %1640 = vrot.lane.b32.xlu0 %v1581, 122
    %v1641 = vpop.permute.xlu0 %1640
    %1642 = vrot.lane.b32.xlu0 %v1582, 122
    %v1643 = vpop.permute.xlu0 %1642
    %1644 = vrot.lane.b32.xlu0 %v1583, 122
    %v1645 = vpop.permute.xlu0 %1644
    %1646 = vrot.lane.b32.xlu0 %v1584, 122
    %v1647 = vpop.permute.xlu0 %1646
    %1648 = vrot.lane.b32.xlu0 %v1585, 122
    %v1649 = vpop.permute.xlu0 %1648
    %1650 = vrot.lane.b32.xlu0 %v1586, 122
    %v1651 = vpop.permute.xlu0 %1650
    %1652 = vrot.lane.b32.xlu0 %v1587, 122
    %v1653 = vpop.permute.xlu0 %1652
    %vm1654 = vcmask 998400
    %v1655 = vsel %vm1654, %v1611, %v1613
    %v1656 = vsel %vm1654, %v1615, %v1617
    %v1657 = vsel %vm1654, %v1619, %v1621
    %v1658 = vsel %vm1654, %v1623, %v1625
    %v1659 = vsel %vm1654, %v1627, %v1629
    %v1660 = vsel %vm1654, %v1631, %v1633
    %v1661 = vsel %vm1654, %v1635, %v1637
    %v1662 = vsel %vm1654, %v1639, %v1641
    %v1663 = vsel %vm1654, %v1643, %v1645
    %v1664 = vsel %vm1654, %v1647, %v1649
    %v1665 = vsel %vm1654, %v1651, %v1653
    %v1677 = vmax.f32 %v1566, %v1655
    %v1678 = vmax.f32 %v1568, %v1656
    %v1679 = vmax.f32 %v1570, %v1657
    %v1680 = vmax.f32 %v1572, %v1658
    %v1681 = vmax.f32 %v1574, %v1659
    %v1682 = vmax.f32 %v1576, %v1660
    %v1683 = vmax.f32 %v1578, %v1661
    %v1684 = vmax.f32 %v1580, %v1662
    %v1685 = vmax.f32 %v1582, %v1663
    %v1686 = vmax.f32 %v1584, %v1664
    %v1687 = vmax.f32 %v1586, %v1665
    %s1688 = scalar_lea.vmem [#allocation7], 17
    %v1689 = vld [vmem:[%s1688] ss:$8 sm:$0x3]
    %s1690 = scalar_lea.vmem [#allocation7], 18
    %v1691 = vld [vmem:[%s1690] ss:$8 sm:$0x3]
    %s1692 = scalar_lea.vmem [#allocation7], 19
    %v1693 = vld [vmem:[%s1692] ss:$8 sm:$0x3]
    %1703 = vrot.lane.b32.xlu0 %v1678, 126
    %v1704 = vpop.permute.xlu0 %1703
    %1705 = vrot.lane.b32.xlu0 %v1679, 126
    %v1706 = vpop.permute.xlu0 %1705
    %1707 = vrot.lane.b32.xlu0 %v1680, 126
    %v1708 = vpop.permute.xlu0 %1707
    %1709 = vrot.lane.b32.xlu0 %v1681, 126
    %v1710 = vpop.permute.xlu0 %1709
    %1711 = vrot.lane.b32.xlu0 %v1682, 126
    %v1712 = vpop.permute.xlu0 %1711
    %1713 = vrot.lane.b32.xlu0 %v1683, 126
    %v1714 = vpop.permute.xlu0 %1713
    %1715 = vrot.lane.b32.xlu0 %v1684, 126
    %v1716 = vpop.permute.xlu0 %1715
    %1717 = vrot.lane.b32.xlu0 %v1685, 126
    %v1718 = vpop.permute.xlu0 %1717
    %1719 = vrot.lane.b32.xlu0 %v1686, 126
    %v1720 = vpop.permute.xlu0 %1719
    %1731 = vrot.lane.b32.xlu0 %v1679, 124
    %v1732 = vpop.permute.xlu0 %1731
    %1733 = vrot.lane.b32.xlu0 %v1680, 124
    %v1734 = vpop.permute.xlu0 %1733
    %1735 = vrot.lane.b32.xlu0 %v1681, 124
    %v1736 = vpop.permute.xlu0 %1735
    %1737 = vrot.lane.b32.xlu0 %v1682, 124
    %v1738 = vpop.permute.xlu0 %1737
    %1739 = vrot.lane.b32.xlu0 %v1683, 124
    %v1740 = vpop.permute.xlu0 %1739
    %1741 = vrot.lane.b32.xlu0 %v1684, 124
    %v1742 = vpop.permute.xlu0 %1741
    %1743 = vrot.lane.b32.xlu0 %v1685, 124
    %v1744 = vpop.permute.xlu0 %1743
    %1745 = vrot.lane.b32.xlu0 %v1686, 124
    %v1746 = vpop.permute.xlu0 %1745
    %1747 = vrot.lane.b32.xlu0 %v1687, 124
    %v1748 = vpop.permute.xlu0 %1747
    %vm1758 = vcmask 1031168
    %v1759 = vsel %vm1758, %v1677, %v1704
    %v1760 = vsel %vm1758, %v1678, %v1706
    %v1761 = vsel %vm1758, %v1679, %v1708
    %v1762 = vsel %vm1758, %v1680, %v1710
    %v1763 = vsel %vm1758, %v1681, %v1712
    %v1764 = vsel %vm1758, %v1682, %v1714
    %v1765 = vsel %vm1758, %v1683, %v1716
    %v1766 = vsel %vm1758, %v1684, %v1718
    %v1767 = vsel %vm1758, %v1685, %v1720
    %vm1768 = vcmask 1014784
    %v1769 = vsel %vm1768, %v1704, %v1732
    %v1770 = vsel %vm1768, %v1706, %v1734
    %v1771 = vsel %vm1768, %v1708, %v1736
    %v1772 = vsel %vm1768, %v1710, %v1738
    %v1773 = vsel %vm1768, %v1712, %v1740
    %v1774 = vsel %vm1768, %v1714, %v1742
    %v1775 = vsel %vm1768, %v1716, %v1744
    %v1776 = vsel %vm1768, %v1718, %v1746
    %v1777 = vsel %vm1768, %v1720, %v1748
    %v1778 = vpack.c.bf16 %v1760, %v1759
    %v1779 = vpack.c.bf16 %v1770, %v1769
    %v1780 = vpack.c.bf16 %v1734, %v1732
    %v1781 = vpack.c.bf16 %v1762, %v1761
    %v1782 = vpack.c.bf16 %v1772, %v1771
    %v1783 = vpack.c.bf16 %v1738, %v1736
    %v1784 = vpack.c.bf16 %v1764, %v1763
    %v1785 = vpack.c.bf16 %v1774, %v1773
    %v1786 = vpack.c.bf16 %v1742, %v1740
    %v1787 = vpack.c.bf16 %v1766, %v1765
    %v1788 = vpack.c.bf16 %v1776, %v1775
    %v1789 = vpack.c.bf16 %v1746, %v1744
    %v1790 = vpack.c.bf16 %v1767, %v1767
    %v1791 = vpack.c.bf16 %v1777, %v1777
    %v1792 = vpack.c.bf16 %v1748, %v1748
    %v1793 = vld [vmem:[#allocation6] sm:$0xff]
    %v1794 = vld [vmem:[#allocation6 + $0x8] sm:$0xff]
    %v1795 = vld [vmem:[#allocation6 + $0x10] sm:$0xff]
    %v1796 = vld [vmem:[#allocation6 + $0x18] sm:$0xff]
    %v1797 = vld [vmem:[#allocation6 + $0x20] sm:$0xff]
    %v1798 = vld [vmem:[#allocation6 + $0x28] sm:$0xff]
    %v1799 = vld [vmem:[#allocation6 + $0x30] sm:$0xff]
    %v1800 = vld [vmem:[#allocation6 + $0x38] sm:$0xff]
    %v1801 = vld [vmem:[#allocation6 + $0x40] sm:$0xff]
    %v1802 = vld [vmem:[#allocation6 + $0x48] sm:$0xff]
    %v1803 = vld [vmem:[#allocation6 + $0x50] sm:$0xff]
    %v1804 = vld [vmem:[#allocation6 + $0x58] sm:$0xff]
    %v1805 = vld [vmem:[#allocation6 + $0x60] sm:$0xff]
    %v1806 = vld [vmem:[#allocation6 + $0x68] sm:$0xff]
    %v1807 = vld [vmem:[#allocation6 + $0x70] sm:$0xff]
    %v1808 = vld [vmem:[#allocation6 + $0x78] sm:$0xff]
    %v1809 = vld [vmem:[#allocation6 + $0x80] sm:$0xff]
    %v1810 = vld [vmem:[#allocation6 + $0x88] sm:$0xff]
    %v1811 = vld [vmem:[#allocation6 + $0x90] sm:$0xff]
    %v1812 = vld [vmem:[#allocation6 + $0x98] sm:$0xff]
    %v1813 = vld [vmem:[#allocation6 + $0xa0] sm:$0xff]
    %v1814 = vld [vmem:[#allocation6 + $0xa8] sm:$0xff]
    %v1815 = vld [vmem:[#allocation6 + $0xb0] sm:$0xff]
    %v1816 = vld [vmem:[#allocation6 + $0xb8] sm:$0xff]
    %v1817 = vld [vmem:[#allocation6 + $0xc0] sm:$0xff]
    %v1818 = vld [vmem:[#allocation6 + $0xc8] sm:$0xff]
    %v1819 = vld [vmem:[#allocation6 + $0xd0] sm:$0xff]
    %v1820 = vld [vmem:[#allocation6 + $0xd8] sm:$0xff]
    %v1821 = vld [vmem:[#allocation6 + $0xe0] sm:$0xff]
    %v1822 = vld [vmem:[#allocation6 + $0xe8] sm:$0xff]
    %v1823 = vld [vmem:[#allocation6 + $0xf0] sm:$0xff]
    %v1824 = vld [vmem:[#allocation6 + $0xf8] sm:$0xff]
    %v1825 = vld [vmem:[#allocation6 + $0x100] sm:$0xff]
    %v1826 = vld [vmem:[#allocation6 + $0x108] sm:$0xff]
    %v1827 = vld [vmem:[#allocation6 + $0x110] sm:$0xff]
    %v1828 = vld [vmem:[#allocation6 + $0x118] sm:$0xff]
    %v1829 = vld [vmem:[#allocation6 + $0x120] sm:$0xff]
    %v1830 = vld [vmem:[#allocation6 + $0x128] sm:$0xff]
    %v1831 = vld [vmem:[#allocation6 + $0x130] sm:$0xff]
    %v1832 = vld [vmem:[#allocation6 + $0x138] sm:$0xff]
    %v1833 = vld [vmem:[#allocation6 + $0x140] sm:$0xff]
    %v1834 = vld [vmem:[#allocation6 + $0x148] sm:$0xff]
    %v1835 = vld [vmem:[#allocation6 + $0x150] sm:$0xff]
    %v1836 = vld [vmem:[#allocation6 + $0x158] sm:$0xff]
    %v1837 = vld [vmem:[#allocation6 + $0x160] sm:$0xff]
    %v1838 = vld [vmem:[#allocation6 + $0x168] sm:$0xff]
    %v1839 = vld [vmem:[#allocation6 + $0x170] sm:$0xff]
    %v1840 = vld [vmem:[#allocation6 + $0x178] sm:$0x11]
    %v1842 = vperm.slane %v1689, 0
    %v1843 = vperm.slane %v1689, 1
    %v1894 = vunpack.c.l.b16 %v1793
    %v1895 = vunpack.c.h.b16 %v1793
    %v1896 = vunpack.c.l.b16 %v1794
    %v1897 = vunpack.c.h.b16 %v1794
    %v1898 = vunpack.c.l.b16 %v1795
    %v1899 = vunpack.c.h.b16 %v1795
    %v1900 = vunpack.c.l.b16 %v1796
    %v1901 = vunpack.c.h.b16 %v1796
    %v1902 = vunpack.c.l.b16 %v1797
    %v1903 = vunpack.c.h.b16 %v1797
    %v1904 = vunpack.c.l.b16 %v1798
    %v1905 = vunpack.c.h.b16 %v1798
    %v1906 = vunpack.c.l.b16 %v1799
    %v1907 = vunpack.c.h.b16 %v1799
    %v1908 = vunpack.c.l.b16 %v1800
    %v1909 = vunpack.c.h.b16 %v1800
    %v1910 = vunpack.c.l.b16 %v1801
    %v1911 = vunpack.c.h.b16 %v1801
    %v1912 = vunpack.c.l.b16 %v1802
    %v1913 = vunpack.c.h.b16 %v1802
    %v1914 = vunpack.c.l.b16 %v1803
    %v1915 = vunpack.c.h.b16 %v1803
    %v1916 = vunpack.c.l.b16 %v1804
    %v1917 = vunpack.c.h.b16 %v1804
    %v1918 = vunpack.c.l.b16 %v1805
    %v1919 = vunpack.c.h.b16 %v1805
    %v1920 = vunpack.c.l.b16 %v1806
    %v1921 = vunpack.c.h.b16 %v1806
    %v1922 = vunpack.c.l.b16 %v1807
    %v1923 = vunpack.c.h.b16 %v1807
    %v1924 = vunpack.c.l.b16 %v1808
    %v1925 = vunpack.c.h.b16 %v1808
    %v1926 = vunpack.c.l.b16 %v1809
    %v1927 = vunpack.c.h.b16 %v1809
    %v1928 = vunpack.c.l.b16 %v1810
    %v1929 = vunpack.c.h.b16 %v1810
    %v1930 = vunpack.c.l.b16 %v1811
    %v1931 = vunpack.c.h.b16 %v1811
    %v1932 = vunpack.c.l.b16 %v1812
    %v1933 = vunpack.c.h.b16 %v1812
    %v1934 = vunpack.c.l.b16 %v1813
    %v1935 = vunpack.c.h.b16 %v1813
    %v1936 = vunpack.c.l.b16 %v1814
    %v1937 = vunpack.c.h.b16 %v1814
    %v1938 = vunpack.c.l.b16 %v1815
    %v1939 = vunpack.c.h.b16 %v1815
    %v1940 = vunpack.c.l.b16 %v1816
    %v1941 = vunpack.c.h.b16 %v1816
    %v1942 = vunpack.c.l.b16 %v1817
    %v1943 = vunpack.c.h.b16 %v1817
    %v1944 = vunpack.c.l.b16 %v1818
    %v1945 = vunpack.c.h.b16 %v1818
    %v1946 = vunpack.c.l.b16 %v1819
    %v1947 = vunpack.c.h.b16 %v1819
    %v1948 = vunpack.c.l.b16 %v1820
    %v1949 = vunpack.c.h.b16 %v1820
    %v1950 = vunpack.c.l.b16 %v1821
    %v1951 = vunpack.c.h.b16 %v1821
    %v1952 = vunpack.c.l.b16 %v1822
    %v1953 = vunpack.c.h.b16 %v1822
    %v1954 = vunpack.c.l.b16 %v1823
    %v1955 = vunpack.c.h.b16 %v1823
    %v1956 = vunpack.c.l.b16 %v1824
    %v1957 = vunpack.c.h.b16 %v1824
    %v1958 = vunpack.c.l.b16 %v1825
    %v1959 = vunpack.c.h.b16 %v1825
    %v1960 = vunpack.c.l.b16 %v1826
    %v1961 = vunpack.c.h.b16 %v1826
    %v1962 = vunpack.c.l.b16 %v1827
    %v1963 = vunpack.c.h.b16 %v1827
    %v1964 = vunpack.c.l.b16 %v1828
    %v1965 = vunpack.c.h.b16 %v1828
    %v1966 = vunpack.c.l.b16 %v1829
    %v1967 = vunpack.c.h.b16 %v1829
    %v1968 = vunpack.c.l.b16 %v1830
    %v1969 = vunpack.c.h.b16 %v1830
    %v1970 = vunpack.c.l.b16 %v1831
    %v1971 = vunpack.c.h.b16 %v1831
    %v1972 = vunpack.c.l.b16 %v1832
    %v1973 = vunpack.c.h.b16 %v1832
    %v1974 = vunpack.c.l.b16 %v1833
    %v1975 = vunpack.c.h.b16 %v1833
    %v1976 = vunpack.c.l.b16 %v1834
    %v1977 = vunpack.c.h.b16 %v1834
    %v1978 = vunpack.c.l.b16 %v1835
    %v1979 = vunpack.c.h.b16 %v1835
    %v1980 = vunpack.c.l.b16 %v1836
    %v1981 = vunpack.c.h.b16 %v1836
    %v1982 = vunpack.c.l.b16 %v1837
    %v1983 = vunpack.c.h.b16 %v1837
    %v1984 = vunpack.c.l.b16 %v1838
    %v1985 = vunpack.c.h.b16 %v1838
    %v1986 = vunpack.c.l.b16 %v1839
    %v1987 = vunpack.c.h.b16 %v1839
    %v1988 = vunpack.c.l.b16 %v1840
    %v1989 = vunpack.c.h.b16 %v1840
    %v1990 = vpack.c.b16 %v1896, %v1894
    %v1991 = vpack.c.b16 %v1897, %v1895
    %v1992 = vpack.c.b16 %v1900, %v1898
    %v1993 = vpack.c.b16 %v1901, %v1899
    %v1994 = vpack.c.b16 %v1904, %v1902
    %v1995 = vpack.c.b16 %v1905, %v1903
    %v1996 = vpack.c.b16 %v1908, %v1906
    %v1997 = vpack.c.b16 %v1909, %v1907
    %v1998 = vpack.c.b16 %v1912, %v1910
    %v1999 = vpack.c.b16 %v1913, %v1911
    %v2000 = vpack.c.b16 %v1916, %v1914
    %v2001 = vpack.c.b16 %v1917, %v1915
    %v2002 = vpack.c.b16 %v1920, %v1918
    %v2003 = vpack.c.b16 %v1921, %v1919
    %v2004 = vpack.c.b16 %v1924, %v1922
    %v2005 = vpack.c.b16 %v1925, %v1923
    %v2006 = vpack.c.b16 %v1928, %v1926
    %v2007 = vpack.c.b16 %v1929, %v1927
    %v2008 = vpack.c.b16 %v1932, %v1930
    %v2009 = vpack.c.b16 %v1933, %v1931
    %v2010 = vpack.c.b16 %v1936, %v1934
    %v2011 = vpack.c.b16 %v1937, %v1935
    %v2012 = vpack.c.b16 %v1940, %v1938
    %v2013 = vpack.c.b16 %v1941, %v1939
    %v2014 = vpack.c.b16 %v1944, %v1942
    %v2015 = vpack.c.b16 %v1945, %v1943
    %v2016 = vpack.c.b16 %v1948, %v1946
    %v2017 = vpack.c.b16 %v1949, %v1947
    %v2018 = vpack.c.b16 %v1952, %v1950
    %v2019 = vpack.c.b16 %v1953, %v1951
    %v2020 = vpack.c.b16 %v1956, %v1954
    %v2021 = vpack.c.b16 %v1957, %v1955
    %v2022 = vpack.c.b16 %v1960, %v1958
    %v2023 = vpack.c.b16 %v1961, %v1959
    %v2024 = vpack.c.b16 %v1964, %v1962
    %v2025 = vpack.c.b16 %v1965, %v1963
    %v2026 = vpack.c.b16 %v1968, %v1966
    %v2027 = vpack.c.b16 %v1969, %v1967
    %v2028 = vpack.c.b16 %v1972, %v1970
    %v2029 = vpack.c.b16 %v1973, %v1971
    %v2030 = vpack.c.b16 %v1976, %v1974
    %v2031 = vpack.c.b16 %v1977, %v1975
    %v2032 = vpack.c.b16 %v1980, %v1978
    %v2033 = vpack.c.b16 %v1981, %v1979
    %v2034 = vpack.c.b16 %v1984, %v1982
    %v2035 = vpack.c.b16 %v1985, %v1983
    %v2036 = vpack.c.b16 %v1988, %v1986
    %v2037 = vpack.c.b16 %v1989, %v1987
    %v2085 = vsel %vm1654, %v1780, 0
    %v2088 = vsel %vm1654, %v1783, 0
    %v2091 = vsel %vm1654, %v1786, 0
    %v2094 = vsel %vm1654, %v1789, 0
    %v2097 = vsel %vm1654, %v1792, 0
    %vm2099 = vcmask 1044480
    %v2101 = vsel %vm2099, %v2036, 0
    %v2104 = vsel %vm2099, %v2037, 0
    %2106 = vmatpush.bf16.msra.mxu0 %v2004
    %2107 = vmatpush.bf16.msra.mxu0 %v2002
    %2108 = vmatpush.bf16.msra.mxu0 %v2000
    %2109 = vmatpush.bf16.msra.mxu0 %v1998
    %2110 = vmatpush.bf16.msra.mxu0 %v1996
    %2111 = vmatpush.bf16.msra.mxu0 %v1994
    %2112 = vmatpush.bf16.msra.mxu0 %v1992
    %2113 = vmatpush.bf16.msra.mxu0 %v1990
    %2114 = vmatmul.bf16.gmra.mxu0 %v1778
    %v2115 = vpop.f32.mrf.mxu0
    %v2116 = vadd.f32 %v1842, %v2115
    %v2117 = vpop.f32.mrf.mxu0
    %v2118 = vadd.f32 %v1842, %v2117
    %2119 = vmatmul.bf16.gmra.mxu0 %v1781
    %v2120 = vpop.f32.mrf.mxu0
    %v2121 = vadd.f32 %v1842, %v2120
    %v2122 = vpop.f32.mrf.mxu0
    %v2123 = vadd.f32 %v1842, %v2122
    %2124 = vmatmul.bf16.gmra.mxu0 %v1784
    %v2125 = vpop.f32.mrf.mxu0
    %v2126 = vadd.f32 %v1842, %v2125
    %v2127 = vpop.f32.mrf.mxu0
    %v2128 = vadd.f32 %v1842, %v2127
    %2129 = vmatmul.bf16.gmra.mxu0 %v1787
    %v2130 = vpop.f32.mrf.mxu0
    %v2131 = vadd.f32 %v1842, %v2130
    %v2132 = vpop.f32.mrf.mxu0
    %v2133 = vadd.f32 %v1842, %v2132
    %2134 = vmatmul.bf16.gmra.mxu0 %v1790
    %v2135 = vpop.f32.mrf.mxu0
    %v2136 = vpop.f32.mrf.mxu0
    %2137 = vdwg.mxu0
    %2138 = vmatpush.bf16.msra.mxu0 %v2020
    %2139 = vmatpush.bf16.msra.mxu0 %v2018
    %2140 = vmatpush.bf16.msra.mxu0 %v2016
    %2141 = vmatpush.bf16.msra.mxu0 %v2014
    %2142 = vmatpush.bf16.msra.mxu0 %v2012
    %2143 = vmatpush.bf16.msra.mxu0 %v2010
    %2144 = vmatpush.bf16.msra.mxu0 %v2008
    %2145 = vmatpush.bf16.msra.mxu0 %v2006
    %2146 = vmatmul.bf16.gmra.mxu0 %v1779
    %v2147 = vpop.f32.mrf.mxu0
    %v2148 = vadd.f32 %v2116, %v2147
    %v2149 = vpop.f32.mrf.mxu0
    %v2150 = vadd.f32 %v2118, %v2149
    %2151 = vmatmul.bf16.gmra.mxu0 %v1782
    %v2152 = vpop.f32.mrf.mxu0
    %v2153 = vadd.f32 %v2121, %v2152
    %v2154 = vpop.f32.mrf.mxu0
    %v2155 = vadd.f32 %v2123, %v2154
    %2156 = vmatmul.bf16.gmra.mxu0 %v1785
    %v2157 = vpop.f32.mrf.mxu0
    %v2158 = vadd.f32 %v2126, %v2157
    %v2159 = vpop.f32.mrf.mxu0
    %v2160 = vadd.f32 %v2128, %v2159
    %2161 = vmatmul.bf16.gmra.mxu0 %v1788
    %v2162 = vpop.f32.mrf.mxu0
    %v2163 = vadd.f32 %v2131, %v2162
    %v2164 = vpop.f32.mrf.mxu0
    %v2165 = vadd.f32 %v2133, %v2164
    %2166 = vmatmul.bf16.gmra.mxu0 %v1791
    %v2167 = vpop.f32.mrf.mxu0
    %v2168 = vpop.f32.mrf.mxu0
    %2169 = vdwg.mxu0
    %2170 = vmatpush.bf16.msra.mxu0 %v2101
    %2171 = vmatpush.bf16.msra.mxu0 %v2034
    %2172 = vmatpush.bf16.msra.mxu0 %v2032
    %2173 = vmatpush.bf16.msra.mxu0 %v2030
    %2174 = vmatpush.bf16.msra.mxu0 %v2028
    %2175 = vmatpush.bf16.msra.mxu0 %v2026
    %2176 = vmatpush.bf16.msra.mxu0 %v2024
    %2177 = vmatpush.bf16.msra.mxu0 %v2022
    %2178 = vmatmul.bf16.gmra.mxu0 %v2085
    %v2179 = vpop.f32.mrf.mxu0
    %v2180 = vadd.f32 %v2148, %v2179
    %v2181 = vpop.f32.mrf.mxu0
    %v2182 = vadd.f32 %v2150, %v2181
    %2183 = vmatmul.bf16.gmra.mxu0 %v2088
    %v2184 = vpop.f32.mrf.mxu0
    %v2185 = vadd.f32 %v2153, %v2184
    %v2186 = vpop.f32.mrf.mxu0
    %v2187 = vadd.f32 %v2155, %v2186
    %2188 = vmatmul.bf16.gmra.mxu0 %v2091
    %v2189 = vpop.f32.mrf.mxu0
    %v2190 = vadd.f32 %v2158, %v2189
    %v2191 = vpop.f32.mrf.mxu0
    %v2192 = vadd.f32 %v2160, %v2191
    %2193 = vmatmul.bf16.gmra.mxu0 %v2094
    %v2194 = vpop.f32.mrf.mxu0
    %v2195 = vadd.f32 %v2163, %v2194
    %v2196 = vpop.f32.mrf.mxu0
    %v2197 = vadd.f32 %v2165, %v2196
    %2198 = vmatmul.bf16.gmra.mxu0 %v2097
    %v2199 = vpop.f32.mrf.mxu0
    %v2200 = vpop.f32.mrf.mxu0
    %2201 = vdwg.mxu0
    %2202 = vmatpush.bf16.msra.mxu0 %v2005
    %2203 = vmatpush.bf16.msra.mxu0 %v2003
    %2204 = vmatpush.bf16.msra.mxu0 %v2001
    %2205 = vmatpush.bf16.msra.mxu0 %v1999
    %2206 = vmatpush.bf16.msra.mxu0 %v1997
    %2207 = vmatpush.bf16.msra.mxu0 %v1995
    %2208 = vmatpush.bf16.msra.mxu0 %v1993
    %2209 = vmatpush.bf16.msra.mxu0 %v1991
    %2210 = vmatmul.bf16.gmra.mxu0 %v1778
    %v2211 = vpop.f32.mrf.mxu0
    %v2212 = vadd.f32 %v1843, %v2211
    %v2213 = vpop.f32.mrf.mxu0
    %v2214 = vadd.f32 %v1843, %v2213
    %2215 = vmatmul.bf16.gmra.mxu0 %v1781
    %v2216 = vpop.f32.mrf.mxu0
    %v2217 = vadd.f32 %v1843, %v2216
    %v2218 = vpop.f32.mrf.mxu0
    %v2219 = vadd.f32 %v1843, %v2218
    %2220 = vmatmul.bf16.gmra.mxu0 %v1784
    %v2221 = vpop.f32.mrf.mxu0
    %v2222 = vadd.f32 %v1843, %v2221
    %v2223 = vpop.f32.mrf.mxu0
    %v2224 = vadd.f32 %v1843, %v2223
    %2225 = vmatmul.bf16.gmra.mxu0 %v1787
    %v2226 = vpop.f32.mrf.mxu0
    %v2227 = vadd.f32 %v1843, %v2226
    %v2228 = vpop.f32.mrf.mxu0
    %v2229 = vadd.f32 %v1843, %v2228
    %2230 = vmatmul.bf16.gmra.mxu0 %v1790
    %v2231 = vpop.f32.mrf.mxu0
    %v2232 = vpop.f32.mrf.mxu0
    %2233 = vdwg.mxu0
    %2234 = vmatpush.bf16.msra.mxu0 %v2021
    %2235 = vmatpush.bf16.msra.mxu0 %v2019
    %2236 = vmatpush.bf16.msra.mxu0 %v2017
    %2237 = vmatpush.bf16.msra.mxu0 %v2015
    %2238 = vmatpush.bf16.msra.mxu0 %v2013
    %2239 = vmatpush.bf16.msra.mxu0 %v2011
    %2240 = vmatpush.bf16.msra.mxu0 %v2009
    %2241 = vmatpush.bf16.msra.mxu0 %v2007
    %2242 = vmatmul.bf16.gmra.mxu0 %v1779
    %v2243 = vpop.f32.mrf.mxu0
    %v2244 = vadd.f32 %v2212, %v2243
    %v2245 = vpop.f32.mrf.mxu0
    %v2246 = vadd.f32 %v2214, %v2245
    %2247 = vmatmul.bf16.gmra.mxu0 %v1782
    %v2248 = vpop.f32.mrf.mxu0
    %v2249 = vadd.f32 %v2217, %v2248
    %v2250 = vpop.f32.mrf.mxu0
    %v2251 = vadd.f32 %v2219, %v2250
    %2252 = vmatmul.bf16.gmra.mxu0 %v1785
    %v2253 = vpop.f32.mrf.mxu0
    %v2254 = vadd.f32 %v2222, %v2253
    %v2255 = vpop.f32.mrf.mxu0
    %v2256 = vadd.f32 %v2224, %v2255
    %2257 = vmatmul.bf16.gmra.mxu0 %v1788
    %v2258 = vpop.f32.mrf.mxu0
    %v2259 = vadd.f32 %v2227, %v2258
    %v2260 = vpop.f32.mrf.mxu0
    %v2261 = vadd.f32 %v2229, %v2260
    %2262 = vmatmul.bf16.gmra.mxu0 %v1791
    %v2263 = vpop.f32.mrf.mxu0
    %v2264 = vpop.f32.mrf.mxu0
    %2265 = vdwg.mxu0
    %2266 = vmatpush.bf16.msra.mxu0 %v2104
    %2267 = vmatpush.bf16.msra.mxu0 %v2035
    %2268 = vmatpush.bf16.msra.mxu0 %v2033
    %2269 = vmatpush.bf16.msra.mxu0 %v2031
    %2270 = vmatpush.bf16.msra.mxu0 %v2029
    %2271 = vmatpush.bf16.msra.mxu0 %v2027
    %2272 = vmatpush.bf16.msra.mxu0 %v2025
    %2273 = vmatpush.bf16.msra.mxu0 %v2023
    %2274 = vmatmul.bf16.gmra.mxu0 %v2085
    %v2275 = vpop.f32.mrf.mxu0
    %v2276 = vadd.f32 %v2244, %v2275
    %v2277 = vpop.f32.mrf.mxu0
    %v2278 = vadd.f32 %v2246, %v2277
    %2279 = vmatmul.bf16.gmra.mxu0 %v2088
    %v2280 = vpop.f32.mrf.mxu0
    %v2281 = vadd.f32 %v2249, %v2280
    %v2282 = vpop.f32.mrf.mxu0
    %v2283 = vadd.f32 %v2251, %v2282
    %2284 = vmatmul.bf16.gmra.mxu0 %v2091
    %v2285 = vpop.f32.mrf.mxu0
    %v2286 = vadd.f32 %v2254, %v2285
    %v2287 = vpop.f32.mrf.mxu0
    %v2288 = vadd.f32 %v2256, %v2287
    %2289 = vmatmul.bf16.gmra.mxu0 %v2094
    %v2290 = vpop.f32.mrf.mxu0
    %v2291 = vadd.f32 %v2259, %v2290
    %v2292 = vpop.f32.mrf.mxu0
    %v2293 = vadd.f32 %v2261, %v2292
    %2294 = vmatmul.bf16.gmra.mxu0 %v2097
    %v2295 = vpop.f32.mrf.mxu0
    %v2296 = vpop.f32.mrf.mxu0
    %2297 = vdwg.mxu0
    %v2298 = vmax.f32 %v2180, 0.0
    %v2299 = vmax.f32 %v2276, 0.0
    %v2300 = vmax.f32 %v2182, 0.0
    %v2301 = vmax.f32 %v2278, 0.0
    %v2302 = vmax.f32 %v2185, 0.0
    %v2303 = vmax.f32 %v2281, 0.0
    %v2304 = vmax.f32 %v2187, 0.0
    %v2305 = vmax.f32 %v2283, 0.0
    %v2306 = vmax.f32 %v2190, 0.0
    %v2307 = vmax.f32 %v2286, 0.0
    %v2308 = vmax.f32 %v2192, 0.0
    %v2309 = vmax.f32 %v2288, 0.0
    %v2310 = vmax.f32 %v2195, 0.0
    %v2311 = vmax.f32 %v2291, 0.0
    %v2312 = vmax.f32 %v2197, 0.0
    %v2313 = vmax.f32 %v2293, 0.0
    %v2315 = vperm.slane %v1691, 0
    %v2316 = vperm.slane %v1691, 1
    %v2319 = vmul.f32 %v2298, %v2315
    %v2320 = vmul.f32 %v2299, %v2316
    %v2321 = vmul.f32 %v2300, %v2315
    %v2322 = vmul.f32 %v2301, %v2316
    %v2323 = vmul.f32 %v2302, %v2315
    %v2324 = vmul.f32 %v2303, %v2316
    %v2325 = vmul.f32 %v2304, %v2315
    %v2326 = vmul.f32 %v2305, %v2316
    %v2327 = vmul.f32 %v2306, %v2315
    %v2328 = vmul.f32 %v2307, %v2316
    %v2329 = vmul.f32 %v2308, %v2315
    %v2330 = vmul.f32 %v2309, %v2316
    %v2331 = vmul.f32 %v2310, %v2315
    %v2332 = vmul.f32 %v2311, %v2316
    %v2333 = vmul.f32 %v2312, %v2315
    %v2334 = vmul.f32 %v2313, %v2316
    %v2336 = vperm.slane %v1693, 0
    %v2337 = vperm.slane %v1693, 1
    %v2340 = vadd.f32 %v2319, %v2336
    %v2341 = vadd.f32 %v2320, %v2337
    %v2342 = vadd.f32 %v2321, %v2336
    %v2343 = vadd.f32 %v2322, %v2337
    %v2344 = vadd.f32 %v2323, %v2336
    %v2345 = vadd.f32 %v2324, %v2337
    %v2346 = vadd.f32 %v2325, %v2336
    %v2347 = vadd.f32 %v2326, %v2337
    %v2348 = vadd.f32 %v2327, %v2336
    %v2349 = vadd.f32 %v2328, %v2337
    %v2350 = vadd.f32 %v2329, %v2336
    %v2351 = vadd.f32 %v2330, %v2337
    %v2352 = vadd.f32 %v2331, %v2336
    %v2353 = vadd.f32 %v2332, %v2337
    %v2354 = vadd.f32 %v2333, %v2336
    %v2355 = vadd.f32 %v2334, %v2337
    %v2356 = vmax.f32 %v2340, %v2342
    %v2357 = vmax.f32 %v2341, %v2343
    %v2358 = vmax.f32 %v2344, %v2346
    %v2359 = vmax.f32 %v2345, %v2347
    %v2360 = vmax.f32 %v2348, %v2350
    %v2361 = vmax.f32 %v2349, %v2351
    %v2362 = vmax.f32 %v2352, %v2354
    %v2363 = vmax.f32 %v2353, %v2355
    %2372 = vrot.lane.b32.xlu0 %v2356, 112
    %v2373 = vpop.permute.xlu0 %2372
    %2374 = vrot.lane.b32.xlu0 %v2357, 112
    %v2375 = vpop.permute.xlu0 %2374
    %2376 = vrot.lane.b32.xlu0 %v2358, 112
    %v2377 = vpop.permute.xlu0 %2376
    %2378 = vrot.lane.b32.xlu0 %v2359, 112
    %v2379 = vpop.permute.xlu0 %2378
    %2380 = vrot.lane.b32.xlu0 %v2360, 112
    %v2381 = vpop.permute.xlu0 %2380
    %2382 = vrot.lane.b32.xlu0 %v2361, 112
    %v2383 = vpop.permute.xlu0 %2382
    %2384 = vrot.lane.b32.xlu0 %v2362, 112
    %v2385 = vpop.permute.xlu0 %2384
    %2386 = vrot.lane.b32.xlu0 %v2363, 112
    %v2387 = vpop.permute.xlu0 %2386
    %vm2388 = vcmask 916480
    %v2389 = vsel %vm2388, %v2373, %v2375
    %v2390 = vsel %vm2388, %v2377, %v2379
    %v2391 = vsel %vm2388, %v2381, %v2383
    %v2392 = vsel %vm2388, %v2385, %v2387
    %v2397 = vmax.f32 %v2356, %v2389
    %v2398 = vmax.f32 %v2358, %v2390
    %v2399 = vmax.f32 %v2360, %v2391
    %v2400 = vmax.f32 %v2362, %v2392
    %2402 = vrot.lane.b32.xlu0 %v1162, 112
    %v2403 = vpop.permute.xlu0 %2402
    %2406 = vrot.lane.b32.xlu0 %v1163, 96
    %v2407 = vpop.permute.xlu0 %2406
    %2410 = vrot.lane.b32.xlu0 %v1164, 80
    %v2411 = vpop.permute.xlu0 %2410
    %2414 = vrot.lane.b32.xlu0 %v2397, 64
    %v2415 = vpop.permute.xlu0 %2414
    %2418 = vrot.lane.b32.xlu0 %v2398, 64
    %v2419 = vpop.permute.xlu0 %2418
    %2422 = vrot.lane.b32.xlu0 %v2399, 64
    %v2423 = vpop.permute.xlu0 %2422
    %2426 = vrot.lane.b32.xlu0 %v2400, 64
    %v2427 = vpop.permute.xlu0 %2426
    %v2429 = vsel %vm2388, %v1161, %v2403
    %v2430 = vsel %vm446, %v2403, %v2407
    %vm2431 = vcmask 654336
    %v2432 = vsel %vm2431, %v2407, %v2411
    %vm2433 = vcmask 523264
    %v2434 = vsel %vm2433, %v2411, %v2415
    %v2435 = vsel %vm2433, %v2415, %v2419
    %v2436 = vsel %vm2433, %v2419, %v2423
    %v2437 = vsel %vm2433, %v2423, %v2427
    %v2438 = vld [vmem:[#allocation7 + $0x14] ss:$0 sm:$0xff]
    %v2439 = vld [vmem:[#allocation7 + $0x15] ss:$0 sm:$0xff]
    %v2440 = vld [vmem:[#allocation7 + $0x16] ss:$0 sm:$0xff]
    %v2441 = vpack.c.bf16 %v2429, %v2429
    %v2442 = vpack.c.bf16 %v2430, %v2430
    %v2443 = vpack.c.bf16 %v2432, %v2432
    %v2444 = vpack.c.bf16 %v2434, %v2434
    %v2445 = vpack.c.bf16 %v2435, %v2435
    %v2446 = vpack.c.bf16 %v2436, %v2436
    %v2447 = vpack.c.bf16 %v2437, %v2437
    %v2448 = vpack.c.bf16 %v2427, %v2427
    %v2449 = vld [vmem:[%s5] sm:$0xf]
    %v2450 = vld [vmem:[%s5 + $0x4] sm:$0xf]
    %v2451 = vld [vmem:[%s5 + $0x8] sm:$0xf]
    %v2452 = vld [vmem:[%s5 + $0xc] sm:$0xf]
    %v2453 = vld [vmem:[%s5 + $0x10] sm:$0xf]
    %v2454 = vld [vmem:[%s5 + $0x14] sm:$0xf]
    %v2455 = vld [vmem:[%s5 + $0x18] sm:$0xf]
    %v2456 = vld [vmem:[%s5 + $0x1c] sm:$0xf]
    %v2457 = vld [vmem:[%s5 + $0x20] sm:$0xf]
    %v2458 = vld [vmem:[%s5 + $0x24] sm:$0xf]
    %v2459 = vld [vmem:[%s5 + $0x28] sm:$0xf]
    %v2460 = vld [vmem:[%s5 + $0x2c] sm:$0xf]
    %v2461 = vld [vmem:[%s5 + $0x30] sm:$0xf]
    %v2462 = vld [vmem:[%s5 + $0x34] sm:$0xf]
    %v2463 = vld [vmem:[%s5 + $0x38] sm:$0xf]
    %v2464 = vld [vmem:[%s5 + $0x3c] sm:$0xf]
    %v2465 = vld [vmem:[%s5 + $0x40] sm:$0xf]
    %v2466 = vld [vmem:[%s5 + $0x44] sm:$0xf]
    %v2467 = vld [vmem:[%s5 + $0x48] sm:$0xf]
    %v2468 = vld [vmem:[%s5 + $0x4c] sm:$0xf]
    %v2469 = vld [vmem:[%s5 + $0x50] sm:$0xf]
    %v2470 = vld [vmem:[%s5 + $0x54] sm:$0xf]
    %v2471 = vld [vmem:[%s5 + $0x58] sm:$0xf]
    %v2472 = vld [vmem:[%s5 + $0x5c] sm:$0xf]
    %v2473 = vld [vmem:[%s5 + $0x60] sm:$0xf]
    %v2474 = vld [vmem:[%s5 + $0x64] sm:$0xf]
    %v2475 = vld [vmem:[%s5 + $0x68] sm:$0xf]
    %v2476 = vld [vmem:[%s5 + $0x6c] sm:$0xf]
    %v2477 = vld [vmem:[%s5 + $0x70] sm:$0xf]
    %v2478 = vld [vmem:[%s5 + $0x74] sm:$0xf]
    %v2479 = vld [vmem:[%s5 + $0x78] sm:$0xf]
    %v2480 = vld [vmem:[%s5 + $0x7c] sm:$0xf]
    %v2481 = vld [vmem:[%s5 + $0x80] sm:$0xf]
    %v2482 = vld [vmem:[%s5 + $0x84] sm:$0xf]
    %v2483 = vld [vmem:[%s5 + $0x88] sm:$0xf]
    %v2484 = vld [vmem:[%s5 + $0x8c] sm:$0xf]
    %v2485 = vld [vmem:[%s5 + $0x90] sm:$0xf]
    %v2486 = vld [vmem:[%s5 + $0x94] sm:$0xf]
    %v2487 = vld [vmem:[%s5 + $0x98] sm:$0xf]
    %v2488 = vld [vmem:[%s5 + $0x9c] sm:$0xf]
    %v2489 = vld [vmem:[%s5 + $0xa0] sm:$0xf]
    %v2490 = vld [vmem:[%s5 + $0xa4] sm:$0xf]
    %v2491 = vld [vmem:[%s5 + $0xa8] sm:$0xf]
    %v2492 = vld [vmem:[%s5 + $0xac] sm:$0xf]
    %v2493 = vld [vmem:[%s5 + $0xb0] sm:$0xf]
    %v2494 = vld [vmem:[%s5 + $0xb4] sm:$0xf]
    %v2495 = vld [vmem:[%s5 + $0xb8] sm:$0xf]
    %v2496 = vld [vmem:[%s5 + $0xbc] sm:$0xf]
    %v2497 = vld [vmem:[%s5 + $0xc0] sm:$0xf]
    %v2498 = vld [vmem:[%s5 + $0xc4] sm:$0xf]
    %v2499 = vld [vmem:[%s5 + $0xc8] sm:$0xf]
    %v2500 = vld [vmem:[%s5 + $0xcc] sm:$0xf]
    %v2501 = vld [vmem:[%s5 + $0xd0] sm:$0xf]
    %v2502 = vld [vmem:[%s5 + $0xd4] sm:$0xf]
    %v2503 = vld [vmem:[%s5 + $0xd8] sm:$0xf]
    %v2504 = vld [vmem:[%s5 + $0xdc] sm:$0xf]
    %v2505 = vld [vmem:[%s5 + $0xe0] sm:$0xf]
    %v2506 = vld [vmem:[%s5 + $0xe4] sm:$0xf]
    %v2507 = vld [vmem:[%s5 + $0xe8] sm:$0xf]
    %v2508 = vld [vmem:[%s5 + $0xec] sm:$0xf]
    %v2509 = vld [vmem:[%s5 + $0xf0] sm:$0xf]
    %v2510 = vld [vmem:[%s5 + $0xf4] sm:$0xf]
    %v2511 = vld [vmem:[%s5 + $0xf8] sm:$0xf]
    %v2512 = vld [vmem:[%s5 + $0xfc] sm:$0xf]
    %v2513 = vld [vmem:[%s5 + $0x100] sm:$0xf]
    %v2514 = vld [vmem:[%s5 + $0x104] sm:$0xf]
    %v2515 = vld [vmem:[%s5 + $0x108] sm:$0xf]
    %v2516 = vld [vmem:[%s5 + $0x10c] sm:$0xf]
    %v2517 = vld [vmem:[%s5 + $0x110] sm:$0xf]
    %v2518 = vld [vmem:[%s5 + $0x114] sm:$0xf]
    %v2519 = vld [vmem:[%s5 + $0x118] sm:$0xf]
    %v2520 = vld [vmem:[%s5 + $0x11c] sm:$0xf]
    %v2521 = vld [vmem:[%s5 + $0x120] sm:$0xf]
    %v2522 = vld [vmem:[%s5 + $0x124] sm:$0xf]
    %v2523 = vld [vmem:[%s5 + $0x128] sm:$0xf]
    %v2524 = vld [vmem:[%s5 + $0x12c] sm:$0xf]
    %v2525 = vld [vmem:[%s5 + $0x130] sm:$0xf]
    %v2526 = vld [vmem:[%s5 + $0x134] sm:$0xf]
    %v2527 = vld [vmem:[%s5 + $0x138] sm:$0xf]
    %v2528 = vld [vmem:[%s5 + $0x13c] sm:$0xf]
    %v2529 = vld [vmem:[%s5 + $0x140] sm:$0xf]
    %v2530 = vld [vmem:[%s5 + $0x144] sm:$0xf]
    %v2531 = vld [vmem:[%s5 + $0x148] sm:$0xf]
    %v2532 = vld [vmem:[%s5 + $0x14c] sm:$0xf]
    %v2533 = vld [vmem:[%s5 + $0x150] sm:$0xf]
    %v2534 = vld [vmem:[%s5 + $0x154] sm:$0xf]
    %v2535 = vld [vmem:[%s5 + $0x158] sm:$0xf]
    %v2536 = vld [vmem:[%s5 + $0x15c] sm:$0xf]
    %v2537 = vld [vmem:[%s5 + $0x160] sm:$0xf]
    %v2538 = vld [vmem:[%s5 + $0x164] sm:$0xf]
    %v2539 = vld [vmem:[%s5 + $0x168] sm:$0xf]
    %v2540 = vld [vmem:[%s5 + $0x16c] sm:$0xf]
    %v2541 = vld [vmem:[%s5 + $0x170] sm:$0xf]
    %v2542 = vld [vmem:[%s5 + $0x174] sm:$0xf]
    %v2543 = vld [vmem:[%s5 + $0x178] sm:$0xf]
    %v2544 = vld [vmem:[%s5 + $0x17c] sm:$0xf]
    %v2545 = vld [vmem:[%s5 + $0x180] sm:$0xf]
    %v2546 = vld [vmem:[%s5 + $0x184] sm:$0xf]
    %v2547 = vld [vmem:[%s5 + $0x188] sm:$0xf]
    %v2548 = vld [vmem:[%s5 + $0x18c] sm:$0xf]
    %v2549 = vld [vmem:[%s5 + $0x190] sm:$0xf]
    %v2550 = vld [vmem:[%s5 + $0x194] sm:$0xf]
    %v2551 = vld [vmem:[%s5 + $0x198] sm:$0xf]
    %v2552 = vld [vmem:[%s5 + $0x19c] sm:$0xf]
    %v2553 = vld [vmem:[%s5 + $0x1a0] sm:$0xf]
    %v2554 = vld [vmem:[%s5 + $0x1a4] sm:$0xf]
    %v2555 = vld [vmem:[%s5 + $0x1a8] sm:$0xf]
    %v2556 = vld [vmem:[%s5 + $0x1ac] sm:$0xf]
    %v2557 = vld [vmem:[%s5 + $0x1b0] sm:$0xf]
    %v2558 = vld [vmem:[%s5 + $0x1b4] sm:$0xf]
    %v2559 = vld [vmem:[%s5 + $0x1b8] sm:$0xf]
    %v2560 = vld [vmem:[%s5 + $0x1bc] sm:$0xf]
    %v2561 = vld [vmem:[%s5 + $0x1c0] sm:$0xf]
    %v2562 = vld [vmem:[%s5 + $0x1c4] sm:$0xf]
    %v2563 = vld [vmem:[%s5 + $0x1c8] sm:$0xf]
    %v2564 = vld [vmem:[%s5 + $0x1cc] sm:$0xf]
    %v2565 = vld [vmem:[%s5 + $0x1d0] sm:$0xf]
    %v2566 = vld [vmem:[%s5 + $0x1d4] sm:$0xf]
    %v2567 = vld [vmem:[%s5 + $0x1d8] sm:$0xf]
    %v2568 = vld [vmem:[%s5 + $0x1dc] sm:$0xf]
    %v2689 = vunpack.c.l.b16 %v2449
    %v2690 = vunpack.c.l.b16 %v2450
    %v2691 = vunpack.c.l.b16 %v2451
    %v2692 = vunpack.c.l.b16 %v2452
    %v2693 = vunpack.c.l.b16 %v2453
    %v2694 = vunpack.c.l.b16 %v2454
    %v2695 = vunpack.c.l.b16 %v2455
    %v2696 = vunpack.c.l.b16 %v2456
    %v2697 = vunpack.c.l.b16 %v2457
    %v2698 = vunpack.c.l.b16 %v2458
    %v2699 = vunpack.c.l.b16 %v2459
    %v2700 = vunpack.c.l.b16 %v2460
    %v2701 = vunpack.c.l.b16 %v2461
    %v2702 = vunpack.c.l.b16 %v2462
    %v2703 = vunpack.c.l.b16 %v2463
    %v2704 = vunpack.c.l.b16 %v2464
    %v2705 = vunpack.c.l.b16 %v2465
    %v2706 = vunpack.c.l.b16 %v2466
    %v2707 = vunpack.c.l.b16 %v2467
    %v2708 = vunpack.c.l.b16 %v2468
    %v2709 = vunpack.c.l.b16 %v2469
    %v2710 = vunpack.c.l.b16 %v2470
    %v2711 = vunpack.c.l.b16 %v2471
    %v2712 = vunpack.c.l.b16 %v2472
    %v2713 = vunpack.c.l.b16 %v2473
    %v2714 = vunpack.c.l.b16 %v2474
    %v2715 = vunpack.c.l.b16 %v2475
    %v2716 = vunpack.c.l.b16 %v2476
    %v2717 = vunpack.c.l.b16 %v2477
    %v2718 = vunpack.c.l.b16 %v2478
    %v2719 = vunpack.c.l.b16 %v2479
    %v2720 = vunpack.c.l.b16 %v2480
    %v2721 = vunpack.c.l.b16 %v2481
    %v2722 = vunpack.c.l.b16 %v2482
    %v2723 = vunpack.c.l.b16 %v2483
    %v2724 = vunpack.c.l.b16 %v2484
    %v2725 = vunpack.c.l.b16 %v2485
    %v2726 = vunpack.c.l.b16 %v2486
    %v2727 = vunpack.c.l.b16 %v2487
    %v2728 = vunpack.c.l.b16 %v2488
    %v2729 = vunpack.c.l.b16 %v2489
    %v2730 = vunpack.c.l.b16 %v2490
    %v2731 = vunpack.c.l.b16 %v2491
    %v2732 = vunpack.c.l.b16 %v2492
    %v2733 = vunpack.c.l.b16 %v2493
    %v2734 = vunpack.c.l.b16 %v2494
    %v2735 = vunpack.c.l.b16 %v2495
    %v2736 = vunpack.c.l.b16 %v2496
    %v2737 = vunpack.c.l.b16 %v2497
    %v2738 = vunpack.c.l.b16 %v2498
    %v2739 = vunpack.c.l.b16 %v2499
    %v2740 = vunpack.c.l.b16 %v2500
    %v2741 = vunpack.c.l.b16 %v2501
    %v2742 = vunpack.c.l.b16 %v2502
    %v2743 = vunpack.c.l.b16 %v2503
    %v2744 = vunpack.c.l.b16 %v2504
    %v2745 = vunpack.c.l.b16 %v2505
    %v2746 = vunpack.c.l.b16 %v2506
    %v2747 = vunpack.c.l.b16 %v2507
    %v2748 = vunpack.c.l.b16 %v2508
    %v2749 = vunpack.c.l.b16 %v2509
    %v2750 = vunpack.c.l.b16 %v2510
    %v2751 = vunpack.c.l.b16 %v2511
    %v2752 = vunpack.c.l.b16 %v2512
    %v2753 = vunpack.c.l.b16 %v2513
    %v2754 = vunpack.c.l.b16 %v2514
    %v2755 = vunpack.c.l.b16 %v2515
    %v2756 = vunpack.c.l.b16 %v2516
    %v2757 = vunpack.c.l.b16 %v2517
    %v2758 = vunpack.c.l.b16 %v2518
    %v2759 = vunpack.c.l.b16 %v2519
    %v2760 = vunpack.c.l.b16 %v2520
    %v2761 = vunpack.c.l.b16 %v2521
    %v2762 = vunpack.c.l.b16 %v2522
    %v2763 = vunpack.c.l.b16 %v2523
    %v2764 = vunpack.c.l.b16 %v2524
    %v2765 = vunpack.c.l.b16 %v2525
    %v2766 = vunpack.c.l.b16 %v2526
    %v2767 = vunpack.c.l.b16 %v2527
    %v2768 = vunpack.c.l.b16 %v2528
    %v2769 = vunpack.c.l.b16 %v2529
    %v2770 = vunpack.c.l.b16 %v2530
    %v2771 = vunpack.c.l.b16 %v2531
    %v2772 = vunpack.c.l.b16 %v2532
    %v2773 = vunpack.c.l.b16 %v2533
    %v2774 = vunpack.c.l.b16 %v2534
    %v2775 = vunpack.c.l.b16 %v2535
    %v2776 = vunpack.c.l.b16 %v2536
    %v2777 = vunpack.c.l.b16 %v2537
    %v2778 = vunpack.c.l.b16 %v2538
    %v2779 = vunpack.c.l.b16 %v2539
    %v2780 = vunpack.c.l.b16 %v2540
    %v2781 = vunpack.c.l.b16 %v2541
    %v2782 = vunpack.c.l.b16 %v2542
    %v2783 = vunpack.c.l.b16 %v2543
    %v2784 = vunpack.c.l.b16 %v2544
    %v2785 = vunpack.c.l.b16 %v2545
    %v2786 = vunpack.c.l.b16 %v2546
    %v2787 = vunpack.c.l.b16 %v2547
    %v2788 = vunpack.c.l.b16 %v2548
    %v2789 = vunpack.c.l.b16 %v2549
    %v2790 = vunpack.c.l.b16 %v2550
    %v2791 = vunpack.c.l.b16 %v2551
    %v2792 = vunpack.c.l.b16 %v2552
    %v2793 = vunpack.c.l.b16 %v2553
    %v2794 = vunpack.c.l.b16 %v2554
    %v2795 = vunpack.c.l.b16 %v2555
    %v2796 = vunpack.c.l.b16 %v2556
    %v2797 = vunpack.c.l.b16 %v2557
    %v2798 = vunpack.c.l.b16 %v2558
    %v2799 = vunpack.c.l.b16 %v2559
    %v2800 = vunpack.c.l.b16 %v2560
    %v2801 = vunpack.c.l.b16 %v2561
    %v2802 = vunpack.c.l.b16 %v2562
    %v2803 = vunpack.c.l.b16 %v2563
    %v2804 = vunpack.c.l.b16 %v2564
    %v2805 = vunpack.c.l.b16 %v2565
    %v2806 = vunpack.c.l.b16 %v2566
    %v2807 = vunpack.c.l.b16 %v2567
    %v2808 = vunpack.c.l.b16 %v2568
    %v2809 = vpack.c.b16 %v2690, %v2689
    %v2810 = vpack.c.b16 %v2692, %v2691
    %v2811 = vpack.c.b16 %v2694, %v2693
    %v2812 = vpack.c.b16 %v2696, %v2695
    %v2813 = vpack.c.b16 %v2698, %v2697
    %v2814 = vpack.c.b16 %v2700, %v2699
    %v2815 = vpack.c.b16 %v2702, %v2701
    %v2816 = vpack.c.b16 %v2704, %v2703
    %v2817 = vpack.c.b16 %v2706, %v2705
    %v2818 = vpack.c.b16 %v2708, %v2707
    %v2819 = vpack.c.b16 %v2710, %v2709
    %v2820 = vpack.c.b16 %v2712, %v2711
    %v2821 = vpack.c.b16 %v2714, %v2713
    %v2822 = vpack.c.b16 %v2716, %v2715
    %v2823 = vpack.c.b16 %v2718, %v2717
    %v2824 = vpack.c.b16 %v2720, %v2719
    %v2825 = vpack.c.b16 %v2722, %v2721
    %v2826 = vpack.c.b16 %v2724, %v2723
    %v2827 = vpack.c.b16 %v2726, %v2725
    %v2828 = vpack.c.b16 %v2728, %v2727
    %v2829 = vpack.c.b16 %v2730, %v2729
    %v2830 = vpack.c.b16 %v2732, %v2731
    %v2831 = vpack.c.b16 %v2734, %v2733
    %v2832 = vpack.c.b16 %v2736, %v2735
    %v2833 = vpack.c.b16 %v2738, %v2737
    %v2834 = vpack.c.b16 %v2740, %v2739
    %v2835 = vpack.c.b16 %v2742, %v2741
    %v2836 = vpack.c.b16 %v2744, %v2743
    %v2837 = vpack.c.b16 %v2746, %v2745
    %v2838 = vpack.c.b16 %v2748, %v2747
    %v2839 = vpack.c.b16 %v2750, %v2749
    %v2840 = vpack.c.b16 %v2752, %v2751
    %v2841 = vpack.c.b16 %v2754, %v2753
    %v2842 = vpack.c.b16 %v2756, %v2755
    %v2843 = vpack.c.b16 %v2758, %v2757
    %v2844 = vpack.c.b16 %v2760, %v2759
    %v2845 = vpack.c.b16 %v2762, %v2761
    %v2846 = vpack.c.b16 %v2764, %v2763
    %v2847 = vpack.c.b16 %v2766, %v2765
    %v2848 = vpack.c.b16 %v2768, %v2767
    %v2849 = vpack.c.b16 %v2770, %v2769
    %v2850 = vpack.c.b16 %v2772, %v2771
    %v2851 = vpack.c.b16 %v2774, %v2773
    %v2852 = vpack.c.b16 %v2776, %v2775
    %v2853 = vpack.c.b16 %v2778, %v2777
    %v2854 = vpack.c.b16 %v2780, %v2779
    %v2855 = vpack.c.b16 %v2782, %v2781
    %v2856 = vpack.c.b16 %v2784, %v2783
    %v2857 = vpack.c.b16 %v2786, %v2785
    %v2858 = vpack.c.b16 %v2788, %v2787
    %v2859 = vpack.c.b16 %v2790, %v2789
    %v2860 = vpack.c.b16 %v2792, %v2791
    %v2861 = vpack.c.b16 %v2794, %v2793
    %v2862 = vpack.c.b16 %v2796, %v2795
    %v2863 = vpack.c.b16 %v2798, %v2797
    %v2864 = vpack.c.b16 %v2800, %v2799
    %v2865 = vpack.c.b16 %v2802, %v2801
    %v2866 = vpack.c.b16 %v2804, %v2803
    %v2867 = vpack.c.b16 %v2806, %v2805
    %v2868 = vpack.c.b16 %v2808, %v2807
    %v2930 = vsel %vm2433, %v2448, 0
    %2932 = vmatpush.bf16.msra.mxu0 %v2816
    %2933 = vmatpush.bf16.msra.mxu0 %v2815
    %2934 = vmatpush.bf16.msra.mxu0 %v2814
    %2935 = vmatpush.bf16.msra.mxu0 %v2813
    %2936 = vmatpush.bf16.msra.mxu0 %v2812
    %2937 = vmatpush.bf16.msra.mxu0 %v2811
    %2938 = vmatpush.bf16.msra.mxu0 %v2810
    %2939 = vmatpush.bf16.msra.mxu0 %v2809
    %2940 = vmatmul.bf16.gmra.mxu0 %v2441
    %v2941 = vpop.f32.mrf.mxu0
    %v2942 = vadd.f32 %v2438, %v2941
    %v2943 = vpop.f32.mrf.mxu0
    %2944 = vdwg.mxu0
    %2945 = vmatpush.bf16.msra.mxu0 %v2824
    %2946 = vmatpush.bf16.msra.mxu0 %v2823
    %2947 = vmatpush.bf16.msra.mxu0 %v2822
    %2948 = vmatpush.bf16.msra.mxu0 %v2821
    %2949 = vmatpush.bf16.msra.mxu0 %v2820
    %2950 = vmatpush.bf16.msra.mxu0 %v2819
    %2951 = vmatpush.bf16.msra.mxu0 %v2818
    %2952 = vmatpush.bf16.msra.mxu0 %v2817
    %2953 = vmatmul.bf16.gmra.mxu0 %v2442
    %v2954 = vpop.f32.mrf.mxu0
    %v2955 = vadd.f32 %v2942, %v2954
    %v2956 = vpop.f32.mrf.mxu0
    %2957 = vdwg.mxu0
    %2958 = vmatpush.bf16.msra.mxu0 %v2832
    %2959 = vmatpush.bf16.msra.mxu0 %v2831
    %2960 = vmatpush.bf16.msra.mxu0 %v2830
    %2961 = vmatpush.bf16.msra.mxu0 %v2829
    %2962 = vmatpush.bf16.msra.mxu0 %v2828
    %2963 = vmatpush.bf16.msra.mxu0 %v2827
    %2964 = vmatpush.bf16.msra.mxu0 %v2826
    %2965 = vmatpush.bf16.msra.mxu0 %v2825
    %2966 = vmatmul.bf16.gmra.mxu0 %v2443
    %v2967 = vpop.f32.mrf.mxu0
    %v2968 = vadd.f32 %v2955, %v2967
    %v2969 = vpop.f32.mrf.mxu0
    %2970 = vdwg.mxu0
    %2971 = vmatpush.bf16.msra.mxu0 %v2840
    %2972 = vmatpush.bf16.msra.mxu0 %v2839
    %2973 = vmatpush.bf16.msra.mxu0 %v2838
    %2974 = vmatpush.bf16.msra.mxu0 %v2837
    %2975 = vmatpush.bf16.msra.mxu0 %v2836
    %2976 = vmatpush.bf16.msra.mxu0 %v2835
    %2977 = vmatpush.bf16.msra.mxu0 %v2834
    %2978 = vmatpush.bf16.msra.mxu0 %v2833
    %2979 = vmatmul.bf16.gmra.mxu0 %v2444
    %v2980 = vpop.f32.mrf.mxu0
    %v2981 = vadd.f32 %v2968, %v2980
    %v2982 = vpop.f32.mrf.mxu0
    %2983 = vdwg.mxu0
    %2984 = vmatpush.bf16.msra.mxu0 %v2848
    %2985 = vmatpush.bf16.msra.mxu0 %v2847
    %2986 = vmatpush.bf16.msra.mxu0 %v2846
    %2987 = vmatpush.bf16.msra.mxu0 %v2845
    %2988 = vmatpush.bf16.msra.mxu0 %v2844
    %2989 = vmatpush.bf16.msra.mxu0 %v2843
    %2990 = vmatpush.bf16.msra.mxu0 %v2842
    %2991 = vmatpush.bf16.msra.mxu0 %v2841
    %2992 = vmatmul.bf16.gmra.mxu0 %v2445
    %v2993 = vpop.f32.mrf.mxu0
    %v2994 = vadd.f32 %v2981, %v2993
    %v2995 = vpop.f32.mrf.mxu0
    %2996 = vdwg.mxu0
    %2997 = vmatpush.bf16.msra.mxu0 %v2856
    %2998 = vmatpush.bf16.msra.mxu0 %v2855
    %2999 = vmatpush.bf16.msra.mxu0 %v2854
    %3000 = vmatpush.bf16.msra.mxu0 %v2853
    %3001 = vmatpush.bf16.msra.mxu0 %v2852
    %3002 = vmatpush.bf16.msra.mxu0 %v2851
    %3003 = vmatpush.bf16.msra.mxu0 %v2850
    %3004 = vmatpush.bf16.msra.mxu0 %v2849
    %3005 = vmatmul.bf16.gmra.mxu0 %v2446
    %v3006 = vpop.f32.mrf.mxu0
    %v3007 = vadd.f32 %v2994, %v3006
    %v3008 = vpop.f32.mrf.mxu0
    %3009 = vdwg.mxu0
    %3010 = vmatpush.bf16.msra.mxu0 %v2864
    %3011 = vmatpush.bf16.msra.mxu0 %v2863
    %3012 = vmatpush.bf16.msra.mxu0 %v2862
    %3013 = vmatpush.bf16.msra.mxu0 %v2861
    %3014 = vmatpush.bf16.msra.mxu0 %v2860
    %3015 = vmatpush.bf16.msra.mxu0 %v2859
    %3016 = vmatpush.bf16.msra.mxu0 %v2858
    %3017 = vmatpush.bf16.msra.mxu0 %v2857
    %3018 = vmatmul.bf16.gmra.mxu0 %v2447
    %v3019 = vpop.f32.mrf.mxu0
    %v3020 = vadd.f32 %v3007, %v3019
    %v3021 = vpop.f32.mrf.mxu0
    %3022 = vdwg.mxu0
    %3023 = vmatpush.bf16.msra.mxu0 0
    %3024 = vmatpush.bf16.msra.mxu0 0
    %3025 = vmatpush.bf16.msra.mxu0 0
    %3026 = vmatpush.bf16.msra.mxu0 0
    %3027 = vmatpush.bf16.msra.mxu0 %v2868
    %3028 = vmatpush.bf16.msra.mxu0 %v2867
    %3029 = vmatpush.bf16.msra.mxu0 %v2866
    %3030 = vmatpush.bf16.msra.mxu0 %v2865
    %3031 = vmatmul.bf16.gmra.mxu0 %v2930
    %v3032 = vpop.f32.mrf.mxu0
    %v3033 = vadd.f32 %v3020, %v3032
    %v3034 = vpop.f32.mrf.mxu0
    %3035 = vdwg.mxu0
    %v3036 = vxor.u32 %v3033, 2147483648
    %v3037 = vmul.f32 %v3036, 1.442695
    %v3038 = vpow.pop %v3037
    %v3039 = vadd.f32 %v3038, 1.0
    %v3040 = vrcp.pop %v3039
    %v3041 = vmul.f32 %v3039, %v3040
    %v3042 = vsub.f32 1.0, %v3041
    %v3043 = vmul.f32 %v3040, %v3042
    %v3044 = vadd.f32 %v3040, %v3043
    %vm3045 = vweird.f32 %v3039
    %vm3046 = vweird.f32 %v3040
    %vm3047 = vmor %vm3045, %vm3046
    %v3048 = vsel %vm3047, %v3040, %v3044
    %v3049 = vand.u32 2147483647, %v3039
    %vm3050 = vcmp.eq.f32.partialorder %v3049, 8.507059e+37
    %v3051 = vand.u32 %v3039, 2147483648
    %v3052 = vor.u32 1.1754944e-38, %v3051
    %v3053 = vsel %vm3050, %v3052, %v3048
    %v3054 = vmul.f32 1.0, %v3053
    %v3055 = vmul.f32 %v3054, %v2439
    %v3056 = vadd.f32 %v3055, %v2440
    %v3057 = vld [vmem:[#allocation7 + $0x17] ss:$0 sm:$0xff]
    %v3058 = vld [vmem:[#allocation7 + $0x20] ss:$0 sm:$0xff]
    %v3059 = vld [vmem:[#allocation7 + $0x21] ss:$0 sm:$0xff]
    %v3060 = vpack.c.bf16 %v3056, %v3056
    %v3061 = vld [vmem:[%s6] sm:$0xf]
    %v3062 = vld [vmem:[%s6 + $0x4] sm:$0xf]
    %v3063 = vld [vmem:[%s6 + $0x8] sm:$0xf]
    %v3064 = vld [vmem:[%s6 + $0xc] sm:$0xf]
    %v3065 = vld [vmem:[%s6 + $0x10] sm:$0xf]
    %v3066 = vld [vmem:[%s6 + $0x14] sm:$0xf]
    %v3067 = vld [vmem:[%s6 + $0x18] sm:$0xf]
    %v3068 = vld [vmem:[%s6 + $0x1c] sm:$0xf]
    %v3069 = vld [vmem:[%s6 + $0x20] sm:$0xf]
    %v3070 = vld [vmem:[%s6 + $0x24] sm:$0xf]
    %v3071 = vld [vmem:[%s6 + $0x28] sm:$0xf]
    %v3072 = vld [vmem:[%s6 + $0x2c] sm:$0xf]
    %v3073 = vld [vmem:[%s6 + $0x30] sm:$0xf]
    %v3074 = vld [vmem:[%s6 + $0x34] sm:$0xf]
    %v3075 = vld [vmem:[%s6 + $0x38] sm:$0xf]
    %v3076 = vld [vmem:[%s6 + $0x3c] sm:$0xf]
    %v3093 = vunpack.c.l.b16 %v3061
    %v3094 = vunpack.c.l.b16 %v3062
    %v3095 = vunpack.c.l.b16 %v3063
    %v3096 = vunpack.c.l.b16 %v3064
    %v3097 = vunpack.c.l.b16 %v3065
    %v3098 = vunpack.c.l.b16 %v3066
    %v3099 = vunpack.c.l.b16 %v3067
    %v3100 = vunpack.c.l.b16 %v3068
    %v3101 = vunpack.c.l.b16 %v3069
    %v3102 = vunpack.c.l.b16 %v3070
    %v3103 = vunpack.c.l.b16 %v3071
    %v3104 = vunpack.c.l.b16 %v3072
    %v3105 = vunpack.c.l.b16 %v3073
    %v3106 = vunpack.c.l.b16 %v3074
    %v3107 = vunpack.c.l.b16 %v3075
    %v3108 = vunpack.c.l.b16 %v3076
    %v3109 = vpack.c.b16 %v3094, %v3093
    %v3110 = vpack.c.b16 %v3096, %v3095
    %v3111 = vpack.c.b16 %v3098, %v3097
    %v3112 = vpack.c.b16 %v3100, %v3099
    %v3113 = vpack.c.b16 %v3102, %v3101
    %v3114 = vpack.c.b16 %v3104, %v3103
    %v3115 = vpack.c.b16 %v3106, %v3105
    %v3116 = vpack.c.b16 %v3108, %v3107
    %3125 = vmatpush.bf16.msra.mxu0 %v3116
    %3126 = vmatpush.bf16.msra.mxu0 %v3115
    %3127 = vmatpush.bf16.msra.mxu0 %v3114
    %3128 = vmatpush.bf16.msra.mxu0 %v3113
    %3129 = vmatpush.bf16.msra.mxu0 %v3112
    %3130 = vmatpush.bf16.msra.mxu0 %v3111
    %3131 = vmatpush.bf16.msra.mxu0 %v3110
    %3132 = vmatpush.bf16.msra.mxu0 %v3109
    %3133 = vmatmul.bf16.gmra.mxu0 %v3060
    %v3134 = vpop.f32.mrf.mxu0
    %v3135 = vadd.f32 %v3057, %v3134
    %v3136 = vpop.f32.mrf.mxu0
    %3137 = vdwg.mxu0
    %v3138 = vxor.u32 %v3135, 2147483648
    %v3139 = vmul.f32 %v3138, 1.442695
    %v3140 = vpow.pop %v3139
    %v3141 = vadd.f32 %v3140, 1.0
    %v3142 = vrcp.pop %v3141
    %v3143 = vmul.f32 %v3141, %v3142
    %v3144 = vsub.f32 1.0, %v3143
    %v3145 = vmul.f32 %v3142, %v3144
    %v3146 = vadd.f32 %v3142, %v3145
    %vm3147 = vweird.f32 %v3141
    %vm3148 = vweird.f32 %v3142
    %vm3149 = vmor %vm3147, %vm3148
    %v3150 = vsel %vm3149, %v3142, %v3146
    %v3151 = vand.u32 2147483647, %v3141
    %vm3152 = vcmp.eq.f32.partialorder %v3151, 8.507059e+37
    %v3153 = vand.u32 %v3141, 2147483648
    %v3154 = vor.u32 1.1754944e-38, %v3153
    %v3155 = vsel %vm3152, %v3154, %v3150
    %v3156 = vmul.f32 1.0, %v3155
    %v3157 = vmul.f32 %v3156, %v3058
    %v3158 = vadd.f32 %v3157, %v3059
    %v3159 = vld [vmem:[#allocation7 + $0x20] sm:$0xc]
    %v3160 = vperm.slane %v3159, 2
    %v3161 = vmul.f32 %v3158, %v3160
    %3162 = vadd.xlane.f32.xlu0 %v3161
    %v3163 = vpop.xlane.xlu0 %3162
    %v3164 = vperm.slane %v3159, 3
    %v3165 = vadd.f32 %v3163, %v3164
    %v3166 = vxor.u32 %v3165, 2147483648
    %v3167 = vmul.f32 %v3166, 1.442695
    %v3168 = vpow.pop %v3167
    %v3169 = vadd.f32 %v3168, 1.0
    %v3170 = vrcp.pop %v3169
    %v3171 = vmul.f32 %v3169, %v3170
    %v3172 = vsub.f32 1.0, %v3171
    %v3173 = vmul.f32 %v3170, %v3172
    %v3174 = vadd.f32 %v3170, %v3173
    %vm3175 = vweird.f32 %v3169
    %vm3176 = vweird.f32 %v3170
    %vm3177 = vmor %vm3175, %vm3176
    %v3178 = vsel %vm3177, %v3170, %v3174
    %v3179 = vand.u32 2147483647, %v3169
    %vm3180 = vcmp.eq.f32.partialorder %v3179, 8.507059e+37
    %v3181 = vand.u32 %v3169, 2147483648
    %v3182 = vor.u32 1.1754944e-38, %v3181
    %v3183 = vsel %vm3180, %v3182, %v3178
    %v3184 = vmul.f32 1.0, %v3183
    %vm3185 = vcmask 7168
    %3186 = vst.msk [vmem:[%s8] sm:$0xff] %vm3185, %v3184
    // Predicated region
    $region50: #{fwd.1} parent=1 // pred_check
      _
    $region51: #{fwd.1} parent=1 // pred_check_branch
      %3188 = sbr.rel (0) target = $region53
    $region52: #{fwd.1} parent=1 // pred_region
      _
    $region53: #{fwd.1} parent=1 // pred_fallthru
      _
    // Predicated region
    $region54: #{fwd.1} parent=1 // pred_check
      _
    $region55: #{fwd.1} parent=1 // pred_check_branch
      %3190 = sbr.rel (0) target = $region57
    $region56: #{fwd.1} parent=1 // pred_region
      _
    $region57: #{fwd.1} parent=1 // pred_fallthru
      _
    %3191 = vsyncpa [#allocation3], 1
    %3192 = vsyncpa [#allocation5], 1
    %3193 = vsyncpa [#allocation8], 1

</llo_original>
